<compile_context>
chip_gen: v7x
topology: tpu7x:2x2x1
jax: 0.10.0
libtpu: 0.0.40
codegen_flags: <defaults>
</compile_context>

<pallas_src>
import math

import jax
import jax.numpy as jnp
from jax.experimental import pallas as pl
from jax.experimental.pallas import tpu as pltpu

# ---------------------------------------------------------------------------
# config (module defaults, small spatial size for the demo)
# ---------------------------------------------------------------------------
DILATIONS = (1, 3, 7)
KERNEL_SIZE = 4
STRIDE = 1            # downsample_ratio = 1
IN_CHANS = 1
EMBED_DIM = 64
BN_EPS = 1e-5

TILE_M = 128                    # rows per grid step; raise to 256-512 for large B*H*W
LANE = 128                      # TPU lane width (aggregate N padded to this)
VMEM_LIMIT = 32 * 1024 * 1024   # explicit scoped-VMEM limit (fits v5e/v6e/v7x)


# ---------------------------------------------------------------------------
# in-kernel helpers
# ---------------------------------------------------------------------------
def _gelu_tanh(x):
    # tanh-form GELU (single EUP tanh + a few VALU ops); |err| vs exact erf GELU
    # is < 1e-3, far below the bf16 noise floor of the matmuls feeding it.
    c = math.sqrt(2.0 / math.pi)
    return 0.5 * x * (1.0 + jnp.tanh(c * (x + 0.044715 * (x * x * x))))


# ---------------------------------------------------------------------------
# Pallas kernels
# ---------------------------------------------------------------------------
def fused_branch_kernel(p_ref, w_ref, b_ref, o_ref):
    # p: (TILE_M, 3*Cin*k*k) bf16 -- the three dilation branches' im2col columns
    # w: (3*Cin*k*k, 3*E)    bf16 -- block-diagonal: branch i in rows/cols block i
    # b: (1, 3*E)            f32
    # o: (TILE_M, 3*E)       bf16 -- already-concatenated branch outputs
    z = jnp.dot(p_ref[...], w_ref[...], preferred_element_type=jnp.float32)
    z = z + b_ref[...]
    o_ref[...] = _gelu_tanh(z).astype(o_ref.dtype)


def agg_conv_stats_kernel(p_ref, w_ref, z_ref, stats_ref):
    # 3x3 aggregate conv as a tiled matmul (bias intentionally dropped: it cancels
    # exactly through training-mode BatchNorm), plus per-tile per-channel
    # sum / sum-of-squares partials so BN statistics can be reduced across tiles.
    z = jnp.dot(p_ref[...], w_ref[...], preferred_element_type=jnp.float32)
    z_ref[...] = z
    stats_ref[0, 0:1, :] = jnp.sum(z, axis=0, keepdims=True)
    stats_ref[0, 1:2, :] = jnp.sum(z * z, axis=0, keepdims=True)


def bn_apply_kernel(z_ref, scale_ref, shift_ref, o_ref):
    o_ref[...] = z_ref[...] * scale_ref[...] + shift_ref[...]


# ---------------------------------------------------------------------------
# glue: im2col (pure slicing/stacking, stays in plain JAX)
# ---------------------------------------------------------------------------
def im2col(x_nhwc, k, dilation, pad, stride):
    B, H, W, C = x_nhwc.shape
    xp = jnp.pad(x_nhwc, ((0, 0), (pad, pad), (pad, pad), (0, 0)))
    Ho = (H + 2 * pad - dilation * (k - 1) - 1) // stride + 1
    Wo = (W + 2 * pad - dilation * (k - 1) - 1) // stride + 1
    patches = []
    for kh in range(k):
        for kw in range(k):
            h0 = kh * dilation
            w0 = kw * dilation
            sl = xp[:, h0:h0 + (Ho - 1) * stride + 1:stride,
                       w0:w0 + (Wo - 1) * stride + 1:stride, :]
            patches.append(sl)                       # (B, Ho, Wo, C)
    p = jnp.stack(patches, axis=3)                   # (B, Ho, Wo, k*k, C)
    p = jnp.transpose(p, (0, 1, 2, 4, 3))            # (B, Ho, Wo, C, k*k) -> Cin-major
    return p.reshape(B * Ho * Wo, C * k * k), Ho, Wo


def _pad_rows(a, mult):
    m = a.shape[0]
    mp = pl.cdiv(m, mult) * mult
    if mp == m:
        return a
    return jnp.pad(a, ((0, mp - m),) + ((0, 0),) * (a.ndim - 1))


# ---------------------------------------------------------------------------
# forward pass
# ---------------------------------------------------------------------------
def _fused_branch_conv(x_nhwc, params):
    """Per-dilation Conv2d(k=4, dil d) + GELU, fused into one Pallas matmul."""
    B = x_nhwc.shape[0]
    E, nb = EMBED_DIM, len(DILATIONS)
    kk = IN_CHANS * KERNEL_SIZE * KERNEL_SIZE

    pats, Ho, Wo = [], None, None
    for d in DILATIONS:
        pad = math.ceil(((KERNEL_SIZE - 1) * d + 1 - STRIDE) / 2)
        p, Ho, Wo = im2col(x_nhwc, KERNEL_SIZE, d, pad, STRIDE)
        pats.append(p)
    patches = jnp.concatenate(pats, axis=1)                       # (M, nb*kk)
    M = patches.shape[0]
    patches = _pad_rows(patches, TILE_M).astype(jnp.bfloat16)     # (Mp, K) bf16
    Mp, K = patches.shape
    N = nb * E

    # block-diagonal weight: one (Mp,K)x(K,N) matmul emits the concatenated output
    wblk = jnp.zeros((K, N), jnp.float32)
    biases = []
    for i, (w, b) in enumerate(params["convs"]):
        wblk = wblk.at[i * kk:(i + 1) * kk, i * E:(i + 1) * E].set(
            jnp.transpose(w.reshape(E, -1)))
        biases.append(b)
    wblk = wblk.astype(jnp.bfloat16)
    bias = jnp.concatenate(biases).reshape(1, N).astype(jnp.float32)

    n_tiles = Mp // TILE_M
    y = pl.pallas_call(
        fused_branch_kernel,
        out_shape=jax.ShapeDtypeStruct((Mp, N), jnp.bfloat16),
        grid=(n_tiles,),
        in_specs=[pl.BlockSpec((TILE_M, K), lambda i: (i, 0)),
                  pl.BlockSpec((K, N), lambda i: (0, 0)),
                  pl.BlockSpec((1, N), lambda i: (0, 0))],
        out_specs=pl.BlockSpec((TILE_M, N), lambda i: (i, 0)),
        compiler_params=pltpu.CompilerParams(
            dimension_semantics=("parallel",),
            vmem_limit_bytes=VMEM_LIMIT),
        cost_estimate=pl.CostEstimate(
            flops=2 * Mp * K * N,
            transcendentals=Mp * N,
            bytes_accessed=2 * patches.size + 2 * wblk.size + 4 * bias.size + 2 * Mp * N),
    )(patches, wblk, bias)

    return y[:M].reshape(B, Ho, Wo, N)                            # (B,Ho,Wo,3E) bf16


def _aggregate_conv_bn(y_nhwc, params):
    """3x3 aggregate conv (tiled matmul) + two-phase training-mode BatchNorm."""
    B, Ho, Wo, _ = y_nhwc.shape
    E = EMBED_DIM
    Np = LANE                                    # pad output channels 64 -> 128

    # TODO(synk): replace this wrapper-side im2col with an in-kernel haloed 3x3
    # (9-tap shifted-block K accumulation) to cut HBM traffic ~9x at large B*H*W.
    p2, Ho2, Wo2 = im2col(y_nhwc, 3, 1, 1, 1)    # (M2, 9*3E), bf16 (y is bf16)
    M2 = p2.shape[0]
    p2 = _pad_rows(p2, TILE_M)
    M2p, K = p2.shape

    aw = jnp.transpose(params["agg_w"].reshape(E, -1))            # (K, E)
    aw = jnp.pad(aw, ((0, 0), (0, Np - E))).astype(jnp.bfloat16)
    # Conv bias omitted on purpose: a per-channel constant is removed exactly by
    # the BatchNorm mean subtraction, and omitting it makes the zero-padded rows
    # contribute exactly zero to the sum / sum-of-squares partials.

    n_tiles = M2p // TILE_M
    z, psums = pl.pallas_call(
        agg_conv_stats_kernel,
        out_shape=(jax.ShapeDtypeStruct((M2p, Np), jnp.float32),
                   jax.ShapeDtypeStruct((n_tiles, 2, Np), jnp.float32)),
        grid=(n_tiles,),
        in_specs=[pl.BlockSpec((TILE_M, K), lambda i: (i, 0)),
                  pl.BlockSpec((K, Np), lambda i: (0, 0))],
        out_specs=(pl.BlockSpec((TILE_M, Np), lambda i: (i, 0)),
                   pl.BlockSpec((1, 2, Np), lambda i: (i, 0, 0))),
        compiler_params=pltpu.CompilerParams(
            dimension_semantics=("parallel",),
            vmem_limit_bytes=VMEM_LIMIT),
        cost_estimate=pl.CostEstimate(
            flops=2 * M2p * K * Np,
            transcendentals=0,
            bytes_accessed=2 * p2.size + 2 * aw.size + 4 * M2p * Np + 8 * n_tiles * Np),
    )(p2, aw)

    # finalize batch statistics over the true M2 rows (padded rows added zeros)
    sums = jnp.sum(psums, axis=0)                # (2, Np)
    mean = sums[0] / M2
    var = sums[1] / M2 - mean * mean
    inv_std = jax.lax.rsqrt(var + BN_EPS)
    gamma = jnp.pad(params["gamma"], (0, Np - E))
    beta = jnp.pad(params["beta"], (0, Np - E))
    scale = (gamma * inv_std).reshape(1, Np).astype(jnp.float32)
    shift = (beta - mean * gamma * inv_std).reshape(1, Np).astype(jnp.float32)

    out = pl.pallas_call(
        bn_apply_kernel,
        out_shape=jax.ShapeDtypeStruct((M2p, Np), jnp.float32),
        grid=(n_tiles,),
        in_specs=[pl.BlockSpec((TILE_M, Np), lambda i: (i, 0)),
                  pl.BlockSpec((1, Np), lambda i: (0, 0)),
                  pl.BlockSpec((1, Np), lambda i: (0, 0))],
        out_specs=pl.BlockSpec((TILE_M, Np), lambda i: (i, 0)),
        compiler_params=pltpu.CompilerParams(
            dimension_semantics=("parallel",),
            vmem_limit_bytes=VMEM_LIMIT),
        cost_estimate=pl.CostEstimate(
            flops=2 * M2p * Np,
            transcendentals=0,
            bytes_accessed=8 * M2p * Np + 8 * Np),
    )(z, scale, shift)

    return out[:M2, :E].reshape(B, Ho2, Wo2, E)


def prm_forward(x_nchw, params):
    x = jnp.transpose(x_nchw, (0, 2, 3, 1)).astype(jnp.float32)   # NCHW -> NHWC
    y = _fused_branch_conv(x, params)                             # (B, Ho, Wo, 3E) bf16
    out = _aggregate_conv_bn(y, params)                           # (B, Ho, Wo, E) f32
    return jnp.transpose(out, (0, 3, 1, 2))                       # back to NCHW


# ---------------------------------------------------------------------------
# pure-JAX f32 reference (for correctness checking)
# ---------------------------------------------------------------------------
def prm_reference(x, params):
    def conv(z, w, b, pad, dil):
        out = jax.lax.conv_general_dilated(
            z, w, window_strides=(STRIDE, STRIDE),
            padding=((pad, pad), (pad, pad)),
            rhs_dilation=(dil, dil),
            dimension_numbers=("NCHW", "OIHW", "NCHW"),
            precision=jax.lax.Precision.HIGHEST)
        return out + b.reshape(1, -1, 1, 1)

    ys = []
    for (w, b), d in zip(params["convs"], DILATIONS):
        pad = math.ceil(((KERNEL_SIZE - 1) * d + 1 - STRIDE) / 2)
        z = conv(x, w, b, pad, d)
        z = 0.5 * z * (1.0 + jax.scipy.special.erf(z / jnp.sqrt(2.0)))   # exact GELU
        ys.append(z)
    y = jnp.concatenate(ys, axis=1)
    y = conv(y, params["agg_w"], params["agg_b"], 1, 1)
    mean = jnp.mean(y, axis=(0, 2, 3), keepdims=True)
    var = jnp.mean((y - mean) ** 2, axis=(0, 2, 3), keepdims=True)
    y = (y - mean) / jnp.sqrt(var + BN_EPS)
    return y * params["gamma"].reshape(1, -1, 1, 1) + params["beta"].reshape(1, -1, 1, 1)


# ---------------------------------------------------------------------------
# deterministic parameter init (synthetic; shapes follow the PyTorch module)
# ---------------------------------------------------------------------------
def init_params(key):
    keys = jax.random.split(key, 2 * len(DILATIONS) + 4)
    convs = []
    fan_in = IN_CHANS * KERNEL_SIZE * KERNEL_SIZE
    for i, _ in enumerate(DILATIONS):
        w = jax.random.normal(keys[2 * i], (EMBED_DIM, IN_CHANS, KERNEL_SIZE, KERNEL_SIZE),
                              jnp.float32) / math.sqrt(fan_in)
        b = 0.1 * jax.random.normal(keys[2 * i + 1], (EMBED_DIM,), jnp.float32)
        convs.append((w, b))
    agg_fan_in = EMBED_DIM * len(DILATIONS) * 9
    agg_w = jax.random.normal(keys[-4], (EMBED_DIM, EMBED_DIM * len(DILATIONS), 3, 3),
                              jnp.float32) / math.sqrt(agg_fan_in)
    agg_b = 0.1 * jax.random.normal(keys[-3], (EMBED_DIM,), jnp.float32)
    gamma = 1.0 + 0.1 * jax.random.normal(keys[-2], (EMBED_DIM,), jnp.float32)
    beta = 0.1 * jax.random.normal(keys[-1], (EMBED_DIM,), jnp.float32)
    return {"convs": convs, "agg_w": agg_w, "agg_b": agg_b, "gamma": gamma, "beta": beta}


# ---------------------------------------------------------------------------
if __name__ == "__main__":
    key = jax.random.PRNGKey(0)
    k_x, k_p = jax.random.split(key)

    # x: (B, C, W, H) = (2, 1, 16, 16)  -> output (2, 64, 17, 17)
    x = jax.random.normal(k_x, (2, IN_CHANS, 16, 16), jnp.float32)
    params = init_params(k_p)

    out = jax.jit(prm_forward)(x, params)
    out = jax.block_until_ready(out)
    assert out.shape == (2, EMBED_DIM, 17, 17), out.shape

    ref = prm_reference(x, params)
    # bf16 matmul inputs (per perf review) leave ~1e-2-level worst-case deviation
    # after the K=1728 aggregate contraction is renormalized by BatchNorm, so we
    # check a loose max-abs bound plus a tight relative-Frobenius bound.
    max_err = float(jnp.max(jnp.abs(out - ref)))
    rel_err = float(jnp.linalg.norm(out - ref) / jnp.linalg.norm(ref))
    assert max_err < 5e-2 and rel_err < 2e-2, (max_err, rel_err)

    print("KERNEL_OK")
</pallas_src>

<mosaic_0001>
module attributes {stable_mosaic.version = 11 : i64} {
  func.func @fused_branch_kernel(%arg0: i32, %arg1: memref<128x48xbf16, #tpu.memory_space<vmem>>, %arg2: memref<48x192xbf16, #tpu.memory_space<vmem>>, %arg3: memref<1x192xf32, #tpu.memory_space<vmem>>, %arg4: memref<128x192xbf16, #tpu.memory_space<vmem>>) attributes {dimension_semantics = [#tpu.dimension_semantics<parallel>], iteration_bounds = array<i64: 5>, scalar_prefetch = 0 : i64, scratch_operands = 0 : i64, tpu.core_type = #tpu.core_type<tc>, window_params = [{transform_indices = @transform_0, window_bounds = array<i64: 128, 48>}, {pipeline_mode = #tpu.pipeline_mode<synchronous>, transform_indices = @transform_1, window_bounds = array<i64: 48, 192>}, {pipeline_mode = #tpu.pipeline_mode<synchronous>, transform_indices = @transform_2, window_bounds = array<i64: 1, 192>}, {transform_indices = @transform_3, window_bounds = array<i64: 128, 192>}]} {
    %c0 = arith.constant 0 : index
    %c0_0 = arith.constant 0 : index
    %0 = vector.load %arg1[%c0, %c0_0] : memref<128x48xbf16, #tpu.memory_space<vmem>>, vector<128x48xbf16>
    %c0_1 = arith.constant 0 : index
    %c0_2 = arith.constant 0 : index
    %1 = vector.load %arg2[%c0_1, %c0_2] : memref<48x192xbf16, #tpu.memory_space<vmem>>, vector<48x192xbf16>
    %cst = arith.constant dense<0.000000e+00> : vector<128x192xf32>
    %2 = tpu.matmul %0, %1, %cst {dimension_numbers = #tpu.dot_dimension_numbers<[1], [0], [0], [1], [0, 0, 1, 1], [], []>} : vector<128x48xbf16>, vector<48x192xbf16>, vector<128x192xf32> -> vector<128x192xf32>
    %c0_3 = arith.constant 0 : index
    %c0_4 = arith.constant 0 : index
    %3 = vector.load %arg3[%c0_3, %c0_4] : memref<1x192xf32, #tpu.memory_space<vmem>>, vector<1x192xf32>
    %4 = vector.broadcast %3 : vector<1x192xf32> to vector<128x192xf32>
    %5 = arith.addf %2, %4 : vector<128x192xf32>
    %cst_5 = arith.constant 5.000000e-01 : f32
    %6 = vector.broadcast %cst_5 : f32 to vector<128x192xf32>
    %7 = arith.mulf %6, %5 : vector<128x192xf32>
    %8 = arith.mulf %5, %5 : vector<128x192xf32>
    %9 = arith.mulf %8, %5 : vector<128x192xf32>
    %cst_6 = arith.constant 4.471500e-02 : f32
    %10 = vector.broadcast %cst_6 : f32 to vector<128x192xf32>
    %11 = arith.mulf %10, %9 : vector<128x192xf32>
    %12 = arith.addf %5, %11 : vector<128x192xf32>
    %cst_7 = arith.constant 0.797884583 : f32
    %13 = vector.broadcast %cst_7 : f32 to vector<128x192xf32>
    %14 = arith.mulf %13, %12 : vector<128x192xf32>
    %15 = math.tanh %14 : vector<128x192xf32>
    %cst_8 = arith.constant 1.000000e+00 : f32
    %16 = vector.broadcast %cst_8 : f32 to vector<128x192xf32>
    %17 = arith.addf %16, %15 : vector<128x192xf32>
    %18 = arith.mulf %7, %17 : vector<128x192xf32>
    %19 = arith.truncf %18 : vector<128x192xf32> to vector<128x192xbf16>
    %c0_9 = arith.constant 0 : index
    %c0_10 = arith.constant 0 : index
    %20 = vector.load %arg4[%c0_9, %c0_10] : memref<128x192xbf16, #tpu.memory_space<vmem>>, vector<128x192xbf16>
    tpu.vector_store %arg4[%c0_9, %c0_10], %19 {strides = array<i32>} : memref<128x192xbf16, #tpu.memory_space<vmem>>, vector<128x192xbf16>,
    return
  }
  func.func @transform_0(%arg0: i32) -> (i32, i32) {
    %c0_i32 = arith.constant 0 : i32
    %c0_i32_0 = arith.constant 0 : i32
    return %arg0, %c0_i32 : i32, i32
  }
  func.func @transform_1(%arg0: i32) -> (i32, i32) {
    %c0_i32 = arith.constant 0 : i32
    %c0_i32_0 = arith.constant 0 : i32
    %c0_i32_1 = arith.constant 0 : i32
    return %c0_i32, %c0_i32_0 : i32, i32
  }
  func.func @transform_2(%arg0: i32) -> (i32, i32) {
    %c0_i32 = arith.constant 0 : i32
    %c0_i32_0 = arith.constant 0 : i32
    %c0_i32_1 = arith.constant 0 : i32
    return %c0_i32, %c0_i32_0 : i32, i32
  }
  func.func @transform_3(%arg0: i32) -> (i32, i32) {
    %c0_i32 = arith.constant 0 : i32
    %c0_i32_0 = arith.constant 0 : i32
    return %arg0, %c0_i32 : i32, i32
  }
}

module attributes {stable_mosaic.version = 11 : i64} {
  func.func @agg_conv_stats_kernel(%arg0: i32, %arg1: memref<128x1728xbf16, #tpu.memory_space<vmem>>, %arg2: memref<1728x128xbf16, #tpu.memory_space<vmem>>, %arg3: memref<128x128xf32, #tpu.memory_space<vmem>>, %arg4: memref<1x2x128xf32, #tpu.memory_space<vmem>>) attributes {dimension_semantics = [#tpu.dimension_semantics<parallel>], iteration_bounds = array<i64: 5>, scalar_prefetch = 0 : i64, scratch_operands = 0 : i64, tpu.core_type = #tpu.core_type<tc>, window_params = [{transform_indices = @transform_0, window_bounds = array<i64: 128, 1728>}, {pipeline_mode = #tpu.pipeline_mode<synchronous>, transform_indices = @transform_1, window_bounds = array<i64: 1728, 128>}, {transform_indices = @transform_2, window_bounds = array<i64: 128, 128>}, {transform_indices = @transform_3, window_bounds = array<i64: 1, 2, 128>}]} {
    %c0 = arith.constant 0 : index
    %c0_0 = arith.constant 0 : index
    %0 = vector.load %arg1[%c0, %c0_0] : memref<128x1728xbf16, #tpu.memory_space<vmem>>, vector<128x1728xbf16>
    %c0_1 = arith.constant 0 : index
    %c0_2 = arith.constant 0 : index
    %1 = vector.load %arg2[%c0_1, %c0_2] : memref<1728x128xbf16, #tpu.memory_space<vmem>>, vector<1728x128xbf16>
    %cst = arith.constant dense<0.000000e+00> : vector<128x128xf32>
    %2 = tpu.matmul %0, %1, %cst {dimension_numbers = #tpu.dot_dimension_numbers<[1], [0], [0], [1], [0, 0, 1, 1], [], []>} : vector<128x1728xbf16>, vector<1728x128xbf16>, vector<128x128xf32> -> vector<128x128xf32>
    %c0_3 = arith.constant 0 : index
    %c0_4 = arith.constant 0 : index
    %3 = vector.load %arg3[%c0_3, %c0_4] : memref<128x128xf32, #tpu.memory_space<vmem>>, vector<128x128xf32>
    tpu.vector_store %arg3[%c0_3, %c0_4], %2 {strides = array<i32>} : memref<128x128xf32, #tpu.memory_space<vmem>>, vector<128x128xf32>,
    %cst_5 = arith.constant dense<0.000000e+00> : vector<128xf32>
    %4 = vector.multi_reduction <add>, %2, %cst_5 [0] : vector<128x128xf32> to vector<128xf32>
    %5 = vector.shape_cast %4 : vector<128xf32> to vector<1x128xf32>
    %c0_6 = arith.constant 0 : index
    %c0_7 = arith.constant 0 : index
    %c0_8 = arith.constant 0 : index
    %6 = vector.load %arg4[%c0_6, %c0_7, %c0_8] : memref<1x2x128xf32, #tpu.memory_space<vmem>>, vector<1x1x128xf32>
    %7 = vector.shape_cast %6 : vector<1x1x128xf32> to vector<1x128xf32>
    %8 = vector.shape_cast %5 : vector<1x128xf32> to vector<1x1x128xf32>
    tpu.vector_store %arg4[%c0_6, %c0_7, %c0_8], %8 {strides = array<i32>} : memref<1x2x128xf32, #tpu.memory_space<vmem>>, vector<1x1x128xf32>,
    %9 = arith.mulf %2, %2 : vector<128x128xf32>
    %cst_9 = arith.constant dense<0.000000e+00> : vector<128xf32>
    %10 = vector.multi_reduction <add>, %9, %cst_9 [0] : vector<128x128xf32> to vector<128xf32>
    %11 = vector.shape_cast %10 : vector<128xf32> to vector<1x128xf32>
    %c0_10 = arith.constant 0 : index
    %c1 = arith.constant 1 : index
    %c0_11 = arith.constant 0 : index
    %12 = vector.load %arg4[%c0_10, %c1, %c0_11] : memref<1x2x128xf32, #tpu.memory_space<vmem>>, vector<1x1x128xf32>
    %13 = vector.shape_cast %12 : vector<1x1x128xf32> to vector<1x128xf32>
    %14 = vector.shape_cast %11 : vector<1x128xf32> to vector<1x1x128xf32>
    tpu.vector_store %arg4[%c0_10, %c1, %c0_11], %14 {strides = array<i32>} : memref<1x2x128xf32, #tpu.memory_space<vmem>>, vector<1x1x128xf32>,
    return
  }
  func.func @transform_0(%arg0: i32) -> (i32, i32) {
    %c0_i32 = arith.constant 0 : i32
    %c0_i32_0 = arith.constant 0 : i32
    return %arg0, %c0_i32 : i32, i32
  }
  func.func @transform_1(%arg0: i32) -> (i32, i32) {
    %c0_i32 = arith.constant 0 : i32
    %c0_i32_0 = arith.constant 0 : i32
    %c0_i32_1 = arith.constant 0 : i32
    return %c0_i32, %c0_i32_0 : i32, i32
  }
  func.func @transform_2(%arg0: i32) -> (i32, i32) {
    %c0_i32 = arith.constant 0 : i32
    %c0_i32_0 = arith.constant 0 : i32
    return %arg0, %c0_i32 : i32, i32
  }
  func.func @transform_3(%arg0: i32) -> (i32, i32, i32) {
    %c0_i32 = arith.constant 0 : i32
    %c0_i32_0 = arith.constant 0 : i32
    %c0_i32_1 = arith.constant 0 : i32
    return %arg0, %c0_i32, %c0_i32_0 : i32, i32, i32
  }
}

module attributes {stable_mosaic.version = 11 : i64} {
  func.func @bn_apply_kernel(%arg0: i32, %arg1: memref<128x128xf32, #tpu.memory_space<vmem>>, %arg2: memref<1x128xf32, #tpu.memory_space<vmem>>, %arg3: memref<1x128xf32, #tpu.memory_space<vmem>>, %arg4: memref<128x128xf32, #tpu.memory_space<vmem>>) attributes {dimension_semantics = [#tpu.dimension_semantics<parallel>], iteration_bounds = array<i64: 5>, scalar_prefetch = 0 : i64, scratch_operands = 0 : i64, tpu.core_type = #tpu.core_type<tc>, window_params = [{transform_indices = @transform_0, window_bounds = array<i64: 128, 128>}, {pipeline_mode = #tpu.pipeline_mode<synchronous>, transform_indices = @transform_1, window_bounds = array<i64: 1, 128>}, {pipeline_mode = #tpu.pipeline_mode<synchronous>, transform_indices = @transform_2, window_bounds = array<i64: 1, 128>}, {transform_indices = @transform_3, window_bounds = array<i64: 128, 128>}]} {
    %c0 = arith.constant 0 : index
    %c0_0 = arith.constant 0 : index
    %0 = vector.load %arg1[%c0, %c0_0] : memref<128x128xf32, #tpu.memory_space<vmem>>, vector<128x128xf32>
    %c0_1 = arith.constant 0 : index
    %c0_2 = arith.constant 0 : index
    %1 = vector.load %arg2[%c0_1, %c0_2] : memref<1x128xf32, #tpu.memory_space<vmem>>, vector<1x128xf32>
    %2 = vector.broadcast %1 : vector<1x128xf32> to vector<128x128xf32>
    %3 = arith.mulf %0, %2 : vector<128x128xf32>
    %c0_3 = arith.constant 0 : index
    %c0_4 = arith.constant 0 : index
    %4 = vector.load %arg3[%c0_3, %c0_4] : memref<1x128xf32, #tpu.memory_space<vmem>>, vector<1x128xf32>
    %5 = vector.broadcast %4 : vector<1x128xf32> to vector<128x128xf32>
    %6 = arith.addf %3, %5 : vector<128x128xf32>
    %c0_5 = arith.constant 0 : index
    %c0_6 = arith.constant 0 : index
    %7 = vector.load %arg4[%c0_5, %c0_6] : memref<128x128xf32, #tpu.memory_space<vmem>>, vector<128x128xf32>
    tpu.vector_store %arg4[%c0_5, %c0_6], %6 {strides = array<i32>} : memref<128x128xf32, #tpu.memory_space<vmem>>, vector<128x128xf32>,
    return
  }
  func.func @transform_0(%arg0: i32) -> (i32, i32) {
    %c0_i32 = arith.constant 0 : i32
    %c0_i32_0 = arith.constant 0 : i32
    return %arg0, %c0_i32 : i32, i32
  }
  func.func @transform_1(%arg0: i32) -> (i32, i32) {
    %c0_i32 = arith.constant 0 : i32
    %c0_i32_0 = arith.constant 0 : i32
    %c0_i32_1 = arith.constant 0 : i32
    return %c0_i32, %c0_i32_0 : i32, i32
  }
  func.func @transform_2(%arg0: i32) -> (i32, i32) {
    %c0_i32 = arith.constant 0 : i32
    %c0_i32_0 = arith.constant 0 : i32
    %c0_i32_1 = arith.constant 0 : i32
    return %c0_i32, %c0_i32_0 : i32, i32
  }
  func.func @transform_3(%arg0: i32) -> (i32, i32) {
    %c0_i32 = arith.constant 0 : i32
    %c0_i32_0 = arith.constant 0 : i32
    return %arg0, %c0_i32 : i32, i32
  }
}

</mosaic_0001>

<llo_original>
// kernel: prm_forward.3
$region0: #{prm_forward.3}
  #allocation0 [shape = 'u32[]', space=smem, size = 0x4, offset = 0x4, fixed_abs, tag = 'smem constant byte address 0x4 - core index']
  #allocation1 [shape = 'u32[144,128]{1,0:T(1,128)}', space=vmem, size = 0x12000, scoped, tag = 'internal scratch']
  %s0 = inlined_call_operand.vmem [shape: bf16[640,48], index: 0, kind: input, shape index: {}]
  %s1 = inlined_call_operand.vmem [shape: bf16[48,192], index: 1, kind: input, shape index: {}]
  %s2 = inlined_call_operand.vmem [shape: f32[1,192], index: 2, kind: input, shape index: {}]
  %s3 = inlined_call_operand.vmem [shape: bf16[640,192], index: 3, kind: output, shape index: {}]
  %s4 = sld [smem:[#allocation0]]
  $region45: #{prm_forward.3} parent=0
    _
  %s6 = ssub.s32 1, %s4
  %s7 = scalar_select 0, %s6, %s4
  loop: start=0, step=1, limit=7
  $region2: #{prm_forward.3} parent=0 // loop_pre_header
    _
  $region3: #{prm_forward.3} parent=0 // loop_header
    %s9 = sphi 0, %s13
    %p10 = scmp.ge.s32.totalorder %s9, 7
    %s19 = sphi 0, %s21
    %s22 = sphi 0, %s19
    %s23 = sphi 0, %s22
    %s39 = sphi 0, %s23
    %s43 = sphi 0, %s43
    %s45 = sphi 0, %s43
    %s46 = sphi 0, %s45
    %s60 = sphi 0, %s46
    %s64 = sphi 0, %s64
    %s66 = sphi 0, %s64
    %s67 = sphi 0, %s66
    %s81 = sphi 0, %s67
    %s87 = sphi 0, %s89
    %s90 = sphi 0, %s87
    %s91 = sphi 0, %s90
    %s107 = sphi 0, %s91
  $region4: #{prm_forward.3} parent=0 // loop_header_branch
    %12 = sbr.rel (%p10) target = $region8
  $region5: #{prm_forward.3} parent=0 // loop_body
    %s14 = ssub.s32 %s9, 1
    %s15 = ssub.s32 %s9, 2
    %s16 = sadd.s32 %s9, 1
    %s17 = ssub.s32 %s9, %s16
    %p18 = scmp.eq.s32.totalorder %s17, 0
    %s20 = sadd.s32 %s19, 1
    %s21 = scalar_select %p18, %s19, %s20
    %p24 = pneg %p18
    %p25 = scmp.eq.s32.totalorder %s9, 4
    %p26 = por %p24, %p25
    %p27 = scmp.ne.s32.totalorder %s19, %s22
    %p28 = scmp.eq.s32.totalorder %s9, 0
    %p29 = por %p27, %p28
    %p30 = scmp.ne.s32.totalorder %s19, %s22
    %p31 = scmp.eq.s32.totalorder %s14, 4
    %p32 = por %p30, %p31
    %p33 = scmp.ne.s32.totalorder %s22, %s23
    %p34 = scmp.eq.s32.totalorder %s14, 0
    %p35 = por %p33, %p34
    %p36 = scmp.ne.s32.totalorder %s22, %s23
    %p37 = scmp.eq.s32.totalorder %s15, 4
    %p38 = por %p36, %p37
    %p40 = scmp.ne.s32.totalorder %s23, %s39
    %p41 = scmp.eq.s32.totalorder %s15, 0
    %p42 = por %p40, %p41
    %s44 = sadd.s32 %s43, 1
    %p47 = scmp.eq.s32.totalorder %s9, 4
    %p48 = scmp.ne.s32.totalorder %s43, %s45
    %p49 = scmp.eq.s32.totalorder %s9, 0
    %p50 = por %p48, %p49
    %p51 = scmp.ne.s32.totalorder %s43, %s45
    %p52 = scmp.eq.s32.totalorder %s14, 4
    %p53 = por %p51, %p52
    %p54 = scmp.ne.s32.totalorder %s45, %s46
    %p55 = scmp.eq.s32.totalorder %s14, 0
    %p56 = por %p54, %p55
    %p57 = scmp.ne.s32.totalorder %s45, %s46
    %p58 = scmp.eq.s32.totalorder %s15, 4
    %p59 = por %p57, %p58
    %p61 = scmp.ne.s32.totalorder %s46, %s60
    %p62 = scmp.eq.s32.totalorder %s15, 0
    %p63 = por %p61, %p62
    %s65 = sadd.s32 %s64, 1
    %p68 = scmp.eq.s32.totalorder %s9, 4
    %p69 = scmp.ne.s32.totalorder %s64, %s66
    %p70 = scmp.eq.s32.totalorder %s9, 0
    %p71 = por %p69, %p70
    %p72 = scmp.ne.s32.totalorder %s64, %s66
    %p73 = scmp.eq.s32.totalorder %s14, 4
    %p74 = por %p72, %p73
    %p75 = scmp.ne.s32.totalorder %s66, %s67
    %p76 = scmp.eq.s32.totalorder %s14, 0
    %p77 = por %p75, %p76
    %p78 = scmp.ne.s32.totalorder %s66, %s67
    %p79 = scmp.eq.s32.totalorder %s15, 4
    %p80 = por %p78, %p79
    %p82 = scmp.ne.s32.totalorder %s67, %s81
    %p83 = scmp.eq.s32.totalorder %s15, 0
    %p84 = por %p82, %p83
    %s85 = ssub.s32 %s9, %s16
    %p86 = scmp.eq.s32.totalorder %s85, 0
    %s88 = sadd.s32 %s87, 1
    %s89 = scalar_select %p86, %s87, %s88
    %p92 = pneg %p86
    %p93 = scmp.eq.s32.totalorder %s9, 4
    %p94 = por %p92, %p93
    %p95 = scmp.ne.s32.totalorder %s87, %s90
    %p96 = scmp.eq.s32.totalorder %s9, 0
    %p97 = por %p95, %p96
    %p98 = scmp.ne.s32.totalorder %s87, %s90
    %p99 = scmp.eq.s32.totalorder %s14, 4
    %p100 = por %p98, %p99
    %p101 = scmp.ne.s32.totalorder %s90, %s91
    %p102 = scmp.eq.s32.totalorder %s14, 0
    %p103 = por %p101, %p102
    %p104 = scmp.ne.s32.totalorder %s90, %s91
    %p105 = scmp.eq.s32.totalorder %s15, 4
    %p106 = por %p104, %p105
    %p108 = scmp.ne.s32.totalorder %s91, %s107
    %p109 = scmp.eq.s32.totalorder %s15, 0
    %p110 = por %p108, %p109
    %p111 = scmp.le.s32.totalorder 1, %s9
    %p112 = scmp.lt.s32.totalorder %s9, 6
    %p113 = pnand %p111, %p112
    %p114 = pneg %p113
    // Predicated region
    $region9: #{prm_forward.3} parent=5 // pred_check
      _
    $region10: #{prm_forward.3} parent=5 // pred_check_branch
      %116 = sbr.rel (%p113) target = $region12
    $region11: #{prm_forward.3} parent=5 // pred_region
      %s117 = ssub.s32 %s9, 1
      // Predicated region
      $region13: #{prm_forward.3} parent=11 // pred_check
        %p118 = pneg %p56
      $region14: #{prm_forward.3} parent=11 // pred_check_branch
        %120 = sbr.rel (%p118) target = $region16
      $region15: #{prm_forward.3} parent=11 // pred_region
        _
      $region16: #{prm_forward.3} parent=11 // pred_fallthru
        _
      // Predicated region
      $region17: #{prm_forward.3} parent=11 // pred_check
        %p121 = pneg %p77
      $region18: #{prm_forward.3} parent=11 // pred_check_branch
        %123 = sbr.rel (%p121) target = $region20
      $region19: #{prm_forward.3} parent=11 // pred_region
        _
      $region20: #{prm_forward.3} parent=11 // pred_fallthru
        _
    $region12: #{prm_forward.3} parent=5 // pred_fallthru
      _
    %p124 = scmp.lt.s32.totalorder %s9, 5
    // Predicated region
    $region21: #{prm_forward.3} parent=5 // pred_check
      %p125 = pneg %p124
    $region22: #{prm_forward.3} parent=5 // pred_check_branch
      %127 = sbr.rel (%p125) target = $region24
    $region23: #{prm_forward.3} parent=5 // pred_region
      // Predicated region
      $region25: #{prm_forward.3} parent=23 // pred_check
        %p128 = pneg %p29
      $region26: #{prm_forward.3} parent=23 // pred_check_branch
        %130 = sbr.rel (%p128) target = $region28
      $region27: #{prm_forward.3} parent=23 // pred_region
        %s131 = smul.u32 16, %s9
        %p132 = scmp.lt.s32.totalorder %s131, 79
        %s133 = scalar_select %p132, %s131, 79
        %s134 = smul.addr %s133, 4
        %s135 = scalar_lea.vmem %s0, %s134
        %s136 = smul.u32 16, %s9
      $region28: #{prm_forward.3} parent=23 // pred_fallthru
        _
    $region24: #{prm_forward.3} parent=5 // pred_fallthru
      _
    %p137 = scmp.le.s32.totalorder 1, %s9
    %p138 = scmp.lt.s32.totalorder %s9, 6
    %p139 = pnand %p137, %p138
    %p140 = pneg %p139
    // Predicated region
    $region29: #{prm_forward.3} parent=5 // pred_check
      _
    $region30: #{prm_forward.3} parent=5 // pred_check_branch
      %142 = sbr.rel (%p139) target = $region32
    $region31: #{prm_forward.3} parent=5 // pred_region
      %s143 = ssub.s32 %s9, 1
      %s144 = smul.u32 16, %s14
      %p145 = scmp.lt.s32.totalorder %s144, 79
      %s146 = scalar_select %p145, %s144, 79
      %s147 = smul.addr %s146, 4
      %s148 = scalar_lea.vmem %s0, %s147
      %p149 = pneg %p35
      %p150 = pneg %p32
      %p151 = pneg %p56
      %p152 = pneg %p53
      %p153 = pneg %p77
      %p154 = pneg %p74
      %p155 = pneg %p103
      %p156 = pneg %p100
      %s157 = smul.u32 16, %s14
      %p158 = scmp.lt.s32.totalorder %s157, 79
      %s159 = scalar_select %p158, %s157, 79
      %s160 = smul.addr %s159, 2
      %s161 = smul.addr %s160, 4
      %s162 = scalar_lea.vmem %s3, %s161
      %s163 = smul.u32 16, %s14
      %p164 = scmp.lt.s32.totalorder %s163, 79
      %s165 = scalar_select %p164, %s163, 79
      %s166 = smul.addr %s165, 4
      %s167 = scalar_lea.vmem %s0, %s166
      %s168 = smul.u32 16, %s14
      %s169 = smul.u32 16, %s14
      %p170 = scmp.lt.s32.totalorder %s169, 79
      %s171 = scalar_select %p170, %s169, 79
      %s172 = smul.addr %s171, 2
      %s173 = smul.addr %s172, 4
      %s174 = scalar_lea.vmem %s3, %s173
      %s175 = smul.u32 16, %s14
      %v177 = vld [vmem:[%s167] sm:$0xf]
      %v178 = vld [vmem:[%s167 + $0x4] sm:$0xf]
      %v179 = vld [vmem:[%s167 + $0x8] sm:$0xf]
      %v180 = vld [vmem:[%s167 + $0xc] sm:$0xf]
      %v181 = vld [vmem:[%s167 + $0x10] sm:$0xf]
      %v182 = vld [vmem:[%s167 + $0x14] sm:$0xf]
      %v183 = vld [vmem:[%s167 + $0x18] sm:$0xf]
      %v184 = vld [vmem:[%s167 + $0x1c] sm:$0xf]
      %v185 = vld [vmem:[%s167 + $0x20] sm:$0xf]
      %v186 = vld [vmem:[%s167 + $0x24] sm:$0xf]
      %v187 = vld [vmem:[%s167 + $0x28] sm:$0xf]
      %v188 = vld [vmem:[%s167 + $0x2c] sm:$0xf]
      %v189 = vld [vmem:[%s167 + $0x30] sm:$0xf]
      %v190 = vld [vmem:[%s167 + $0x34] sm:$0xf]
      %v191 = vld [vmem:[%s167 + $0x38] sm:$0xf]
      %v192 = vld [vmem:[%s167 + $0x3c] sm:$0xf]
      %v193 = vld [vmem:[%s1] sm:$0xff]
      %v194 = vld [vmem:[%s1 + $0x8] sm:$0xff]
      %v195 = vld [vmem:[%s1 + $0x10] sm:$0xff]
      %v196 = vld [vmem:[%s1 + $0x18] sm:$0xff]
      %v197 = vld [vmem:[%s1 + $0x20] sm:$0xff]
      %v198 = vld [vmem:[%s1 + $0x28] sm:$0xff]
      %v199 = vld [vmem:[%s2] sm:$0x3]
      %v201 = vlaneseq
      %v202 = vshrl.u32 %v201, 7
      %v203 = vsub.s32 0, %v202
      %v204 = vrot.slane %v199, %v203
      %v205 = vlaneseq
      %v206 = vshrl.u32 %v205, 7
      %v207 = vsub.s32 1, %v206
      %v208 = vrot.slane %v199, %v207
      %v227 = vunpack.c.l.b16 %v177
      %v228 = vunpack.c.l.b16 %v178
      %v229 = vunpack.c.l.b16 %v179
      %v230 = vunpack.c.l.b16 %v180
      %v231 = vunpack.c.l.b16 %v181
      %v232 = vunpack.c.l.b16 %v182
      %v233 = vunpack.c.l.b16 %v183
      %v234 = vunpack.c.l.b16 %v184
      %v235 = vunpack.c.l.b16 %v185
      %v236 = vunpack.c.l.b16 %v186
      %v237 = vunpack.c.l.b16 %v187
      %v238 = vunpack.c.l.b16 %v188
      %v239 = vunpack.c.l.b16 %v189
      %v240 = vunpack.c.l.b16 %v190
      %v241 = vunpack.c.l.b16 %v191
      %v242 = vunpack.c.l.b16 %v192
      %v243 = vpack.c.b16 %v228, %v227
      %v244 = vpack.c.b16 %v230, %v229
      %v245 = vpack.c.b16 %v232, %v231
      %v246 = vpack.c.b16 %v234, %v233
      %v247 = vpack.c.b16 %v236, %v235
      %v248 = vpack.c.b16 %v238, %v237
      %v249 = vpack.c.b16 %v240, %v239
      %v250 = vpack.c.b16 %v242, %v241
      %v257 = vunpack.c.l.b16 %v193
      %v258 = vunpack.c.h.b16 %v193
      %v259 = vunpack.c.l.b16 %v194
      %v260 = vunpack.c.h.b16 %v194
      %v261 = vunpack.c.l.b16 %v195
      %v262 = vunpack.c.h.b16 %v195
      %v263 = vunpack.c.l.b16 %v196
      %v264 = vunpack.c.h.b16 %v196
      %v265 = vunpack.c.l.b16 %v197
      %v266 = vunpack.c.h.b16 %v197
      %v267 = vunpack.c.l.b16 %v198
      %v268 = vunpack.c.h.b16 %v198
      %v269 = vpack.c.b16 %v259, %v257
      %v270 = vpack.c.b16 %v260, %v258
      %v271 = vpack.c.b16 %v263, %v261
      %v272 = vpack.c.b16 %v264, %v262
      %v273 = vpack.c.b16 %v267, %v265
      %v274 = vpack.c.b16 %v268, %v266
      %vm281 = vcmask 392192
      %v283 = vsel %vm281, %v243, 0
      %v286 = vsel %vm281, %v244, 0
      %v289 = vsel %vm281, %v245, 0
      %v292 = vsel %vm281, %v246, 0
      %v295 = vsel %vm281, %v247, 0
      %v298 = vsel %vm281, %v248, 0
      %v301 = vsel %vm281, %v249, 0
      %v304 = vsel %vm281, %v250, 0
      %306 = vmatprep.subr.bf16.mxu0 %v270
      %307 = vmatpush1.bf16.msra.mxu0 %v269
      %308 = vmatprep.subr.bf16.mxu0 %v272
      %309 = vmatpush1.bf16.msra.mxu0 %v271
      %310 = vmatprep.subr.bf16.mxu0 %v274
      %311 = vmatpush1.bf16.msra.mxu0 %v273
      %312 = vmatprep.subr.bf16.mxu0 0
      %313 = vmatpush1.bf16.msra.mxu0 0
      %314 = vmatprep.subr.bf16.mxu0 0
      %315 = vmatpush1.bf16.msra.mxu0 0
      %316 = vmatprep.subr.bf16.mxu0 0
      %317 = vmatpush1.bf16.msra.mxu0 0
      %318 = vmatprep.subr.bf16.mxu0 0
      %319 = vmatpush1.bf16.msra.mxu0 0
      %320 = vmatprep.subr.bf16.mxu0 0
      %321 = vmatpush1.bf16.msra.mxu0 0
      %322 = vmatprep.subr.bf16.mxu0 0
      %323 = vmatpush1.bf16.msra.mxu0 0
      %324 = vmatprep.subr.bf16.mxu0 0
      %325 = vmatpush1.bf16.msra.mxu0 0
      %326 = vmatprep.subr.bf16.mxu0 0
      %327 = vmatpush1.bf16.msra.mxu0 0
      %328 = vmatprep.subr.bf16.mxu0 0
      %329 = vmatpush1.bf16.msra.mxu0 0
      %330 = vmatprep.subr.bf16.mxu0 0
      %331 = vmatpush1.bf16.msra.mxu0 0
      %332 = vmatprep.subr.bf16.mxu0 0
      %333 = vmatpush1.bf16.msra.mxu0 0
      %334 = vmatprep.subr.bf16.mxu0 0
      %335 = vmatpush1.bf16.msra.mxu0 0
      %336 = vmatprep.subr.bf16.mxu0 0
      %337 = vmatpush1.bf16.msra.mxu0 0
      %338 = vmatprep.mubr.bf16.mxu0 0
      %339 = vmatmul.mubr.bf16.gmra.mrb[0].mxu0 %v283
      %v340 = vpop.f32.mrb[0].mxu0
      %v341 = vadd.f32 %v204, %v340
      %v342 = vpop.f32.mrb[0].mxu0
      %v343 = vadd.f32 %v208, %v342
      %v344 = vpop.f32.mrb[0].mxu0
      %v345 = vadd.f32 %v204, %v344
      %v346 = vpop.f32.mrb[0].mxu0
      %v347 = vadd.f32 %v208, %v346
      %348 = vmatprep.mubr.bf16.mxu0 0
      %349 = vmatmul.mubr.bf16.gmra.mrb[0].mxu0 %v286
      %v350 = vpop.f32.mrb[0].mxu0
      %v351 = vadd.f32 %v204, %v350
      %v352 = vpop.f32.mrb[0].mxu0
      %v353 = vadd.f32 %v208, %v352
      %v354 = vpop.f32.mrb[0].mxu0
      %v355 = vadd.f32 %v204, %v354
      %v356 = vpop.f32.mrb[0].mxu0
      %v357 = vadd.f32 %v208, %v356
      %358 = vmatprep.mubr.bf16.mxu0 0
      %359 = vmatmul.mubr.bf16.gmra.mrb[0].mxu0 %v289
      %v360 = vpop.f32.mrb[0].mxu0
      %v361 = vadd.f32 %v204, %v360
      %v362 = vpop.f32.mrb[0].mxu0
      %v363 = vadd.f32 %v208, %v362
      %v364 = vpop.f32.mrb[0].mxu0
      %v365 = vadd.f32 %v204, %v364
      %v366 = vpop.f32.mrb[0].mxu0
      %v367 = vadd.f32 %v208, %v366
      %368 = vmatprep.mubr.bf16.mxu0 0
      %369 = vmatmul.mubr.bf16.gmra.mrb[0].mxu0 %v292
      %v370 = vpop.f32.mrb[0].mxu0
      %v371 = vadd.f32 %v204, %v370
      %v372 = vpop.f32.mrb[0].mxu0
      %v373 = vadd.f32 %v208, %v372
      %v374 = vpop.f32.mrb[0].mxu0
      %v375 = vadd.f32 %v204, %v374
      %v376 = vpop.f32.mrb[0].mxu0
      %v377 = vadd.f32 %v208, %v376
      %378 = vmatprep.mubr.bf16.mxu0 0
      %379 = vmatmul.mubr.bf16.gmra.mrb[0].mxu0 %v295
      %v380 = vpop.f32.mrb[0].mxu0
      %v381 = vadd.f32 %v204, %v380
      %v382 = vpop.f32.mrb[0].mxu0
      %v383 = vadd.f32 %v208, %v382
      %v384 = vpop.f32.mrb[0].mxu0
      %v385 = vadd.f32 %v204, %v384
      %v386 = vpop.f32.mrb[0].mxu0
      %v387 = vadd.f32 %v208, %v386
      %388 = vmatprep.mubr.bf16.mxu0 0
      %389 = vmatmul.mubr.bf16.gmra.mrb[0].mxu0 %v298
      %v390 = vpop.f32.mrb[0].mxu0
      %v391 = vadd.f32 %v204, %v390
      %v392 = vpop.f32.mrb[0].mxu0
      %v393 = vadd.f32 %v208, %v392
      %v394 = vpop.f32.mrb[0].mxu0
      %v395 = vadd.f32 %v204, %v394
      %v396 = vpop.f32.mrb[0].mxu0
      %v397 = vadd.f32 %v208, %v396
      %398 = vmatprep.mubr.bf16.mxu0 0
      %399 = vmatmul.mubr.bf16.gmra.mrb[0].mxu0 %v301
      %v400 = vpop.f32.mrb[0].mxu0
      %v401 = vadd.f32 %v204, %v400
      %v402 = vpop.f32.mrb[0].mxu0
      %v403 = vadd.f32 %v208, %v402
      %v404 = vpop.f32.mrb[0].mxu0
      %v405 = vadd.f32 %v204, %v404
      %v406 = vpop.f32.mrb[0].mxu0
      %v407 = vadd.f32 %v208, %v406
      %408 = vmatprep.mubr.bf16.mxu0 0
      %409 = vmatmul.mubr.bf16.gmra.mrb[0].mxu0 %v304
      %v410 = vpop.f32.mrb[0].mxu0
      %v411 = vadd.f32 %v204, %v410
      %v412 = vpop.f32.mrb[0].mxu0
      %v413 = vadd.f32 %v208, %v412
      %v414 = vpop.f32.mrb[0].mxu0
      %v415 = vadd.f32 %v204, %v414
      %v416 = vpop.f32.mrb[0].mxu0
      %v417 = vadd.f32 %v208, %v416
      %418 = vdwg.mxu0
      %v419 = vmul.f32 %v341, 0.5
      %v420 = vmul.f32 %v343, 0.5
      %v421 = vmul.f32 %v345, 0.5
      %v422 = vmul.f32 %v347, 0.5
      %v423 = vmul.f32 %v351, 0.5
      %v424 = vmul.f32 %v353, 0.5
      %v425 = vmul.f32 %v355, 0.5
      %v426 = vmul.f32 %v357, 0.5
      %v427 = vmul.f32 %v361, 0.5
      %v428 = vmul.f32 %v363, 0.5
      %v429 = vmul.f32 %v365, 0.5
      %v430 = vmul.f32 %v367, 0.5
      %v431 = vmul.f32 %v371, 0.5
      %v432 = vmul.f32 %v373, 0.5
      %v433 = vmul.f32 %v375, 0.5
      %v434 = vmul.f32 %v377, 0.5
      %v435 = vmul.f32 %v381, 0.5
      %v436 = vmul.f32 %v383, 0.5
      %v437 = vmul.f32 %v385, 0.5
      %v438 = vmul.f32 %v387, 0.5
      %v439 = vmul.f32 %v391, 0.5
      %v440 = vmul.f32 %v393, 0.5
      %v441 = vmul.f32 %v395, 0.5
      %v442 = vmul.f32 %v397, 0.5
      %v443 = vmul.f32 %v401, 0.5
      %v444 = vmul.f32 %v403, 0.5
      %v445 = vmul.f32 %v405, 0.5
      %v446 = vmul.f32 %v407, 0.5
      %v447 = vmul.f32 %v411, 0.5
      %v448 = vmul.f32 %v413, 0.5
      %v449 = vmul.f32 %v415, 0.5
      %v450 = vmul.f32 %v417, 0.5
      %v451 = vmul.f32 %v341, %v341
      %v452 = vmul.f32 %v343, %v343
      %v453 = vmul.f32 %v345, %v345
      %v454 = vmul.f32 %v347, %v347
      %v455 = vmul.f32 %v351, %v351
      %v456 = vmul.f32 %v353, %v353
      %v457 = vmul.f32 %v355, %v355
      %v458 = vmul.f32 %v357, %v357
      %v459 = vmul.f32 %v361, %v361
      %v460 = vmul.f32 %v363, %v363
      %v461 = vmul.f32 %v365, %v365
      %v462 = vmul.f32 %v367, %v367
      %v463 = vmul.f32 %v371, %v371
      %v464 = vmul.f32 %v373, %v373
      %v465 = vmul.f32 %v375, %v375
      %v466 = vmul.f32 %v377, %v377
      %v467 = vmul.f32 %v381, %v381
      %v468 = vmul.f32 %v383, %v383
      %v469 = vmul.f32 %v385, %v385
      %v470 = vmul.f32 %v387, %v387
      %v471 = vmul.f32 %v391, %v391
      %v472 = vmul.f32 %v393, %v393
      %v473 = vmul.f32 %v395, %v395
      %v474 = vmul.f32 %v397, %v397
      %v475 = vmul.f32 %v401, %v401
      %v476 = vmul.f32 %v403, %v403
      %v477 = vmul.f32 %v405, %v405
      %v478 = vmul.f32 %v407, %v407
      %v479 = vmul.f32 %v411, %v411
      %v480 = vmul.f32 %v413, %v413
      %v481 = vmul.f32 %v415, %v415
      %v482 = vmul.f32 %v417, %v417
      %v483 = vmul.f32 %v451, %v341
      %v484 = vmul.f32 %v452, %v343
      %v485 = vmul.f32 %v453, %v345
      %v486 = vmul.f32 %v454, %v347
      %v487 = vmul.f32 %v455, %v351
      %v488 = vmul.f32 %v456, %v353
      %v489 = vmul.f32 %v457, %v355
      %v490 = vmul.f32 %v458, %v357
      %v491 = vmul.f32 %v459, %v361
      %v492 = vmul.f32 %v460, %v363
      %v493 = vmul.f32 %v461, %v365
      %v494 = vmul.f32 %v462, %v367
      %v495 = vmul.f32 %v463, %v371
      %v496 = vmul.f32 %v464, %v373
      %v497 = vmul.f32 %v465, %v375
      %v498 = vmul.f32 %v466, %v377
      %v499 = vmul.f32 %v467, %v381
      %v500 = vmul.f32 %v468, %v383
      %v501 = vmul.f32 %v469, %v385
      %v502 = vmul.f32 %v470, %v387
      %v503 = vmul.f32 %v471, %v391
      %v504 = vmul.f32 %v472, %v393
      %v505 = vmul.f32 %v473, %v395
      %v506 = vmul.f32 %v474, %v397
      %v507 = vmul.f32 %v475, %v401
      %v508 = vmul.f32 %v476, %v403
      %v509 = vmul.f32 %v477, %v405
      %v510 = vmul.f32 %v478, %v407
      %v511 = vmul.f32 %v479, %v411
      %v512 = vmul.f32 %v480, %v413
      %v513 = vmul.f32 %v481, %v415
      %v514 = vmul.f32 %v482, %v417
      %v515 = vmul.f32 %v483, 0.044715
      %v516 = vmul.f32 %v484, 0.044715
      %v517 = vmul.f32 %v485, 0.044715
      %v518 = vmul.f32 %v486, 0.044715
      %v519 = vmul.f32 %v487, 0.044715
      %v520 = vmul.f32 %v488, 0.044715
      %v521 = vmul.f32 %v489, 0.044715
      %v522 = vmul.f32 %v490, 0.044715
      %v523 = vmul.f32 %v491, 0.044715
      %v524 = vmul.f32 %v492, 0.044715
      %v525 = vmul.f32 %v493, 0.044715
      %v526 = vmul.f32 %v494, 0.044715
      %v527 = vmul.f32 %v495, 0.044715
      %v528 = vmul.f32 %v496, 0.044715
      %v529 = vmul.f32 %v497, 0.044715
      %v530 = vmul.f32 %v498, 0.044715
      %v531 = vmul.f32 %v499, 0.044715
      %v532 = vmul.f32 %v500, 0.044715
      %v533 = vmul.f32 %v501, 0.044715
      %v534 = vmul.f32 %v502, 0.044715
      %v535 = vmul.f32 %v503, 0.044715
      %v536 = vmul.f32 %v504, 0.044715
      %v537 = vmul.f32 %v505, 0.044715
      %v538 = vmul.f32 %v506, 0.044715
      %v539 = vmul.f32 %v507, 0.044715
      %v540 = vmul.f32 %v508, 0.044715
      %v541 = vmul.f32 %v509, 0.044715
      %v542 = vmul.f32 %v510, 0.044715
      %v543 = vmul.f32 %v511, 0.044715
      %v544 = vmul.f32 %v512, 0.044715
      %v545 = vmul.f32 %v513, 0.044715
      %v546 = vmul.f32 %v514, 0.044715
      %v547 = vadd.f32 %v341, %v515
      %v548 = vadd.f32 %v343, %v516
      %v549 = vadd.f32 %v345, %v517
      %v550 = vadd.f32 %v347, %v518
      %v551 = vadd.f32 %v351, %v519
      %v552 = vadd.f32 %v353, %v520
      %v553 = vadd.f32 %v355, %v521
      %v554 = vadd.f32 %v357, %v522
      %v555 = vadd.f32 %v361, %v523
      %v556 = vadd.f32 %v363, %v524
      %v557 = vadd.f32 %v365, %v525
      %v558 = vadd.f32 %v367, %v526
      %v559 = vadd.f32 %v371, %v527
      %v560 = vadd.f32 %v373, %v528
      %v561 = vadd.f32 %v375, %v529
      %v562 = vadd.f32 %v377, %v530
      %v563 = vadd.f32 %v381, %v531
      %v564 = vadd.f32 %v383, %v532
      %v565 = vadd.f32 %v385, %v533
      %v566 = vadd.f32 %v387, %v534
      %v567 = vadd.f32 %v391, %v535
      %v568 = vadd.f32 %v393, %v536
      %v569 = vadd.f32 %v395, %v537
      %v570 = vadd.f32 %v397, %v538
      %v571 = vadd.f32 %v401, %v539
      %v572 = vadd.f32 %v403, %v540
      %v573 = vadd.f32 %v405, %v541
      %v574 = vadd.f32 %v407, %v542
      %v575 = vadd.f32 %v411, %v543
      %v576 = vadd.f32 %v413, %v544
      %v577 = vadd.f32 %v415, %v545
      %v578 = vadd.f32 %v417, %v546
      %v579 = vmul.f32 %v547, 0.7978846
      %v580 = vmul.f32 %v548, 0.7978846
      %v581 = vmul.f32 %v549, 0.7978846
      %v582 = vmul.f32 %v550, 0.7978846
      %v583 = vmul.f32 %v551, 0.7978846
      %v584 = vmul.f32 %v552, 0.7978846
      %v585 = vmul.f32 %v553, 0.7978846
      %v586 = vmul.f32 %v554, 0.7978846
      %v587 = vmul.f32 %v555, 0.7978846
      %v588 = vmul.f32 %v556, 0.7978846
      %v589 = vmul.f32 %v557, 0.7978846
      %v590 = vmul.f32 %v558, 0.7978846
      %v591 = vmul.f32 %v559, 0.7978846
      %v592 = vmul.f32 %v560, 0.7978846
      %v593 = vmul.f32 %v561, 0.7978846
      %v594 = vmul.f32 %v562, 0.7978846
      %v595 = vmul.f32 %v563, 0.7978846
      %v596 = vmul.f32 %v564, 0.7978846
      %v597 = vmul.f32 %v565, 0.7978846
      %v598 = vmul.f32 %v566, 0.7978846
      %v599 = vmul.f32 %v567, 0.7978846
      %v600 = vmul.f32 %v568, 0.7978846
      %v601 = vmul.f32 %v569, 0.7978846
      %v602 = vmul.f32 %v570, 0.7978846
      %v603 = vmul.f32 %v571, 0.7978846
      %v604 = vmul.f32 %v572, 0.7978846
      %v605 = vmul.f32 %v573, 0.7978846
      %v606 = vmul.f32 %v574, 0.7978846
      %v607 = vmul.f32 %v575, 0.7978846
      %v608 = vmul.f32 %v576, 0.7978846
      %v609 = vmul.f32 %v577, 0.7978846
      %v610 = vmul.f32 %v578, 0.7978846
      %v611 = vtanh.pop %v579
      %v612 = vtanh.pop %v580
      %v613 = vtanh.pop %v581
      %v614 = vtanh.pop %v582
      %v615 = vtanh.pop %v583
      %v616 = vtanh.pop %v584
      %v617 = vtanh.pop %v585
      %v618 = vtanh.pop %v586
      %v619 = vtanh.pop %v587
      %v620 = vtanh.pop %v588
      %v621 = vtanh.pop %v589
      %v622 = vtanh.pop %v590
      %v623 = vtanh.pop %v591
      %v624 = vtanh.pop %v592
      %v625 = vtanh.pop %v593
      %v626 = vtanh.pop %v594
      %v627 = vtanh.pop %v595
      %v628 = vtanh.pop %v596
      %v629 = vtanh.pop %v597
      %v630 = vtanh.pop %v598
      %v631 = vtanh.pop %v599
      %v632 = vtanh.pop %v600
      %v633 = vtanh.pop %v601
      %v634 = vtanh.pop %v602
      %v635 = vtanh.pop %v603
      %v636 = vtanh.pop %v604
      %v637 = vtanh.pop %v605
      %v638 = vtanh.pop %v606
      %v639 = vtanh.pop %v607
      %v640 = vtanh.pop %v608
      %v641 = vtanh.pop %v609
      %v642 = vtanh.pop %v610
      %v643 = vadd.f32 %v611, 1.0
      %v644 = vadd.f32 %v612, 1.0
      %v645 = vadd.f32 %v613, 1.0
      %v646 = vadd.f32 %v614, 1.0
      %v647 = vadd.f32 %v615, 1.0
      %v648 = vadd.f32 %v616, 1.0
      %v649 = vadd.f32 %v617, 1.0
      %v650 = vadd.f32 %v618, 1.0
      %v651 = vadd.f32 %v619, 1.0
      %v652 = vadd.f32 %v620, 1.0
      %v653 = vadd.f32 %v621, 1.0
      %v654 = vadd.f32 %v622, 1.0
      %v655 = vadd.f32 %v623, 1.0
      %v656 = vadd.f32 %v624, 1.0
      %v657 = vadd.f32 %v625, 1.0
      %v658 = vadd.f32 %v626, 1.0
      %v659 = vadd.f32 %v627, 1.0
      %v660 = vadd.f32 %v628, 1.0
      %v661 = vadd.f32 %v629, 1.0
      %v662 = vadd.f32 %v630, 1.0
      %v663 = vadd.f32 %v631, 1.0
      %v664 = vadd.f32 %v632, 1.0
      %v665 = vadd.f32 %v633, 1.0
      %v666 = vadd.f32 %v634, 1.0
      %v667 = vadd.f32 %v635, 1.0
      %v668 = vadd.f32 %v636, 1.0
      %v669 = vadd.f32 %v637, 1.0
      %v670 = vadd.f32 %v638, 1.0
      %v671 = vadd.f32 %v639, 1.0
      %v672 = vadd.f32 %v640, 1.0
      %v673 = vadd.f32 %v641, 1.0
      %v674 = vadd.f32 %v642, 1.0
      %v675 = vmul.f32 %v419, %v643
      %v676 = vmul.f32 %v420, %v644
      %v677 = vmul.f32 %v421, %v645
      %v678 = vmul.f32 %v422, %v646
      %v679 = vmul.f32 %v423, %v647
      %v680 = vmul.f32 %v424, %v648
      %v681 = vmul.f32 %v425, %v649
      %v682 = vmul.f32 %v426, %v650
      %v683 = vmul.f32 %v427, %v651
      %v684 = vmul.f32 %v428, %v652
      %v685 = vmul.f32 %v429, %v653
      %v686 = vmul.f32 %v430, %v654
      %v687 = vmul.f32 %v431, %v655
      %v688 = vmul.f32 %v432, %v656
      %v689 = vmul.f32 %v433, %v657
      %v690 = vmul.f32 %v434, %v658
      %v691 = vmul.f32 %v435, %v659
      %v692 = vmul.f32 %v436, %v660
      %v693 = vmul.f32 %v437, %v661
      %v694 = vmul.f32 %v438, %v662
      %v695 = vmul.f32 %v439, %v663
      %v696 = vmul.f32 %v440, %v664
      %v697 = vmul.f32 %v441, %v665
      %v698 = vmul.f32 %v442, %v666
      %v699 = vmul.f32 %v443, %v667
      %v700 = vmul.f32 %v444, %v668
      %v701 = vmul.f32 %v445, %v669
      %v702 = vmul.f32 %v446, %v670
      %v703 = vmul.f32 %v447, %v671
      %v704 = vmul.f32 %v448, %v672
      %v705 = vmul.f32 %v449, %v673
      %v706 = vmul.f32 %v450, %v674
      %v707 = vpack.c.bf16 %v677, %v675
      %v708 = vpack.c.bf16 %v678, %v676
      %v709 = vpack.c.bf16 %v681, %v679
      %v710 = vpack.c.bf16 %v682, %v680
      %v711 = vpack.c.bf16 %v685, %v683
      %v712 = vpack.c.bf16 %v686, %v684
      %v713 = vpack.c.bf16 %v689, %v687
      %v714 = vpack.c.bf16 %v690, %v688
      %v715 = vpack.c.bf16 %v693, %v691
      %v716 = vpack.c.bf16 %v694, %v692
      %v717 = vpack.c.bf16 %v697, %v695
      %v718 = vpack.c.bf16 %v698, %v696
      %v719 = vpack.c.bf16 %v701, %v699
      %v720 = vpack.c.bf16 %v702, %v700
      %v721 = vpack.c.bf16 %v705, %v703
      %v722 = vpack.c.bf16 %v706, %v704
      %v739 = vunpack.c.l.b16 %v707
      %v740 = vunpack.c.l.b16 %v708
      %v741 = vunpack.c.h.b16 %v707
      %v742 = vunpack.c.h.b16 %v708
      %v743 = vunpack.c.l.b16 %v709
      %v744 = vunpack.c.l.b16 %v710
      %v745 = vunpack.c.h.b16 %v709
      %v746 = vunpack.c.h.b16 %v710
      %v747 = vunpack.c.l.b16 %v711
      %v748 = vunpack.c.l.b16 %v712
      %v749 = vunpack.c.h.b16 %v711
      %v750 = vunpack.c.h.b16 %v712
      %v751 = vunpack.c.l.b16 %v713
      %v752 = vunpack.c.l.b16 %v714
      %v753 = vunpack.c.h.b16 %v713
      %v754 = vunpack.c.h.b16 %v714
      %v755 = vunpack.c.l.b16 %v715
      %v756 = vunpack.c.l.b16 %v716
      %v757 = vunpack.c.h.b16 %v715
      %v758 = vunpack.c.h.b16 %v716
      %v759 = vunpack.c.l.b16 %v717
      %v760 = vunpack.c.l.b16 %v718
      %v761 = vunpack.c.h.b16 %v717
      %v762 = vunpack.c.h.b16 %v718
      %v763 = vunpack.c.l.b16 %v719
      %v764 = vunpack.c.l.b16 %v720
      %v765 = vunpack.c.h.b16 %v719
      %v766 = vunpack.c.h.b16 %v720
      %v767 = vunpack.c.l.b16 %v721
      %v768 = vunpack.c.l.b16 %v722
      %v769 = vunpack.c.h.b16 %v721
      %v770 = vunpack.c.h.b16 %v722
      %v771 = vpack.c.b16 %v740, %v739
      %v772 = vpack.c.b16 %v742, %v741
      %v773 = vpack.c.b16 %v744, %v743
      %v774 = vpack.c.b16 %v746, %v745
      %v775 = vpack.c.b16 %v748, %v747
      %v776 = vpack.c.b16 %v750, %v749
      %v777 = vpack.c.b16 %v752, %v751
      %v778 = vpack.c.b16 %v754, %v753
      %v779 = vpack.c.b16 %v756, %v755
      %v780 = vpack.c.b16 %v758, %v757
      %v781 = vpack.c.b16 %v760, %v759
      %v782 = vpack.c.b16 %v762, %v761
      %v783 = vpack.c.b16 %v764, %v763
      %v784 = vpack.c.b16 %v766, %v765
      %v785 = vpack.c.b16 %v768, %v767
      %v786 = vpack.c.b16 %v770, %v769
      %vm803 = vcmask 1043456
      %vm804 = vcmask 523268
      %vm805 = vmor %vm804, %vm803
      %806 = vst.msk [vmem:[%s174] sm:$0xff] %vm805, %v771
      %807 = vst.msk [vmem:[%s174 + $0x8] sm:$0xff] %vm805, %v772
      %808 = vst.msk [vmem:[%s174 + $0x10] sm:$0xff] %vm805, %v773
      %809 = vst.msk [vmem:[%s174 + $0x18] sm:$0xff] %vm805, %v774
      %810 = vst.msk [vmem:[%s174 + $0x20] sm:$0xff] %vm805, %v775
      %811 = vst.msk [vmem:[%s174 + $0x28] sm:$0xff] %vm805, %v776
      %812 = vst.msk [vmem:[%s174 + $0x30] sm:$0xff] %vm805, %v777
      %813 = vst.msk [vmem:[%s174 + $0x38] sm:$0xff] %vm805, %v778
      %814 = vst.msk [vmem:[%s174 + $0x40] sm:$0xff] %vm805, %v779
      %815 = vst.msk [vmem:[%s174 + $0x48] sm:$0xff] %vm805, %v780
      %816 = vst.msk [vmem:[%s174 + $0x50] sm:$0xff] %vm805, %v781
      %817 = vst.msk [vmem:[%s174 + $0x58] sm:$0xff] %vm805, %v782
      %818 = vst.msk [vmem:[%s174 + $0x60] sm:$0xff] %vm805, %v783
      %819 = vst.msk [vmem:[%s174 + $0x68] sm:$0xff] %vm805, %v784
      %820 = vst.msk [vmem:[%s174 + $0x70] sm:$0xff] %vm805, %v785
      %821 = vst.msk [vmem:[%s174 + $0x78] sm:$0xff] %vm805, %v786
      %s822 = smul.u32 16, %s14
      %p823 = scmp.lt.s32.totalorder %s822, 79
      %s824 = scalar_select %p823, %s822, 79
      %s825 = smul.addr %s824, 2
      %s826 = smul.addr %s825, 4
      %s827 = scalar_lea.vmem %s3, %s826
      // Predicated region
      $region33: #{prm_forward.3} parent=31 // pred_check
        %p828 = pneg %p100
      $region34: #{prm_forward.3} parent=31 // pred_check_branch
        %830 = sbr.rel (%p828) target = $region36
      $region35: #{prm_forward.3} parent=31 // pred_region
        %s831 = smul.u32 16, %s14
      $region36: #{prm_forward.3} parent=31 // pred_fallthru
        _
    $region32: #{prm_forward.3} parent=5 // pred_fallthru
      _
    %p832 = scmp.le.s32.totalorder 2, %s9
    // Predicated region
    $region37: #{prm_forward.3} parent=5 // pred_check
      %p833 = pneg %p832
    $region38: #{prm_forward.3} parent=5 // pred_check_branch
      %835 = sbr.rel (%p833) target = $region40
    $region39: #{prm_forward.3} parent=5 // pred_region
      %s836 = ssub.s32 %s9, 2
      // Predicated region
      $region41: #{prm_forward.3} parent=39 // pred_check
        %p837 = pneg %p106
      $region42: #{prm_forward.3} parent=39 // pred_check_branch
        %839 = sbr.rel (%p837) target = $region44
      $region43: #{prm_forward.3} parent=39 // pred_region
        %s840 = smul.u32 16, %s15
        %p841 = scmp.lt.s32.totalorder %s840, 79
        %s842 = scalar_select %p841, %s840, 79
        %s843 = smul.addr %s842, 2
        %s844 = smul.addr %s843, 4
        %s845 = scalar_lea.vmem %s3, %s844
      $region44: #{prm_forward.3} parent=39 // pred_fallthru
        _
    $region40: #{prm_forward.3} parent=5 // pred_fallthru
      _
  $region6: #{prm_forward.3} parent=0 // loop_footer
    %s13 = sadd.s32 1, %s9
  $region7: #{prm_forward.3} parent=0 // loop_footer_branch
    %8 = sbr.rel target = $region3
  $region8: #{prm_forward.3} parent=0 // loop_exit
    _

// kernel: prm_forward.4
$region0: #{prm_forward.4}
  #allocation0 [shape = 'u32[]', space=smem, size = 0x4, offset = 0x4, fixed_abs, tag = 'smem constant byte address 0x4 - core index']
  #allocation1 [shape = 'u32[144,128]{1,0:T(1,128)}', space=vmem, size = 0x12000, scoped, tag = 'internal scratch']
  %s0 = inlined_call_operand.vmem [shape: bf16[640,1728], index: 0, kind: input, shape index: {}]
  %s1 = inlined_call_operand.vmem [shape: bf16[1728,128], index: 1, kind: input, shape index: {}]
  %s2 = inlined_call_operand.vmem [shape: f32[640,128], index: 2, kind: output, shape index: {0}]
  %s3 = inlined_call_operand.vmem [shape: f32[5,2,128], index: 3, kind: output, shape index: {1}]
  %4 = xla_tuple %s2, %s3
  %s5 = sld [smem:[#allocation0]]
  $region49: #{prm_forward.4} parent=0
    _
  %s7 = ssub.s32 1, %s5
  %s8 = scalar_select 0, %s7, %s5
  loop: start=0, step=1, limit=7
  $region2: #{prm_forward.4} parent=0 // loop_pre_header
    _
  $region3: #{prm_forward.4} parent=0 // loop_header
    %s10 = sphi 0, %s14
    %p11 = scmp.ge.s32.totalorder %s10, 7
    %s20 = sphi 0, %s22
    %s23 = sphi 0, %s20
    %s24 = sphi 0, %s23
    %s40 = sphi 0, %s24
    %s44 = sphi 0, %s44
    %s46 = sphi 0, %s44
    %s47 = sphi 0, %s46
    %s61 = sphi 0, %s47
    %s67 = sphi 0, %s69
    %s70 = sphi 0, %s67
    %s71 = sphi 0, %s70
    %s87 = sphi 0, %s71
    %s93 = sphi 0, %s95
    %s96 = sphi 0, %s93
    %s97 = sphi 0, %s96
    %s113 = sphi 0, %s97
  $region4: #{prm_forward.4} parent=0 // loop_header_branch
    %13 = sbr.rel (%p11) target = $region8
  $region5: #{prm_forward.4} parent=0 // loop_body
    %s15 = ssub.s32 %s10, 1
    %s16 = ssub.s32 %s10, 2
    %s17 = sadd.s32 %s10, 1
    %s18 = ssub.s32 %s10, %s17
    %p19 = scmp.eq.s32.totalorder %s18, 0
    %s21 = sadd.s32 %s20, 1
    %s22 = scalar_select %p19, %s20, %s21
    %p25 = pneg %p19
    %p26 = scmp.eq.s32.totalorder %s10, 4
    %p27 = por %p25, %p26
    %p28 = scmp.ne.s32.totalorder %s20, %s23
    %p29 = scmp.eq.s32.totalorder %s10, 0
    %p30 = por %p28, %p29
    %p31 = scmp.ne.s32.totalorder %s20, %s23
    %p32 = scmp.eq.s32.totalorder %s15, 4
    %p33 = por %p31, %p32
    %p34 = scmp.ne.s32.totalorder %s23, %s24
    %p35 = scmp.eq.s32.totalorder %s15, 0
    %p36 = por %p34, %p35
    %p37 = scmp.ne.s32.totalorder %s23, %s24
    %p38 = scmp.eq.s32.totalorder %s16, 4
    %p39 = por %p37, %p38
    %p41 = scmp.ne.s32.totalorder %s24, %s40
    %p42 = scmp.eq.s32.totalorder %s16, 0
    %p43 = por %p41, %p42
    %s45 = sadd.s32 %s44, 1
    %p48 = scmp.eq.s32.totalorder %s10, 4
    %p49 = scmp.ne.s32.totalorder %s44, %s46
    %p50 = scmp.eq.s32.totalorder %s10, 0
    %p51 = por %p49, %p50
    %p52 = scmp.ne.s32.totalorder %s44, %s46
    %p53 = scmp.eq.s32.totalorder %s15, 4
    %p54 = por %p52, %p53
    %p55 = scmp.ne.s32.totalorder %s46, %s47
    %p56 = scmp.eq.s32.totalorder %s15, 0
    %p57 = por %p55, %p56
    %p58 = scmp.ne.s32.totalorder %s46, %s47
    %p59 = scmp.eq.s32.totalorder %s16, 4
    %p60 = por %p58, %p59
    %p62 = scmp.ne.s32.totalorder %s47, %s61
    %p63 = scmp.eq.s32.totalorder %s16, 0
    %p64 = por %p62, %p63
    %s65 = ssub.s32 %s10, %s17
    %p66 = scmp.eq.s32.totalorder %s65, 0
    %s68 = sadd.s32 %s67, 1
    %s69 = scalar_select %p66, %s67, %s68
    %p72 = pneg %p66
    %p73 = scmp.eq.s32.totalorder %s10, 4
    %p74 = por %p72, %p73
    %p75 = scmp.ne.s32.totalorder %s67, %s70
    %p76 = scmp.eq.s32.totalorder %s10, 0
    %p77 = por %p75, %p76
    %p78 = scmp.ne.s32.totalorder %s67, %s70
    %p79 = scmp.eq.s32.totalorder %s15, 4
    %p80 = por %p78, %p79
    %p81 = scmp.ne.s32.totalorder %s70, %s71
    %p82 = scmp.eq.s32.totalorder %s15, 0
    %p83 = por %p81, %p82
    %p84 = scmp.ne.s32.totalorder %s70, %s71
    %p85 = scmp.eq.s32.totalorder %s16, 4
    %p86 = por %p84, %p85
    %p88 = scmp.ne.s32.totalorder %s71, %s87
    %p89 = scmp.eq.s32.totalorder %s16, 0
    %p90 = por %p88, %p89
    %s91 = ssub.s32 %s10, %s17
    %p92 = scmp.eq.s32.totalorder %s91, 0
    %s94 = sadd.s32 %s93, 1
    %s95 = scalar_select %p92, %s93, %s94
    %p98 = pneg %p92
    %p99 = scmp.eq.s32.totalorder %s10, 4
    %p100 = por %p98, %p99
    %p101 = scmp.ne.s32.totalorder %s93, %s96
    %p102 = scmp.eq.s32.totalorder %s10, 0
    %p103 = por %p101, %p102
    %p104 = scmp.ne.s32.totalorder %s93, %s96
    %p105 = scmp.eq.s32.totalorder %s15, 4
    %p106 = por %p104, %p105
    %p107 = scmp.ne.s32.totalorder %s96, %s97
    %p108 = scmp.eq.s32.totalorder %s15, 0
    %p109 = por %p107, %p108
    %p110 = scmp.ne.s32.totalorder %s96, %s97
    %p111 = scmp.eq.s32.totalorder %s16, 4
    %p112 = por %p110, %p111
    %p114 = scmp.ne.s32.totalorder %s97, %s113
    %p115 = scmp.eq.s32.totalorder %s16, 0
    %p116 = por %p114, %p115
    %p117 = scmp.le.s32.totalorder 1, %s10
    %p118 = scmp.lt.s32.totalorder %s10, 6
    %p119 = pnand %p117, %p118
    %p120 = pneg %p119
    // Predicated region
    $region9: #{prm_forward.4} parent=5 // pred_check
      _
    $region10: #{prm_forward.4} parent=5 // pred_check_branch
      %122 = sbr.rel (%p119) target = $region12
    $region11: #{prm_forward.4} parent=5 // pred_region
      %s123 = ssub.s32 %s10, 1
      // Predicated region
      $region13: #{prm_forward.4} parent=11 // pred_check
        %p124 = pneg %p57
      $region14: #{prm_forward.4} parent=11 // pred_check_branch
        %126 = sbr.rel (%p124) target = $region16
      $region15: #{prm_forward.4} parent=11 // pred_region
        _
      $region16: #{prm_forward.4} parent=11 // pred_fallthru
        _
    $region12: #{prm_forward.4} parent=5 // pred_fallthru
      _
    %p127 = scmp.lt.s32.totalorder %s10, 5
    // Predicated region
    $region17: #{prm_forward.4} parent=5 // pred_check
      %p128 = pneg %p127
    $region18: #{prm_forward.4} parent=5 // pred_check_branch
      %130 = sbr.rel (%p128) target = $region20
    $region19: #{prm_forward.4} parent=5 // pred_region
      // Predicated region
      $region21: #{prm_forward.4} parent=19 // pred_check
        %p131 = pneg %p30
      $region22: #{prm_forward.4} parent=19 // pred_check_branch
        %133 = sbr.rel (%p131) target = $region24
      $region23: #{prm_forward.4} parent=19 // pred_region
        %s134 = smul.u32 16, %s10
        %p135 = scmp.lt.s32.totalorder %s134, 79
        %s136 = scalar_select %p135, %s134, 79
        %s137 = smul.addr %s136, 14
        %s138 = smul.addr %s137, 4
        %s139 = scalar_lea.vmem %s0, %s138
        %s140 = smul.u32 16, %s10
      $region24: #{prm_forward.4} parent=19 // pred_fallthru
        _
    $region20: #{prm_forward.4} parent=5 // pred_fallthru
      _
    %p141 = scmp.le.s32.totalorder 1, %s10
    %p142 = scmp.lt.s32.totalorder %s10, 6
    %p143 = pnand %p141, %p142
    %p144 = pneg %p143
    // Predicated region
    $region25: #{prm_forward.4} parent=5 // pred_check
      _
    $region26: #{prm_forward.4} parent=5 // pred_check_branch
      %146 = sbr.rel (%p143) target = $region28
    $region27: #{prm_forward.4} parent=5 // pred_region
      %s147 = ssub.s32 %s10, 1
      %s148 = smul.u32 16, %s15
      %p149 = scmp.lt.s32.totalorder %s148, 79
      %s150 = scalar_select %p149, %s148, 79
      %s151 = smul.addr %s150, 14
      %s152 = smul.addr %s151, 4
      %s153 = scalar_lea.vmem %s0, %s152
      %p154 = pneg %p36
      %p155 = pneg %p33
      %p156 = pneg %p57
      %p157 = pneg %p54
      %p158 = pneg %p83
      %p159 = pneg %p80
      %s160 = smul.u32 16, %s15
      %p161 = scmp.lt.s32.totalorder %s160, 79
      %s162 = scalar_select %p161, %s160, 79
      %s163 = smul.addr %s162, 8
      %s164 = scalar_lea.vmem %s2, %s163
      %p165 = pneg %p109
      %p166 = pneg %p106
      %p167 = scmp.lt.s32.totalorder %s15, 4
      %s168 = scalar_select %p167, %s15, 4
      %s169 = smul.addr %s168, 2
      %s170 = scalar_lea.vmem %s3, %s169
      %s171 = smul.u32 16, %s15
      %p172 = scmp.lt.s32.totalorder %s171, 79
      %s173 = scalar_select %p172, %s171, 79
      %s174 = smul.addr %s173, 14
      %s175 = smul.addr %s174, 4
      %s176 = scalar_lea.vmem %s0, %s175
      %s177 = smul.u32 16, %s15
      %s178 = smul.u32 16, %s15
      %p179 = scmp.lt.s32.totalorder %s178, 79
      %s180 = scalar_select %p179, %s178, 79
      %s181 = smul.addr %s180, 8
      %s182 = scalar_lea.vmem %s2, %s181
      %s183 = smul.u32 16, %s15
      %p184 = scmp.lt.s32.totalorder %s15, 4
      %s185 = scalar_select %p184, %s15, 4
      %s186 = smul.addr %s185, 2
      %s187 = scalar_lea.vmem %s3, %s186
      %v189 = vld [vmem:[%s176] sm:$0xff]
      %v190 = vld [vmem:[%s176 + $0x8] sm:$0xff]
      %v191 = vld [vmem:[%s176 + $0x10] sm:$0xff]
      %v192 = vld [vmem:[%s176 + $0x18] sm:$0xff]
      %v193 = vld [vmem:[%s176 + $0x20] sm:$0xff]
      %v194 = vld [vmem:[%s176 + $0x28] sm:$0xff]
      %v195 = vld [vmem:[%s176 + $0x30] sm:$0xff]
      %v196 = vld [vmem:[%s176 + $0x38] sm:$0xff]
      %v197 = vld [vmem:[%s176 + $0x40] sm:$0xff]
      %v198 = vld [vmem:[%s176 + $0x48] sm:$0xff]
      %v199 = vld [vmem:[%s176 + $0x50] sm:$0xff]
      %v200 = vld [vmem:[%s176 + $0x58] sm:$0xff]
      %v201 = vld [vmem:[%s176 + $0x60] sm:$0xff]
      %v202 = vld [vmem:[%s176 + $0x68] sm:$0xff]
      %v203 = vld [vmem:[%s176 + $0x70] sm:$0xff]
      %v204 = vld [vmem:[%s176 + $0x78] sm:$0xff]
      %v205 = vld [vmem:[%s176 + $0x80] sm:$0xff]
      %v206 = vld [vmem:[%s176 + $0x88] sm:$0xff]
      %v207 = vld [vmem:[%s176 + $0x90] sm:$0xff]
      %v208 = vld [vmem:[%s176 + $0x98] sm:$0xff]
      %v209 = vld [vmem:[%s176 + $0xa0] sm:$0xff]
      %v210 = vld [vmem:[%s176 + $0xa8] sm:$0xff]
      %v211 = vld [vmem:[%s176 + $0xb0] sm:$0xff]
      %v212 = vld [vmem:[%s176 + $0xb8] sm:$0xff]
      %v213 = vld [vmem:[%s176 + $0xc0] sm:$0xff]
      %v214 = vld [vmem:[%s176 + $0xc8] sm:$0xff]
      %v215 = vld [vmem:[%s176 + $0xd0] sm:$0xff]
      %v216 = vld [vmem:[%s176 + $0xd8] sm:$0xff]
      %v217 = vld [vmem:[%s176 + $0xe0] sm:$0xff]
      %v218 = vld [vmem:[%s176 + $0xe8] sm:$0xff]
      %v219 = vld [vmem:[%s176 + $0xf0] sm:$0xff]
      %v220 = vld [vmem:[%s176 + $0xf8] sm:$0xff]
      %v221 = vld [vmem:[%s176 + $0x100] sm:$0xff]
      %v222 = vld [vmem:[%s176 + $0x108] sm:$0xff]
      %v223 = vld [vmem:[%s176 + $0x110] sm:$0xff]
      %v224 = vld [vmem:[%s176 + $0x118] sm:$0xff]
      %v225 = vld [vmem:[%s176 + $0x120] sm:$0xff]
      %v226 = vld [vmem:[%s176 + $0x128] sm:$0xff]
      %v227 = vld [vmem:[%s176 + $0x130] sm:$0xff]
      %v228 = vld [vmem:[%s176 + $0x138] sm:$0xff]
      %v229 = vld [vmem:[%s176 + $0x140] sm:$0xff]
      %v230 = vld [vmem:[%s176 + $0x148] sm:$0xff]
      %v231 = vld [vmem:[%s176 + $0x150] sm:$0xff]
      %v232 = vld [vmem:[%s176 + $0x158] sm:$0xff]
      %v233 = vld [vmem:[%s176 + $0x160] sm:$0xff]
      %v234 = vld [vmem:[%s176 + $0x168] sm:$0xff]
      %v235 = vld [vmem:[%s176 + $0x170] sm:$0xff]
      %v236 = vld [vmem:[%s176 + $0x178] sm:$0xff]
      %v237 = vld [vmem:[%s176 + $0x180] sm:$0xff]
      %v238 = vld [vmem:[%s176 + $0x188] sm:$0xff]
      %v239 = vld [vmem:[%s176 + $0x190] sm:$0xff]
      %v240 = vld [vmem:[%s176 + $0x198] sm:$0xff]
      %v241 = vld [vmem:[%s176 + $0x1a0] sm:$0xff]
      %v242 = vld [vmem:[%s176 + $0x1a8] sm:$0xff]
      %v243 = vld [vmem:[%s176 + $0x1b0] sm:$0xff]
      %v244 = vld [vmem:[%s176 + $0x1b8] sm:$0xff]
      %v245 = vld [vmem:[%s176 + $0x1c0] sm:$0xff]
      %v246 = vld [vmem:[%s176 + $0x1c8] sm:$0xff]
      %v247 = vld [vmem:[%s176 + $0x1d0] sm:$0xff]
      %v248 = vld [vmem:[%s176 + $0x1d8] sm:$0xff]
      %v249 = vld [vmem:[%s176 + $0x1e0] sm:$0xff]
      %v250 = vld [vmem:[%s176 + $0x1e8] sm:$0xff]
      %v251 = vld [vmem:[%s176 + $0x1f0] sm:$0xff]
      %v252 = vld [vmem:[%s176 + $0x1f8] sm:$0xff]
      %v253 = vld [vmem:[%s176 + $0x200] sm:$0xff]
      %v254 = vld [vmem:[%s176 + $0x208] sm:$0xff]
      %v255 = vld [vmem:[%s176 + $0x210] sm:$0xff]
      %v256 = vld [vmem:[%s176 + $0x218] sm:$0xff]
      %v257 = vld [vmem:[%s176 + $0x220] sm:$0xff]
      %v258 = vld [vmem:[%s176 + $0x228] sm:$0xff]
      %v259 = vld [vmem:[%s176 + $0x230] sm:$0xff]
      %v260 = vld [vmem:[%s176 + $0x238] sm:$0xff]
      %v261 = vld [vmem:[%s176 + $0x240] sm:$0xff]
      %v262 = vld [vmem:[%s176 + $0x248] sm:$0xff]
      %v263 = vld [vmem:[%s176 + $0x250] sm:$0xff]
      %v264 = vld [vmem:[%s176 + $0x258] sm:$0xff]
      %v265 = vld [vmem:[%s176 + $0x260] sm:$0xff]
      %v266 = vld [vmem:[%s176 + $0x268] sm:$0xff]
      %v267 = vld [vmem:[%s176 + $0x270] sm:$0xff]
      %v268 = vld [vmem:[%s176 + $0x278] sm:$0xff]
      %v269 = vld [vmem:[%s176 + $0x280] sm:$0xff]
      %v270 = vld [vmem:[%s176 + $0x288] sm:$0xff]
      %v271 = vld [vmem:[%s176 + $0x290] sm:$0xff]
      %v272 = vld [vmem:[%s176 + $0x298] sm:$0xff]
      %v273 = vld [vmem:[%s176 + $0x2a0] sm:$0xff]
      %v274 = vld [vmem:[%s176 + $0x2a8] sm:$0xff]
      %v275 = vld [vmem:[%s176 + $0x2b0] sm:$0xff]
      %v276 = vld [vmem:[%s176 + $0x2b8] sm:$0xff]
      %v277 = vld [vmem:[%s176 + $0x2c0] sm:$0xff]
      %v278 = vld [vmem:[%s176 + $0x2c8] sm:$0xff]
      %v279 = vld [vmem:[%s176 + $0x2d0] sm:$0xff]
      %v280 = vld [vmem:[%s176 + $0x2d8] sm:$0xff]
      %v281 = vld [vmem:[%s176 + $0x2e0] sm:$0xff]
      %v282 = vld [vmem:[%s176 + $0x2e8] sm:$0xff]
      %v283 = vld [vmem:[%s176 + $0x2f0] sm:$0xff]
      %v284 = vld [vmem:[%s176 + $0x2f8] sm:$0xff]
      %v285 = vld [vmem:[%s176 + $0x300] sm:$0xff]
      %v286 = vld [vmem:[%s176 + $0x308] sm:$0xff]
      %v287 = vld [vmem:[%s176 + $0x310] sm:$0xff]
      %v288 = vld [vmem:[%s176 + $0x318] sm:$0xff]
      %v289 = vld [vmem:[%s176 + $0x320] sm:$0xff]
      %v290 = vld [vmem:[%s176 + $0x328] sm:$0xff]
      %v291 = vld [vmem:[%s176 + $0x330] sm:$0xff]
      %v292 = vld [vmem:[%s176 + $0x338] sm:$0xff]
      %v293 = vld [vmem:[%s176 + $0x340] sm:$0xff]
      %v294 = vld [vmem:[%s176 + $0x348] sm:$0xff]
      %v295 = vld [vmem:[%s176 + $0x350] sm:$0xff]
      %v296 = vld [vmem:[%s176 + $0x358] sm:$0xff]
      %v297 = vld [vmem:[%s176 + $0x360] sm:$0xff]
      %v298 = vld [vmem:[%s176 + $0x368] sm:$0xff]
      %v299 = vld [vmem:[%s176 + $0x370] sm:$0xff]
      %v300 = vld [vmem:[%s176 + $0x378] sm:$0xff]
      %v301 = vld [vmem:[%s1] sm:$0xf]
      %v302 = vld [vmem:[%s1 + $0x4] sm:$0xf]
      %v303 = vld [vmem:[%s1 + $0x8] sm:$0xf]
      %v304 = vld [vmem:[%s1 + $0xc] sm:$0xf]
      %v305 = vld [vmem:[%s1 + $0x10] sm:$0xf]
      %v306 = vld [vmem:[%s1 + $0x14] sm:$0xf]
      %v307 = vld [vmem:[%s1 + $0x18] sm:$0xf]
      %v308 = vld [vmem:[%s1 + $0x1c] sm:$0xf]
      %v309 = vld [vmem:[%s1 + $0x20] sm:$0xf]
      %v310 = vld [vmem:[%s1 + $0x24] sm:$0xf]
      %v311 = vld [vmem:[%s1 + $0x28] sm:$0xf]
      %v312 = vld [vmem:[%s1 + $0x2c] sm:$0xf]
      %v313 = vld [vmem:[%s1 + $0x30] sm:$0xf]
      %v314 = vld [vmem:[%s1 + $0x34] sm:$0xf]
      %v315 = vld [vmem:[%s1 + $0x38] sm:$0xf]
      %v316 = vld [vmem:[%s1 + $0x3c] sm:$0xf]
      %v317 = vld [vmem:[%s1 + $0x40] sm:$0xf]
      %v318 = vld [vmem:[%s1 + $0x44] sm:$0xf]
      %v319 = vld [vmem:[%s1 + $0x48] sm:$0xf]
      %v320 = vld [vmem:[%s1 + $0x4c] sm:$0xf]
      %v321 = vld [vmem:[%s1 + $0x50] sm:$0xf]
      %v322 = vld [vmem:[%s1 + $0x54] sm:$0xf]
      %v323 = vld [vmem:[%s1 + $0x58] sm:$0xf]
      %v324 = vld [vmem:[%s1 + $0x5c] sm:$0xf]
      %v325 = vld [vmem:[%s1 + $0x60] sm:$0xf]
      %v326 = vld [vmem:[%s1 + $0x64] sm:$0xf]
      %v327 = vld [vmem:[%s1 + $0x68] sm:$0xf]
      %v328 = vld [vmem:[%s1 + $0x6c] sm:$0xf]
      %v329 = vld [vmem:[%s1 + $0x70] sm:$0xf]
      %v330 = vld [vmem:[%s1 + $0x74] sm:$0xf]
      %v331 = vld [vmem:[%s1 + $0x78] sm:$0xf]
      %v332 = vld [vmem:[%s1 + $0x7c] sm:$0xf]
      %v333 = vld [vmem:[%s1 + $0x80] sm:$0xf]
      %v334 = vld [vmem:[%s1 + $0x84] sm:$0xf]
      %v335 = vld [vmem:[%s1 + $0x88] sm:$0xf]
      %v336 = vld [vmem:[%s1 + $0x8c] sm:$0xf]
      %v337 = vld [vmem:[%s1 + $0x90] sm:$0xf]
      %v338 = vld [vmem:[%s1 + $0x94] sm:$0xf]
      %v339 = vld [vmem:[%s1 + $0x98] sm:$0xf]
      %v340 = vld [vmem:[%s1 + $0x9c] sm:$0xf]
      %v341 = vld [vmem:[%s1 + $0xa0] sm:$0xf]
      %v342 = vld [vmem:[%s1 + $0xa4] sm:$0xf]
      %v343 = vld [vmem:[%s1 + $0xa8] sm:$0xf]
      %v344 = vld [vmem:[%s1 + $0xac] sm:$0xf]
      %v345 = vld [vmem:[%s1 + $0xb0] sm:$0xf]
      %v346 = vld [vmem:[%s1 + $0xb4] sm:$0xf]
      %v347 = vld [vmem:[%s1 + $0xb8] sm:$0xf]
      %v348 = vld [vmem:[%s1 + $0xbc] sm:$0xf]
      %v349 = vld [vmem:[%s1 + $0xc0] sm:$0xf]
      %v350 = vld [vmem:[%s1 + $0xc4] sm:$0xf]
      %v351 = vld [vmem:[%s1 + $0xc8] sm:$0xf]
      %v352 = vld [vmem:[%s1 + $0xcc] sm:$0xf]
      %v353 = vld [vmem:[%s1 + $0xd0] sm:$0xf]
      %v354 = vld [vmem:[%s1 + $0xd4] sm:$0xf]
      %v355 = vld [vmem:[%s1 + $0xd8] sm:$0xf]
      %v356 = vld [vmem:[%s1 + $0xdc] sm:$0xf]
      %v357 = vld [vmem:[%s1 + $0xe0] sm:$0xf]
      %v358 = vld [vmem:[%s1 + $0xe4] sm:$0xf]
      %v359 = vld [vmem:[%s1 + $0xe8] sm:$0xf]
      %v360 = vld [vmem:[%s1 + $0xec] sm:$0xf]
      %v361 = vld [vmem:[%s1 + $0xf0] sm:$0xf]
      %v362 = vld [vmem:[%s1 + $0xf4] sm:$0xf]
      %v363 = vld [vmem:[%s1 + $0xf8] sm:$0xf]
      %v364 = vld [vmem:[%s1 + $0xfc] sm:$0xf]
      %v365 = vld [vmem:[%s1 + $0x100] sm:$0xf]
      %v366 = vld [vmem:[%s1 + $0x104] sm:$0xf]
      %v367 = vld [vmem:[%s1 + $0x108] sm:$0xf]
      %v368 = vld [vmem:[%s1 + $0x10c] sm:$0xf]
      %v369 = vld [vmem:[%s1 + $0x110] sm:$0xf]
      %v370 = vld [vmem:[%s1 + $0x114] sm:$0xf]
      %v371 = vld [vmem:[%s1 + $0x118] sm:$0xf]
      %v372 = vld [vmem:[%s1 + $0x11c] sm:$0xf]
      %v373 = vld [vmem:[%s1 + $0x120] sm:$0xf]
      %v374 = vld [vmem:[%s1 + $0x124] sm:$0xf]
      %v375 = vld [vmem:[%s1 + $0x128] sm:$0xf]
      %v376 = vld [vmem:[%s1 + $0x12c] sm:$0xf]
      %v377 = vld [vmem:[%s1 + $0x130] sm:$0xf]
      %v378 = vld [vmem:[%s1 + $0x134] sm:$0xf]
      %v379 = vld [vmem:[%s1 + $0x138] sm:$0xf]
      %v380 = vld [vmem:[%s1 + $0x13c] sm:$0xf]
      %v381 = vld [vmem:[%s1 + $0x140] sm:$0xf]
      %v382 = vld [vmem:[%s1 + $0x144] sm:$0xf]
      %v383 = vld [vmem:[%s1 + $0x148] sm:$0xf]
      %v384 = vld [vmem:[%s1 + $0x14c] sm:$0xf]
      %v385 = vld [vmem:[%s1 + $0x150] sm:$0xf]
      %v386 = vld [vmem:[%s1 + $0x154] sm:$0xf]
      %v387 = vld [vmem:[%s1 + $0x158] sm:$0xf]
      %v388 = vld [vmem:[%s1 + $0x15c] sm:$0xf]
      %v389 = vld [vmem:[%s1 + $0x160] sm:$0xf]
      %v390 = vld [vmem:[%s1 + $0x164] sm:$0xf]
      %v391 = vld [vmem:[%s1 + $0x168] sm:$0xf]
      %v392 = vld [vmem:[%s1 + $0x16c] sm:$0xf]
      %v393 = vld [vmem:[%s1 + $0x170] sm:$0xf]
      %v394 = vld [vmem:[%s1 + $0x174] sm:$0xf]
      %v395 = vld [vmem:[%s1 + $0x178] sm:$0xf]
      %v396 = vld [vmem:[%s1 + $0x17c] sm:$0xf]
      %v397 = vld [vmem:[%s1 + $0x180] sm:$0xf]
      %v398 = vld [vmem:[%s1 + $0x184] sm:$0xf]
      %v399 = vld [vmem:[%s1 + $0x188] sm:$0xf]
      %v400 = vld [vmem:[%s1 + $0x18c] sm:$0xf]
      %v401 = vld [vmem:[%s1 + $0x190] sm:$0xf]
      %v402 = vld [vmem:[%s1 + $0x194] sm:$0xf]
      %v403 = vld [vmem:[%s1 + $0x198] sm:$0xf]
      %v404 = vld [vmem:[%s1 + $0x19c] sm:$0xf]
      %v405 = vld [vmem:[%s1 + $0x1a0] sm:$0xf]
      %v406 = vld [vmem:[%s1 + $0x1a4] sm:$0xf]
      %v407 = vld [vmem:[%s1 + $0x1a8] sm:$0xf]
      %v408 = vld [vmem:[%s1 + $0x1ac] sm:$0xf]
      %v409 = vld [vmem:[%s1 + $0x1b0] sm:$0xf]
      %v410 = vld [vmem:[%s1 + $0x1b4] sm:$0xf]
      %v411 = vld [vmem:[%s1 + $0x1b8] sm:$0xf]
      %v412 = vld [vmem:[%s1 + $0x1bc] sm:$0xf]
      %v413 = vld [vmem:[%s1 + $0x1c0] sm:$0xf]
      %v414 = vld [vmem:[%s1 + $0x1c4] sm:$0xf]
      %v415 = vld [vmem:[%s1 + $0x1c8] sm:$0xf]
      %v416 = vld [vmem:[%s1 + $0x1cc] sm:$0xf]
      %v417 = vld [vmem:[%s1 + $0x1d0] sm:$0xf]
      %v418 = vld [vmem:[%s1 + $0x1d4] sm:$0xf]
      %v419 = vld [vmem:[%s1 + $0x1d8] sm:$0xf]
      %v420 = vld [vmem:[%s1 + $0x1dc] sm:$0xf]
      %v421 = vld [vmem:[%s1 + $0x1e0] sm:$0xf]
      %v422 = vld [vmem:[%s1 + $0x1e4] sm:$0xf]
      %v423 = vld [vmem:[%s1 + $0x1e8] sm:$0xf]
      %v424 = vld [vmem:[%s1 + $0x1ec] sm:$0xf]
      %v425 = vld [vmem:[%s1 + $0x1f0] sm:$0xf]
      %v426 = vld [vmem:[%s1 + $0x1f4] sm:$0xf]
      %v427 = vld [vmem:[%s1 + $0x1f8] sm:$0xf]
      %v428 = vld [vmem:[%s1 + $0x1fc] sm:$0xf]
      %v429 = vld [vmem:[%s1 + $0x200] sm:$0xf]
      %v430 = vld [vmem:[%s1 + $0x204] sm:$0xf]
      %v431 = vld [vmem:[%s1 + $0x208] sm:$0xf]
      %v432 = vld [vmem:[%s1 + $0x20c] sm:$0xf]
      %v433 = vld [vmem:[%s1 + $0x210] sm:$0xf]
      %v434 = vld [vmem:[%s1 + $0x214] sm:$0xf]
      %v435 = vld [vmem:[%s1 + $0x218] sm:$0xf]
      %v436 = vld [vmem:[%s1 + $0x21c] sm:$0xf]
      %v437 = vld [vmem:[%s1 + $0x220] sm:$0xf]
      %v438 = vld [vmem:[%s1 + $0x224] sm:$0xf]
      %v439 = vld [vmem:[%s1 + $0x228] sm:$0xf]
      %v440 = vld [vmem:[%s1 + $0x22c] sm:$0xf]
      %v441 = vld [vmem:[%s1 + $0x230] sm:$0xf]
      %v442 = vld [vmem:[%s1 + $0x234] sm:$0xf]
      %v443 = vld [vmem:[%s1 + $0x238] sm:$0xf]
      %v444 = vld [vmem:[%s1 + $0x23c] sm:$0xf]
      %v445 = vld [vmem:[%s1 + $0x240] sm:$0xf]
      %v446 = vld [vmem:[%s1 + $0x244] sm:$0xf]
      %v447 = vld [vmem:[%s1 + $0x248] sm:$0xf]
      %v448 = vld [vmem:[%s1 + $0x24c] sm:$0xf]
      %v449 = vld [vmem:[%s1 + $0x250] sm:$0xf]
      %v450 = vld [vmem:[%s1 + $0x254] sm:$0xf]
      %v451 = vld [vmem:[%s1 + $0x258] sm:$0xf]
      %v452 = vld [vmem:[%s1 + $0x25c] sm:$0xf]
      %v453 = vld [vmem:[%s1 + $0x260] sm:$0xf]
      %v454 = vld [vmem:[%s1 + $0x264] sm:$0xf]
      %v455 = vld [vmem:[%s1 + $0x268] sm:$0xf]
      %v456 = vld [vmem:[%s1 + $0x26c] sm:$0xf]
      %v457 = vld [vmem:[%s1 + $0x270] sm:$0xf]
      %v458 = vld [vmem:[%s1 + $0x274] sm:$0xf]
      %v459 = vld [vmem:[%s1 + $0x278] sm:$0xf]
      %v460 = vld [vmem:[%s1 + $0x27c] sm:$0xf]
      %v461 = vld [vmem:[%s1 + $0x280] sm:$0xf]
      %v462 = vld [vmem:[%s1 + $0x284] sm:$0xf]
      %v463 = vld [vmem:[%s1 + $0x288] sm:$0xf]
      %v464 = vld [vmem:[%s1 + $0x28c] sm:$0xf]
      %v465 = vld [vmem:[%s1 + $0x290] sm:$0xf]
      %v466 = vld [vmem:[%s1 + $0x294] sm:$0xf]
      %v467 = vld [vmem:[%s1 + $0x298] sm:$0xf]
      %v468 = vld [vmem:[%s1 + $0x29c] sm:$0xf]
      %v469 = vld [vmem:[%s1 + $0x2a0] sm:$0xf]
      %v470 = vld [vmem:[%s1 + $0x2a4] sm:$0xf]
      %v471 = vld [vmem:[%s1 + $0x2a8] sm:$0xf]
      %v472 = vld [vmem:[%s1 + $0x2ac] sm:$0xf]
      %v473 = vld [vmem:[%s1 + $0x2b0] sm:$0xf]
      %v474 = vld [vmem:[%s1 + $0x2b4] sm:$0xf]
      %v475 = vld [vmem:[%s1 + $0x2b8] sm:$0xf]
      %v476 = vld [vmem:[%s1 + $0x2bc] sm:$0xf]
      %v477 = vld [vmem:[%s1 + $0x2c0] sm:$0xf]
      %v478 = vld [vmem:[%s1 + $0x2c4] sm:$0xf]
      %v479 = vld [vmem:[%s1 + $0x2c8] sm:$0xf]
      %v480 = vld [vmem:[%s1 + $0x2cc] sm:$0xf]
      %v481 = vld [vmem:[%s1 + $0x2d0] sm:$0xf]
      %v482 = vld [vmem:[%s1 + $0x2d4] sm:$0xf]
      %v483 = vld [vmem:[%s1 + $0x2d8] sm:$0xf]
      %v484 = vld [vmem:[%s1 + $0x2dc] sm:$0xf]
      %v485 = vld [vmem:[%s1 + $0x2e0] sm:$0xf]
      %v486 = vld [vmem:[%s1 + $0x2e4] sm:$0xf]
      %v487 = vld [vmem:[%s1 + $0x2e8] sm:$0xf]
      %v488 = vld [vmem:[%s1 + $0x2ec] sm:$0xf]
      %v489 = vld [vmem:[%s1 + $0x2f0] sm:$0xf]
      %v490 = vld [vmem:[%s1 + $0x2f4] sm:$0xf]
      %v491 = vld [vmem:[%s1 + $0x2f8] sm:$0xf]
      %v492 = vld [vmem:[%s1 + $0x2fc] sm:$0xf]
      %v493 = vld [vmem:[%s1 + $0x300] sm:$0xf]
      %v494 = vld [vmem:[%s1 + $0x304] sm:$0xf]
      %v495 = vld [vmem:[%s1 + $0x308] sm:$0xf]
      %v496 = vld [vmem:[%s1 + $0x30c] sm:$0xf]
      %v497 = vld [vmem:[%s1 + $0x310] sm:$0xf]
      %v498 = vld [vmem:[%s1 + $0x314] sm:$0xf]
      %v499 = vld [vmem:[%s1 + $0x318] sm:$0xf]
      %v500 = vld [vmem:[%s1 + $0x31c] sm:$0xf]
      %v501 = vld [vmem:[%s1 + $0x320] sm:$0xf]
      %v502 = vld [vmem:[%s1 + $0x324] sm:$0xf]
      %v503 = vld [vmem:[%s1 + $0x328] sm:$0xf]
      %v504 = vld [vmem:[%s1 + $0x32c] sm:$0xf]
      %v505 = vld [vmem:[%s1 + $0x330] sm:$0xf]
      %v506 = vld [vmem:[%s1 + $0x334] sm:$0xf]
      %v507 = vld [vmem:[%s1 + $0x338] sm:$0xf]
      %v508 = vld [vmem:[%s1 + $0x33c] sm:$0xf]
      %v509 = vld [vmem:[%s1 + $0x340] sm:$0xf]
      %v510 = vld [vmem:[%s1 + $0x344] sm:$0xf]
      %v511 = vld [vmem:[%s1 + $0x348] sm:$0xf]
      %v512 = vld [vmem:[%s1 + $0x34c] sm:$0xf]
      %v513 = vld [vmem:[%s1 + $0x350] sm:$0xf]
      %v514 = vld [vmem:[%s1 + $0x354] sm:$0xf]
      %v515 = vld [vmem:[%s1 + $0x358] sm:$0xf]
      %v516 = vld [vmem:[%s1 + $0x35c] sm:$0xf]
      %v629 = vunpack.c.l.b16 %v189
      %v630 = vunpack.c.h.b16 %v189
      %v631 = vunpack.c.l.b16 %v190
      %v632 = vunpack.c.h.b16 %v190
      %v633 = vunpack.c.l.b16 %v191
      %v634 = vunpack.c.h.b16 %v191
      %v635 = vunpack.c.l.b16 %v192
      %v636 = vunpack.c.h.b16 %v192
      %v637 = vunpack.c.l.b16 %v193
      %v638 = vunpack.c.h.b16 %v193
      %v639 = vunpack.c.l.b16 %v194
      %v640 = vunpack.c.h.b16 %v194
      %v641 = vunpack.c.l.b16 %v195
      %v642 = vunpack.c.h.b16 %v195
      %v643 = vunpack.c.l.b16 %v196
      %v644 = vunpack.c.h.b16 %v196
      %v645 = vunpack.c.l.b16 %v197
      %v646 = vunpack.c.h.b16 %v197
      %v647 = vunpack.c.l.b16 %v198
      %v648 = vunpack.c.h.b16 %v198
      %v649 = vunpack.c.l.b16 %v199
      %v650 = vunpack.c.h.b16 %v199
      %v651 = vunpack.c.l.b16 %v200
      %v652 = vunpack.c.h.b16 %v200
      %v653 = vunpack.c.l.b16 %v201
      %v654 = vunpack.c.h.b16 %v201
      %v655 = vunpack.c.l.b16 %v202
      %v656 = vunpack.c.h.b16 %v202
      %v657 = vunpack.c.l.b16 %v203
      %v658 = vunpack.c.h.b16 %v203
      %v659 = vunpack.c.l.b16 %v204
      %v660 = vunpack.c.h.b16 %v204
      %v661 = vunpack.c.l.b16 %v205
      %v662 = vunpack.c.h.b16 %v205
      %v663 = vunpack.c.l.b16 %v206
      %v664 = vunpack.c.h.b16 %v206
      %v665 = vunpack.c.l.b16 %v207
      %v666 = vunpack.c.h.b16 %v207
      %v667 = vunpack.c.l.b16 %v208
      %v668 = vunpack.c.h.b16 %v208
      %v669 = vunpack.c.l.b16 %v209
      %v670 = vunpack.c.h.b16 %v209
      %v671 = vunpack.c.l.b16 %v210
      %v672 = vunpack.c.h.b16 %v210
      %v673 = vunpack.c.l.b16 %v211
      %v674 = vunpack.c.h.b16 %v211
      %v675 = vunpack.c.l.b16 %v212
      %v676 = vunpack.c.h.b16 %v212
      %v677 = vunpack.c.l.b16 %v213
      %v678 = vunpack.c.h.b16 %v213
      %v679 = vunpack.c.l.b16 %v214
      %v680 = vunpack.c.h.b16 %v214
      %v681 = vunpack.c.l.b16 %v215
      %v682 = vunpack.c.h.b16 %v215
      %v683 = vunpack.c.l.b16 %v216
      %v684 = vunpack.c.h.b16 %v216
      %v685 = vunpack.c.l.b16 %v217
      %v686 = vunpack.c.h.b16 %v217
      %v687 = vunpack.c.l.b16 %v218
      %v688 = vunpack.c.h.b16 %v218
      %v689 = vunpack.c.l.b16 %v219
      %v690 = vunpack.c.h.b16 %v219
      %v691 = vunpack.c.l.b16 %v220
      %v692 = vunpack.c.h.b16 %v220
      %v693 = vunpack.c.l.b16 %v221
      %v694 = vunpack.c.h.b16 %v221
      %v695 = vunpack.c.l.b16 %v222
      %v696 = vunpack.c.h.b16 %v222
      %v697 = vunpack.c.l.b16 %v223
      %v698 = vunpack.c.h.b16 %v223
      %v699 = vunpack.c.l.b16 %v224
      %v700 = vunpack.c.h.b16 %v224
      %v701 = vunpack.c.l.b16 %v225
      %v702 = vunpack.c.h.b16 %v225
      %v703 = vunpack.c.l.b16 %v226
      %v704 = vunpack.c.h.b16 %v226
      %v705 = vunpack.c.l.b16 %v227
      %v706 = vunpack.c.h.b16 %v227
      %v707 = vunpack.c.l.b16 %v228
      %v708 = vunpack.c.h.b16 %v228
      %v709 = vunpack.c.l.b16 %v229
      %v710 = vunpack.c.h.b16 %v229
      %v711 = vunpack.c.l.b16 %v230
      %v712 = vunpack.c.h.b16 %v230
      %v713 = vunpack.c.l.b16 %v231
      %v714 = vunpack.c.h.b16 %v231
      %v715 = vunpack.c.l.b16 %v232
      %v716 = vunpack.c.h.b16 %v232
      %v717 = vunpack.c.l.b16 %v233
      %v718 = vunpack.c.h.b16 %v233
      %v719 = vunpack.c.l.b16 %v234
      %v720 = vunpack.c.h.b16 %v234
      %v721 = vunpack.c.l.b16 %v235
      %v722 = vunpack.c.h.b16 %v235
      %v723 = vunpack.c.l.b16 %v236
      %v724 = vunpack.c.h.b16 %v236
      %v725 = vunpack.c.l.b16 %v237
      %v726 = vunpack.c.h.b16 %v237
      %v727 = vunpack.c.l.b16 %v238
      %v728 = vunpack.c.h.b16 %v238
      %v729 = vunpack.c.l.b16 %v239
      %v730 = vunpack.c.h.b16 %v239
      %v731 = vunpack.c.l.b16 %v240
      %v732 = vunpack.c.h.b16 %v240
      %v733 = vunpack.c.l.b16 %v241
      %v734 = vunpack.c.h.b16 %v241
      %v735 = vunpack.c.l.b16 %v242
      %v736 = vunpack.c.h.b16 %v242
      %v737 = vunpack.c.l.b16 %v243
      %v738 = vunpack.c.h.b16 %v243
      %v739 = vunpack.c.l.b16 %v244
      %v740 = vunpack.c.h.b16 %v244
      %v741 = vunpack.c.l.b16 %v245
      %v742 = vunpack.c.h.b16 %v245
      %v743 = vunpack.c.l.b16 %v246
      %v744 = vunpack.c.h.b16 %v246
      %v745 = vunpack.c.l.b16 %v247
      %v746 = vunpack.c.h.b16 %v247
      %v747 = vunpack.c.l.b16 %v248
      %v748 = vunpack.c.h.b16 %v248
      %v749 = vunpack.c.l.b16 %v249
      %v750 = vunpack.c.h.b16 %v249
      %v751 = vunpack.c.l.b16 %v250
      %v752 = vunpack.c.h.b16 %v250
      %v753 = vunpack.c.l.b16 %v251
      %v754 = vunpack.c.h.b16 %v251
      %v755 = vunpack.c.l.b16 %v252
      %v756 = vunpack.c.h.b16 %v252
      %v757 = vunpack.c.l.b16 %v253
      %v758 = vunpack.c.h.b16 %v253
      %v759 = vunpack.c.l.b16 %v254
      %v760 = vunpack.c.h.b16 %v254
      %v761 = vunpack.c.l.b16 %v255
      %v762 = vunpack.c.h.b16 %v255
      %v763 = vunpack.c.l.b16 %v256
      %v764 = vunpack.c.h.b16 %v256
      %v765 = vunpack.c.l.b16 %v257
      %v766 = vunpack.c.h.b16 %v257
      %v767 = vunpack.c.l.b16 %v258
      %v768 = vunpack.c.h.b16 %v258
      %v769 = vunpack.c.l.b16 %v259
      %v770 = vunpack.c.h.b16 %v259
      %v771 = vunpack.c.l.b16 %v260
      %v772 = vunpack.c.h.b16 %v260
      %v773 = vunpack.c.l.b16 %v261
      %v774 = vunpack.c.h.b16 %v261
      %v775 = vunpack.c.l.b16 %v262
      %v776 = vunpack.c.h.b16 %v262
      %v777 = vunpack.c.l.b16 %v263
      %v778 = vunpack.c.h.b16 %v263
      %v779 = vunpack.c.l.b16 %v264
      %v780 = vunpack.c.h.b16 %v264
      %v781 = vunpack.c.l.b16 %v265
      %v782 = vunpack.c.h.b16 %v265
      %v783 = vunpack.c.l.b16 %v266
      %v784 = vunpack.c.h.b16 %v266
      %v785 = vunpack.c.l.b16 %v267
      %v786 = vunpack.c.h.b16 %v267
      %v787 = vunpack.c.l.b16 %v268
      %v788 = vunpack.c.h.b16 %v268
      %v789 = vunpack.c.l.b16 %v269
      %v790 = vunpack.c.h.b16 %v269
      %v791 = vunpack.c.l.b16 %v270
      %v792 = vunpack.c.h.b16 %v270
      %v793 = vunpack.c.l.b16 %v271
      %v794 = vunpack.c.h.b16 %v271
      %v795 = vunpack.c.l.b16 %v272
      %v796 = vunpack.c.h.b16 %v272
      %v797 = vunpack.c.l.b16 %v273
      %v798 = vunpack.c.h.b16 %v273
      %v799 = vunpack.c.l.b16 %v274
      %v800 = vunpack.c.h.b16 %v274
      %v801 = vunpack.c.l.b16 %v275
      %v802 = vunpack.c.h.b16 %v275
      %v803 = vunpack.c.l.b16 %v276
      %v804 = vunpack.c.h.b16 %v276
      %v805 = vunpack.c.l.b16 %v277
      %v806 = vunpack.c.h.b16 %v277
      %v807 = vunpack.c.l.b16 %v278
      %v808 = vunpack.c.h.b16 %v278
      %v809 = vunpack.c.l.b16 %v279
      %v810 = vunpack.c.h.b16 %v279
      %v811 = vunpack.c.l.b16 %v280
      %v812 = vunpack.c.h.b16 %v280
      %v813 = vunpack.c.l.b16 %v281
      %v814 = vunpack.c.h.b16 %v281
      %v815 = vunpack.c.l.b16 %v282
      %v816 = vunpack.c.h.b16 %v282
      %v817 = vunpack.c.l.b16 %v283
      %v818 = vunpack.c.h.b16 %v283
      %v819 = vunpack.c.l.b16 %v284
      %v820 = vunpack.c.h.b16 %v284
      %v821 = vunpack.c.l.b16 %v285
      %v822 = vunpack.c.h.b16 %v285
      %v823 = vunpack.c.l.b16 %v286
      %v824 = vunpack.c.h.b16 %v286
      %v825 = vunpack.c.l.b16 %v287
      %v826 = vunpack.c.h.b16 %v287
      %v827 = vunpack.c.l.b16 %v288
      %v828 = vunpack.c.h.b16 %v288
      %v829 = vunpack.c.l.b16 %v289
      %v830 = vunpack.c.h.b16 %v289
      %v831 = vunpack.c.l.b16 %v290
      %v832 = vunpack.c.h.b16 %v290
      %v833 = vunpack.c.l.b16 %v291
      %v834 = vunpack.c.h.b16 %v291
      %v835 = vunpack.c.l.b16 %v292
      %v836 = vunpack.c.h.b16 %v292
      %v837 = vunpack.c.l.b16 %v293
      %v838 = vunpack.c.h.b16 %v293
      %v839 = vunpack.c.l.b16 %v294
      %v840 = vunpack.c.h.b16 %v294
      %v841 = vunpack.c.l.b16 %v295
      %v842 = vunpack.c.h.b16 %v295
      %v843 = vunpack.c.l.b16 %v296
      %v844 = vunpack.c.h.b16 %v296
      %v845 = vunpack.c.l.b16 %v297
      %v846 = vunpack.c.h.b16 %v297
      %v847 = vunpack.c.l.b16 %v298
      %v848 = vunpack.c.h.b16 %v298
      %v849 = vunpack.c.l.b16 %v299
      %v850 = vunpack.c.h.b16 %v299
      %v851 = vunpack.c.l.b16 %v300
      %v852 = vunpack.c.h.b16 %v300
      %v853 = vpack.c.b16 %v643, %v629
      %v854 = vpack.c.b16 %v644, %v630
      %v855 = vpack.c.b16 %v645, %v631
      %v856 = vpack.c.b16 %v646, %v632
      %v857 = vpack.c.b16 %v647, %v633
      %v858 = vpack.c.b16 %v648, %v634
      %v859 = vpack.c.b16 %v649, %v635
      %v860 = vpack.c.b16 %v650, %v636
      %v861 = vpack.c.b16 %v651, %v637
      %v862 = vpack.c.b16 %v652, %v638
      %v863 = vpack.c.b16 %v653, %v639
      %v864 = vpack.c.b16 %v654, %v640
      %v865 = vpack.c.b16 %v655, %v641
      %v866 = vpack.c.b16 %v656, %v642
      %v867 = vpack.c.b16 %v671, %v657
      %v868 = vpack.c.b16 %v672, %v658
      %v869 = vpack.c.b16 %v673, %v659
      %v870 = vpack.c.b16 %v674, %v660
      %v871 = vpack.c.b16 %v675, %v661
      %v872 = vpack.c.b16 %v676, %v662
      %v873 = vpack.c.b16 %v677, %v663
      %v874 = vpack.c.b16 %v678, %v664
      %v875 = vpack.c.b16 %v679, %v665
      %v876 = vpack.c.b16 %v680, %v666
      %v877 = vpack.c.b16 %v681, %v667
      %v878 = vpack.c.b16 %v682, %v668
      %v879 = vpack.c.b16 %v683, %v669
      %v880 = vpack.c.b16 %v684, %v670
      %v881 = vpack.c.b16 %v699, %v685
      %v882 = vpack.c.b16 %v700, %v686
      %v883 = vpack.c.b16 %v701, %v687
      %v884 = vpack.c.b16 %v702, %v688
      %v885 = vpack.c.b16 %v703, %v689
      %v886 = vpack.c.b16 %v704, %v690
      %v887 = vpack.c.b16 %v705, %v691
      %v888 = vpack.c.b16 %v706, %v692
      %v889 = vpack.c.b16 %v707, %v693
      %v890 = vpack.c.b16 %v708, %v694
      %v891 = vpack.c.b16 %v709, %v695
      %v892 = vpack.c.b16 %v710, %v696
      %v893 = vpack.c.b16 %v711, %v697
      %v894 = vpack.c.b16 %v712, %v698
      %v895 = vpack.c.b16 %v727, %v713
      %v896 = vpack.c.b16 %v728, %v714
      %v897 = vpack.c.b16 %v729, %v715
      %v898 = vpack.c.b16 %v730, %v716
      %v899 = vpack.c.b16 %v731, %v717
      %v900 = vpack.c.b16 %v732, %v718
      %v901 = vpack.c.b16 %v733, %v719
      %v902 = vpack.c.b16 %v734, %v720
      %v903 = vpack.c.b16 %v735, %v721
      %v904 = vpack.c.b16 %v736, %v722
      %v905 = vpack.c.b16 %v737, %v723
      %v906 = vpack.c.b16 %v738, %v724
      %v907 = vpack.c.b16 %v739, %v725
      %v908 = vpack.c.b16 %v740, %v726
      %v909 = vpack.c.b16 %v755, %v741
      %v910 = vpack.c.b16 %v756, %v742
      %v911 = vpack.c.b16 %v757, %v743
      %v912 = vpack.c.b16 %v758, %v744
      %v913 = vpack.c.b16 %v759, %v745
      %v914 = vpack.c.b16 %v760, %v746
      %v915 = vpack.c.b16 %v761, %v747
      %v916 = vpack.c.b16 %v762, %v748
      %v917 = vpack.c.b16 %v763, %v749
      %v918 = vpack.c.b16 %v764, %v750
      %v919 = vpack.c.b16 %v765, %v751
      %v920 = vpack.c.b16 %v766, %v752
      %v921 = vpack.c.b16 %v767, %v753
      %v922 = vpack.c.b16 %v768, %v754
      %v923 = vpack.c.b16 %v783, %v769
      %v924 = vpack.c.b16 %v784, %v770
      %v925 = vpack.c.b16 %v785, %v771
      %v926 = vpack.c.b16 %v786, %v772
      %v927 = vpack.c.b16 %v787, %v773
      %v928 = vpack.c.b16 %v788, %v774
      %v929 = vpack.c.b16 %v789, %v775
      %v930 = vpack.c.b16 %v790, %v776
      %v931 = vpack.c.b16 %v791, %v777
      %v932 = vpack.c.b16 %v792, %v778
      %v933 = vpack.c.b16 %v793, %v779
      %v934 = vpack.c.b16 %v794, %v780
      %v935 = vpack.c.b16 %v795, %v781
      %v936 = vpack.c.b16 %v796, %v782
      %v937 = vpack.c.b16 %v811, %v797
      %v938 = vpack.c.b16 %v812, %v798
      %v939 = vpack.c.b16 %v813, %v799
      %v940 = vpack.c.b16 %v814, %v800
      %v941 = vpack.c.b16 %v815, %v801
      %v942 = vpack.c.b16 %v816, %v802
      %v943 = vpack.c.b16 %v817, %v803
      %v944 = vpack.c.b16 %v818, %v804
      %v945 = vpack.c.b16 %v819, %v805
      %v946 = vpack.c.b16 %v820, %v806
      %v947 = vpack.c.b16 %v821, %v807
      %v948 = vpack.c.b16 %v822, %v808
      %v949 = vpack.c.b16 %v823, %v809
      %v950 = vpack.c.b16 %v824, %v810
      %v951 = vpack.c.b16 %v839, %v825
      %v952 = vpack.c.b16 %v840, %v826
      %v953 = vpack.c.b16 %v841, %v827
      %v954 = vpack.c.b16 %v842, %v828
      %v955 = vpack.c.b16 %v843, %v829
      %v956 = vpack.c.b16 %v844, %v830
      %v957 = vpack.c.b16 %v845, %v831
      %v958 = vpack.c.b16 %v846, %v832
      %v959 = vpack.c.b16 %v847, %v833
      %v960 = vpack.c.b16 %v848, %v834
      %v961 = vpack.c.b16 %v849, %v835
      %v962 = vpack.c.b16 %v850, %v836
      %v963 = vpack.c.b16 %v851, %v837
      %v964 = vpack.c.b16 %v852, %v838
      %v1285 = vunpack.c.l.b16 %v301
      %v1286 = vunpack.c.l.b16 %v302
      %v1287 = vunpack.c.l.b16 %v303
      %v1288 = vunpack.c.l.b16 %v304
      %v1289 = vunpack.c.l.b16 %v305
      %v1290 = vunpack.c.l.b16 %v306
      %v1291 = vunpack.c.l.b16 %v307
      %v1292 = vunpack.c.l.b16 %v308
      %v1293 = vunpack.c.l.b16 %v309
      %v1294 = vunpack.c.l.b16 %v310
      %v1295 = vunpack.c.l.b16 %v311
      %v1296 = vunpack.c.l.b16 %v312
      %v1297 = vunpack.c.l.b16 %v313
      %v1298 = vunpack.c.l.b16 %v314
      %v1299 = vunpack.c.l.b16 %v315
      %v1300 = vunpack.c.l.b16 %v316
      %v1301 = vunpack.c.l.b16 %v317
      %v1302 = vunpack.c.l.b16 %v318
      %v1303 = vunpack.c.l.b16 %v319
      %v1304 = vunpack.c.l.b16 %v320
      %v1305 = vunpack.c.l.b16 %v321
      %v1306 = vunpack.c.l.b16 %v322
      %v1307 = vunpack.c.l.b16 %v323
      %v1308 = vunpack.c.l.b16 %v324
      %v1309 = vunpack.c.l.b16 %v325
      %v1310 = vunpack.c.l.b16 %v326
      %v1311 = vunpack.c.l.b16 %v327
      %v1312 = vunpack.c.l.b16 %v328
      %v1313 = vunpack.c.l.b16 %v329
      %v1314 = vunpack.c.l.b16 %v330
      %v1315 = vunpack.c.l.b16 %v331
      %v1316 = vunpack.c.l.b16 %v332
      %v1317 = vunpack.c.l.b16 %v333
      %v1318 = vunpack.c.l.b16 %v334
      %v1319 = vunpack.c.l.b16 %v335
      %v1320 = vunpack.c.l.b16 %v336
      %v1321 = vunpack.c.l.b16 %v337
      %v1322 = vunpack.c.l.b16 %v338
      %v1323 = vunpack.c.l.b16 %v339
      %v1324 = vunpack.c.l.b16 %v340
      %v1325 = vunpack.c.l.b16 %v341
      %v1326 = vunpack.c.l.b16 %v342
      %v1327 = vunpack.c.l.b16 %v343
      %v1328 = vunpack.c.l.b16 %v344
      %v1329 = vunpack.c.l.b16 %v345
      %v1330 = vunpack.c.l.b16 %v346
      %v1331 = vunpack.c.l.b16 %v347
      %v1332 = vunpack.c.l.b16 %v348
      %v1333 = vunpack.c.l.b16 %v349
      %v1334 = vunpack.c.l.b16 %v350
      %v1335 = vunpack.c.l.b16 %v351
      %v1336 = vunpack.c.l.b16 %v352
      %v1337 = vunpack.c.l.b16 %v353
      %v1338 = vunpack.c.l.b16 %v354
      %v1339 = vunpack.c.l.b16 %v355
      %v1340 = vunpack.c.l.b16 %v356
      %v1341 = vunpack.c.l.b16 %v357
      %v1342 = vunpack.c.l.b16 %v358
      %v1343 = vunpack.c.l.b16 %v359
      %v1344 = vunpack.c.l.b16 %v360
      %v1345 = vunpack.c.l.b16 %v361
      %v1346 = vunpack.c.l.b16 %v362
      %v1347 = vunpack.c.l.b16 %v363
      %v1348 = vunpack.c.l.b16 %v364
      %v1349 = vunpack.c.l.b16 %v365
      %v1350 = vunpack.c.l.b16 %v366
      %v1351 = vunpack.c.l.b16 %v367
      %v1352 = vunpack.c.l.b16 %v368
      %v1353 = vunpack.c.l.b16 %v369
      %v1354 = vunpack.c.l.b16 %v370
      %v1355 = vunpack.c.l.b16 %v371
      %v1356 = vunpack.c.l.b16 %v372
      %v1357 = vunpack.c.l.b16 %v373
      %v1358 = vunpack.c.l.b16 %v374
      %v1359 = vunpack.c.l.b16 %v375
      %v1360 = vunpack.c.l.b16 %v376
      %v1361 = vunpack.c.l.b16 %v377
      %v1362 = vunpack.c.l.b16 %v378
      %v1363 = vunpack.c.l.b16 %v379
      %v1364 = vunpack.c.l.b16 %v380
      %v1365 = vunpack.c.l.b16 %v381
      %v1366 = vunpack.c.l.b16 %v382
      %v1367 = vunpack.c.l.b16 %v383
      %v1368 = vunpack.c.l.b16 %v384
      %v1369 = vunpack.c.l.b16 %v385
      %v1370 = vunpack.c.l.b16 %v386
      %v1371 = vunpack.c.l.b16 %v387
      %v1372 = vunpack.c.l.b16 %v388
      %v1373 = vunpack.c.l.b16 %v389
      %v1374 = vunpack.c.l.b16 %v390
      %v1375 = vunpack.c.l.b16 %v391
      %v1376 = vunpack.c.l.b16 %v392
      %v1377 = vunpack.c.l.b16 %v393
      %v1378 = vunpack.c.l.b16 %v394
      %v1379 = vunpack.c.l.b16 %v395
      %v1380 = vunpack.c.l.b16 %v396
      %v1381 = vunpack.c.l.b16 %v397
      %v1382 = vunpack.c.l.b16 %v398
      %v1383 = vunpack.c.l.b16 %v399
      %v1384 = vunpack.c.l.b16 %v400
      %v1385 = vunpack.c.l.b16 %v401
      %v1386 = vunpack.c.l.b16 %v402
      %v1387 = vunpack.c.l.b16 %v403
      %v1388 = vunpack.c.l.b16 %v404
      %v1389 = vunpack.c.l.b16 %v405
      %v1390 = vunpack.c.l.b16 %v406
      %v1391 = vunpack.c.l.b16 %v407
      %v1392 = vunpack.c.l.b16 %v408
      %v1393 = vunpack.c.l.b16 %v409
      %v1394 = vunpack.c.l.b16 %v410
      %v1395 = vunpack.c.l.b16 %v411
      %v1396 = vunpack.c.l.b16 %v412
      %v1397 = vunpack.c.l.b16 %v413
      %v1398 = vunpack.c.l.b16 %v414
      %v1399 = vunpack.c.l.b16 %v415
      %v1400 = vunpack.c.l.b16 %v416
      %v1401 = vunpack.c.l.b16 %v417
      %v1402 = vunpack.c.l.b16 %v418
      %v1403 = vunpack.c.l.b16 %v419
      %v1404 = vunpack.c.l.b16 %v420
      %v1405 = vunpack.c.l.b16 %v421
      %v1406 = vunpack.c.l.b16 %v422
      %v1407 = vunpack.c.l.b16 %v423
      %v1408 = vunpack.c.l.b16 %v424
      %v1409 = vunpack.c.l.b16 %v425
      %v1410 = vunpack.c.l.b16 %v426
      %v1411 = vunpack.c.l.b16 %v427
      %v1412 = vunpack.c.l.b16 %v428
      %v1413 = vunpack.c.l.b16 %v429
      %v1414 = vunpack.c.l.b16 %v430
      %v1415 = vunpack.c.l.b16 %v431
      %v1416 = vunpack.c.l.b16 %v432
      %v1417 = vunpack.c.l.b16 %v433
      %v1418 = vunpack.c.l.b16 %v434
      %v1419 = vunpack.c.l.b16 %v435
      %v1420 = vunpack.c.l.b16 %v436
      %v1421 = vunpack.c.l.b16 %v437
      %v1422 = vunpack.c.l.b16 %v438
      %v1423 = vunpack.c.l.b16 %v439
      %v1424 = vunpack.c.l.b16 %v440
      %v1425 = vunpack.c.l.b16 %v441
      %v1426 = vunpack.c.l.b16 %v442
      %v1427 = vunpack.c.l.b16 %v443
      %v1428 = vunpack.c.l.b16 %v444
      %v1429 = vunpack.c.l.b16 %v445
      %v1430 = vunpack.c.l.b16 %v446
      %v1431 = vunpack.c.l.b16 %v447
      %v1432 = vunpack.c.l.b16 %v448
      %v1433 = vunpack.c.l.b16 %v449
      %v1434 = vunpack.c.l.b16 %v450
      %v1435 = vunpack.c.l.b16 %v451
      %v1436 = vunpack.c.l.b16 %v452
      %v1437 = vunpack.c.l.b16 %v453
      %v1438 = vunpack.c.l.b16 %v454
      %v1439 = vunpack.c.l.b16 %v455
      %v1440 = vunpack.c.l.b16 %v456
      %v1441 = vunpack.c.l.b16 %v457
      %v1442 = vunpack.c.l.b16 %v458
      %v1443 = vunpack.c.l.b16 %v459
      %v1444 = vunpack.c.l.b16 %v460
      %v1445 = vunpack.c.l.b16 %v461
      %v1446 = vunpack.c.l.b16 %v462
      %v1447 = vunpack.c.l.b16 %v463
      %v1448 = vunpack.c.l.b16 %v464
      %v1449 = vunpack.c.l.b16 %v465
      %v1450 = vunpack.c.l.b16 %v466
      %v1451 = vunpack.c.l.b16 %v467
      %v1452 = vunpack.c.l.b16 %v468
      %v1453 = vunpack.c.l.b16 %v469
      %v1454 = vunpack.c.l.b16 %v470
      %v1455 = vunpack.c.l.b16 %v471
      %v1456 = vunpack.c.l.b16 %v472
      %v1457 = vunpack.c.l.b16 %v473
      %v1458 = vunpack.c.l.b16 %v474
      %v1459 = vunpack.c.l.b16 %v475
      %v1460 = vunpack.c.l.b16 %v476
      %v1461 = vunpack.c.l.b16 %v477
      %v1462 = vunpack.c.l.b16 %v478
      %v1463 = vunpack.c.l.b16 %v479
      %v1464 = vunpack.c.l.b16 %v480
      %v1465 = vunpack.c.l.b16 %v481
      %v1466 = vunpack.c.l.b16 %v482
      %v1467 = vunpack.c.l.b16 %v483
      %v1468 = vunpack.c.l.b16 %v484
      %v1469 = vunpack.c.l.b16 %v485
      %v1470 = vunpack.c.l.b16 %v486
      %v1471 = vunpack.c.l.b16 %v487
      %v1472 = vunpack.c.l.b16 %v488
      %v1473 = vunpack.c.l.b16 %v489
      %v1474 = vunpack.c.l.b16 %v490
      %v1475 = vunpack.c.l.b16 %v491
      %v1476 = vunpack.c.l.b16 %v492
      %v1477 = vunpack.c.l.b16 %v493
      %v1478 = vunpack.c.l.b16 %v494
      %v1479 = vunpack.c.l.b16 %v495
      %v1480 = vunpack.c.l.b16 %v496
      %v1481 = vunpack.c.l.b16 %v497
      %v1482 = vunpack.c.l.b16 %v498
      %v1483 = vunpack.c.l.b16 %v499
      %v1484 = vunpack.c.l.b16 %v500
      %v1485 = vunpack.c.l.b16 %v501
      %v1486 = vunpack.c.l.b16 %v502
      %v1487 = vunpack.c.l.b16 %v503
      %v1488 = vunpack.c.l.b16 %v504
      %v1489 = vunpack.c.l.b16 %v505
      %v1490 = vunpack.c.l.b16 %v506
      %v1491 = vunpack.c.l.b16 %v507
      %v1492 = vunpack.c.l.b16 %v508
      %v1493 = vunpack.c.l.b16 %v509
      %v1494 = vunpack.c.l.b16 %v510
      %v1495 = vunpack.c.l.b16 %v511
      %v1496 = vunpack.c.l.b16 %v512
      %v1497 = vunpack.c.l.b16 %v513
      %v1498 = vunpack.c.l.b16 %v514
      %v1499 = vunpack.c.l.b16 %v515
      %v1500 = vunpack.c.l.b16 %v516
      %v1501 = vpack.c.b16 %v1286, %v1285
      %v1502 = vpack.c.b16 %v1288, %v1287
      %v1503 = vpack.c.b16 %v1290, %v1289
      %v1504 = vpack.c.b16 %v1292, %v1291
      %v1505 = vpack.c.b16 %v1294, %v1293
      %v1506 = vpack.c.b16 %v1296, %v1295
      %v1507 = vpack.c.b16 %v1298, %v1297
      %v1508 = vpack.c.b16 %v1300, %v1299
      %v1509 = vpack.c.b16 %v1302, %v1301
      %v1510 = vpack.c.b16 %v1304, %v1303
      %v1511 = vpack.c.b16 %v1306, %v1305
      %v1512 = vpack.c.b16 %v1308, %v1307
      %v1513 = vpack.c.b16 %v1310, %v1309
      %v1514 = vpack.c.b16 %v1312, %v1311
      %v1515 = vpack.c.b16 %v1314, %v1313
      %v1516 = vpack.c.b16 %v1316, %v1315
      %v1517 = vpack.c.b16 %v1318, %v1317
      %v1518 = vpack.c.b16 %v1320, %v1319
      %v1519 = vpack.c.b16 %v1322, %v1321
      %v1520 = vpack.c.b16 %v1324, %v1323
      %v1521 = vpack.c.b16 %v1326, %v1325
      %v1522 = vpack.c.b16 %v1328, %v1327
      %v1523 = vpack.c.b16 %v1330, %v1329
      %v1524 = vpack.c.b16 %v1332, %v1331
      %v1525 = vpack.c.b16 %v1334, %v1333
      %v1526 = vpack.c.b16 %v1336, %v1335
      %v1527 = vpack.c.b16 %v1338, %v1337
      %v1528 = vpack.c.b16 %v1340, %v1339
      %v1529 = vpack.c.b16 %v1342, %v1341
      %v1530 = vpack.c.b16 %v1344, %v1343
      %v1531 = vpack.c.b16 %v1346, %v1345
      %v1532 = vpack.c.b16 %v1348, %v1347
      %v1533 = vpack.c.b16 %v1350, %v1349
      %v1534 = vpack.c.b16 %v1352, %v1351
      %v1535 = vpack.c.b16 %v1354, %v1353
      %v1536 = vpack.c.b16 %v1356, %v1355
      %v1537 = vpack.c.b16 %v1358, %v1357
      %v1538 = vpack.c.b16 %v1360, %v1359
      %v1539 = vpack.c.b16 %v1362, %v1361
      %v1540 = vpack.c.b16 %v1364, %v1363
      %v1541 = vpack.c.b16 %v1366, %v1365
      %v1542 = vpack.c.b16 %v1368, %v1367
      %v1543 = vpack.c.b16 %v1370, %v1369
      %v1544 = vpack.c.b16 %v1372, %v1371
      %v1545 = vpack.c.b16 %v1374, %v1373
      %v1546 = vpack.c.b16 %v1376, %v1375
      %v1547 = vpack.c.b16 %v1378, %v1377
      %v1548 = vpack.c.b16 %v1380, %v1379
      %v1549 = vpack.c.b16 %v1382, %v1381
      %v1550 = vpack.c.b16 %v1384, %v1383
      %v1551 = vpack.c.b16 %v1386, %v1385
      %v1552 = vpack.c.b16 %v1388, %v1387
      %v1553 = vpack.c.b16 %v1390, %v1389
      %v1554 = vpack.c.b16 %v1392, %v1391
      %v1555 = vpack.c.b16 %v1394, %v1393
      %v1556 = vpack.c.b16 %v1396, %v1395
      %v1557 = vpack.c.b16 %v1398, %v1397
      %v1558 = vpack.c.b16 %v1400, %v1399
      %v1559 = vpack.c.b16 %v1402, %v1401
      %v1560 = vpack.c.b16 %v1404, %v1403
      %v1561 = vpack.c.b16 %v1406, %v1405
      %v1562 = vpack.c.b16 %v1408, %v1407
      %v1563 = vpack.c.b16 %v1410, %v1409
      %v1564 = vpack.c.b16 %v1412, %v1411
      %v1565 = vpack.c.b16 %v1414, %v1413
      %v1566 = vpack.c.b16 %v1416, %v1415
      %v1567 = vpack.c.b16 %v1418, %v1417
      %v1568 = vpack.c.b16 %v1420, %v1419
      %v1569 = vpack.c.b16 %v1422, %v1421
      %v1570 = vpack.c.b16 %v1424, %v1423
      %v1571 = vpack.c.b16 %v1426, %v1425
      %v1572 = vpack.c.b16 %v1428, %v1427
      %v1573 = vpack.c.b16 %v1430, %v1429
      %v1574 = vpack.c.b16 %v1432, %v1431
      %v1575 = vpack.c.b16 %v1434, %v1433
      %v1576 = vpack.c.b16 %v1436, %v1435
      %v1577 = vpack.c.b16 %v1438, %v1437
      %v1578 = vpack.c.b16 %v1440, %v1439
      %v1579 = vpack.c.b16 %v1442, %v1441
      %v1580 = vpack.c.b16 %v1444, %v1443
      %v1581 = vpack.c.b16 %v1446, %v1445
      %v1582 = vpack.c.b16 %v1448, %v1447
      %v1583 = vpack.c.b16 %v1450, %v1449
      %v1584 = vpack.c.b16 %v1452, %v1451
      %v1585 = vpack.c.b16 %v1454, %v1453
      %v1586 = vpack.c.b16 %v1456, %v1455
      %v1587 = vpack.c.b16 %v1458, %v1457
      %v1588 = vpack.c.b16 %v1460, %v1459
      %v1589 = vpack.c.b16 %v1462, %v1461
      %v1590 = vpack.c.b16 %v1464, %v1463
      %v1591 = vpack.c.b16 %v1466, %v1465
      %v1592 = vpack.c.b16 %v1468, %v1467
      %v1593 = vpack.c.b16 %v1470, %v1469
      %v1594 = vpack.c.b16 %v1472, %v1471
      %v1595 = vpack.c.b16 %v1474, %v1473
      %v1596 = vpack.c.b16 %v1476, %v1475
      %v1597 = vpack.c.b16 %v1478, %v1477
      %v1598 = vpack.c.b16 %v1480, %v1479
      %v1599 = vpack.c.b16 %v1482, %v1481
      %v1600 = vpack.c.b16 %v1484, %v1483
      %v1601 = vpack.c.b16 %v1486, %v1485
      %v1602 = vpack.c.b16 %v1488, %v1487
      %v1603 = vpack.c.b16 %v1490, %v1489
      %v1604 = vpack.c.b16 %v1492, %v1491
      %v1605 = vpack.c.b16 %v1494, %v1493
      %v1606 = vpack.c.b16 %v1496, %v1495
      %v1607 = vpack.c.b16 %v1498, %v1497
      %v1608 = vpack.c.b16 %v1500, %v1499
      %vm1717 = vcmask 523264
      %v1719 = vsel %vm1717, %v866, 0
      %v1722 = vsel %vm1717, %v880, 0
      %v1725 = vsel %vm1717, %v894, 0
      %v1728 = vsel %vm1717, %v908, 0
      %v1731 = vsel %vm1717, %v922, 0
      %v1734 = vsel %vm1717, %v936, 0
      %v1737 = vsel %vm1717, %v950, 0
      %v1740 = vsel %vm1717, %v964, 0
      %1742 = vmatprep.subr.bf16.mxu0 0
      %1743 = vmatpush1.bf16.msra.mxu0 %v1501
      %1744 = vmatprep.subr.bf16.mxu0 0
      %1745 = vmatpush1.bf16.msra.mxu0 %v1502
      %1746 = vmatprep.subr.bf16.mxu0 0
      %1747 = vmatpush1.bf16.msra.mxu0 %v1503
      %1748 = vmatprep.subr.bf16.mxu0 0
      %1749 = vmatpush1.bf16.msra.mxu0 %v1504
      %1750 = vmatprep.subr.bf16.mxu0 0
      %1751 = vmatpush1.bf16.msra.mxu0 %v1505
      %1752 = vmatprep.subr.bf16.mxu0 0
      %1753 = vmatpush1.bf16.msra.mxu0 %v1506
      %1754 = vmatprep.subr.bf16.mxu0 0
      %1755 = vmatpush1.bf16.msra.mxu0 %v1507
      %1756 = vmatprep.subr.bf16.mxu0 0
      %1757 = vmatpush1.bf16.msra.mxu0 %v1508
      %1758 = vmatprep.subr.bf16.mxu0 0
      %1759 = vmatpush1.bf16.msra.mxu0 %v1509
      %1760 = vmatprep.subr.bf16.mxu0 0
      %1761 = vmatpush1.bf16.msra.mxu0 %v1510
      %1762 = vmatprep.subr.bf16.mxu0 0
      %1763 = vmatpush1.bf16.msra.mxu0 %v1511
      %1764 = vmatprep.subr.bf16.mxu0 0
      %1765 = vmatpush1.bf16.msra.mxu0 %v1512
      %1766 = vmatprep.subr.bf16.mxu0 0
      %1767 = vmatpush1.bf16.msra.mxu0 %v1513
      %1768 = vmatprep.subr.bf16.mxu0 0
      %1769 = vmatpush1.bf16.msra.mxu0 %v1514
      %1770 = vmatprep.subr.bf16.mxu0 0
      %1771 = vmatpush1.bf16.msra.mxu0 %v1515
      %1772 = vmatprep.subr.bf16.mxu0 0
      %1773 = vmatpush1.bf16.msra.mxu0 %v1516
      %1774 = vmatprep.mubr.bf16.mxu0 %v854
      %1775 = vmatmul.mubr.bf16.gmra.mrb[0].mxu0 %v853
      %v1776 = vpop.f32.mrb[0].mxu0
      %v1777 = vadd.f32 0.0, %v1776
      %v1778 = vpop.f32.mrb[0].mxu0
      %v1779 = vpop.f32.mrb[0].mxu0
      %v1780 = vadd.f32 0.0, %v1779
      %v1781 = vpop.f32.mrb[0].mxu0
      %1782 = vmatprep.mubr.bf16.mxu0 %v868
      %1783 = vmatmul.mubr.bf16.gmra.mrb[0].mxu0 %v867
      %v1784 = vpop.f32.mrb[0].mxu0
      %v1785 = vadd.f32 0.0, %v1784
      %v1786 = vpop.f32.mrb[0].mxu0
      %v1787 = vpop.f32.mrb[0].mxu0
      %v1788 = vadd.f32 0.0, %v1787
      %v1789 = vpop.f32.mrb[0].mxu0
      %1790 = vmatprep.mubr.bf16.mxu0 %v882
      %1791 = vmatmul.mubr.bf16.gmra.mrb[0].mxu0 %v881
      %v1792 = vpop.f32.mrb[0].mxu0
      %v1793 = vadd.f32 0.0, %v1792
      %v1794 = vpop.f32.mrb[0].mxu0
      %v1795 = vpop.f32.mrb[0].mxu0
      %v1796 = vadd.f32 0.0, %v1795
      %v1797 = vpop.f32.mrb[0].mxu0
      %1798 = vmatprep.mubr.bf16.mxu0 %v896
      %1799 = vmatmul.mubr.bf16.gmra.mrb[0].mxu0 %v895
      %v1800 = vpop.f32.mrb[0].mxu0
      %v1801 = vadd.f32 0.0, %v1800
      %v1802 = vpop.f32.mrb[0].mxu0
      %v1803 = vpop.f32.mrb[0].mxu0
      %v1804 = vadd.f32 0.0, %v1803
      %v1805 = vpop.f32.mrb[0].mxu0
      %1806 = vmatprep.mubr.bf16.mxu0 %v910
      %1807 = vmatmul.mubr.bf16.gmra.mrb[0].mxu0 %v909
      %v1808 = vpop.f32.mrb[0].mxu0
      %v1809 = vadd.f32 0.0, %v1808
      %v1810 = vpop.f32.mrb[0].mxu0
      %v1811 = vpop.f32.mrb[0].mxu0
      %v1812 = vadd.f32 0.0, %v1811
      %v1813 = vpop.f32.mrb[0].mxu0
      %1814 = vmatprep.mubr.bf16.mxu0 %v924
      %1815 = vmatmul.mubr.bf16.gmra.mrb[0].mxu0 %v923
      %v1816 = vpop.f32.mrb[0].mxu0
      %v1817 = vadd.f32 0.0, %v1816
      %v1818 = vpop.f32.mrb[0].mxu0
      %v1819 = vpop.f32.mrb[0].mxu0
      %v1820 = vadd.f32 0.0, %v1819
      %v1821 = vpop.f32.mrb[0].mxu0
      %1822 = vmatprep.mubr.bf16.mxu0 %v938
      %1823 = vmatmul.mubr.bf16.gmra.mrb[0].mxu0 %v937
      %v1824 = vpop.f32.mrb[0].mxu0
      %v1825 = vadd.f32 0.0, %v1824
      %v1826 = vpop.f32.mrb[0].mxu0
      %v1827 = vpop.f32.mrb[0].mxu0
      %v1828 = vadd.f32 0.0, %v1827
      %v1829 = vpop.f32.mrb[0].mxu0
      %1830 = vmatprep.mubr.bf16.mxu0 %v952
      %1831 = vmatmul.mubr.bf16.gmra.mrb[0].mxu0 %v951
      %v1832 = vpop.f32.mrb[0].mxu0
      %v1833 = vadd.f32 0.0, %v1832
      %v1834 = vpop.f32.mrb[0].mxu0
      %v1835 = vpop.f32.mrb[0].mxu0
      %v1836 = vadd.f32 0.0, %v1835
      %v1837 = vpop.f32.mrb[0].mxu0
      %1838 = vdwg.mxu0
      %1839 = vmatprep.subr.bf16.mxu0 0
      %1840 = vmatpush1.bf16.msra.mxu0 %v1517
      %1841 = vmatprep.subr.bf16.mxu0 0
      %1842 = vmatpush1.bf16.msra.mxu0 %v1518
      %1843 = vmatprep.subr.bf16.mxu0 0
      %1844 = vmatpush1.bf16.msra.mxu0 %v1519
      %1845 = vmatprep.subr.bf16.mxu0 0
      %1846 = vmatpush1.bf16.msra.mxu0 %v1520
      %1847 = vmatprep.subr.bf16.mxu0 0
      %1848 = vmatpush1.bf16.msra.mxu0 %v1521
      %1849 = vmatprep.subr.bf16.mxu0 0
      %1850 = vmatpush1.bf16.msra.mxu0 %v1522
      %1851 = vmatprep.subr.bf16.mxu0 0
      %1852 = vmatpush1.bf16.msra.mxu0 %v1523
      %1853 = vmatprep.subr.bf16.mxu0 0
      %1854 = vmatpush1.bf16.msra.mxu0 %v1524
      %1855 = vmatprep.subr.bf16.mxu0 0
      %1856 = vmatpush1.bf16.msra.mxu0 %v1525
      %1857 = vmatprep.subr.bf16.mxu0 0
      %1858 = vmatpush1.bf16.msra.mxu0 %v1526
      %1859 = vmatprep.subr.bf16.mxu0 0
      %1860 = vmatpush1.bf16.msra.mxu0 %v1527
      %1861 = vmatprep.subr.bf16.mxu0 0
      %1862 = vmatpush1.bf16.msra.mxu0 %v1528
      %1863 = vmatprep.subr.bf16.mxu0 0
      %1864 = vmatpush1.bf16.msra.mxu0 %v1529
      %1865 = vmatprep.subr.bf16.mxu0 0
      %1866 = vmatpush1.bf16.msra.mxu0 %v1530
      %1867 = vmatprep.subr.bf16.mxu0 0
      %1868 = vmatpush1.bf16.msra.mxu0 %v1531
      %1869 = vmatprep.subr.bf16.mxu0 0
      %1870 = vmatpush1.bf16.msra.mxu0 %v1532
      %1871 = vmatprep.mubr.bf16.mxu0 %v856
      %1872 = vmatmul.mubr.bf16.gmra.mrb[0].mxu0 %v855
      %v1873 = vpop.f32.mrb[0].mxu0
      %v1874 = vadd.f32 %v1777, %v1873
      %v1875 = vpop.f32.mrb[0].mxu0
      %v1876 = vpop.f32.mrb[0].mxu0
      %v1877 = vadd.f32 %v1780, %v1876
      %v1878 = vpop.f32.mrb[0].mxu0
      %1879 = vmatprep.mubr.bf16.mxu0 %v870
      %1880 = vmatmul.mubr.bf16.gmra.mrb[0].mxu0 %v869
      %v1881 = vpop.f32.mrb[0].mxu0
      %v1882 = vadd.f32 %v1785, %v1881
      %v1883 = vpop.f32.mrb[0].mxu0
      %v1884 = vpop.f32.mrb[0].mxu0
      %v1885 = vadd.f32 %v1788, %v1884
      %v1886 = vpop.f32.mrb[0].mxu0
      %1887 = vmatprep.mubr.bf16.mxu0 %v884
      %1888 = vmatmul.mubr.bf16.gmra.mrb[0].mxu0 %v883
      %v1889 = vpop.f32.mrb[0].mxu0
      %v1890 = vadd.f32 %v1793, %v1889
      %v1891 = vpop.f32.mrb[0].mxu0
      %v1892 = vpop.f32.mrb[0].mxu0
      %v1893 = vadd.f32 %v1796, %v1892
      %v1894 = vpop.f32.mrb[0].mxu0
      %1895 = vmatprep.mubr.bf16.mxu0 %v898
      %1896 = vmatmul.mubr.bf16.gmra.mrb[0].mxu0 %v897
      %v1897 = vpop.f32.mrb[0].mxu0
      %v1898 = vadd.f32 %v1801, %v1897
      %v1899 = vpop.f32.mrb[0].mxu0
      %v1900 = vpop.f32.mrb[0].mxu0
      %v1901 = vadd.f32 %v1804, %v1900
      %v1902 = vpop.f32.mrb[0].mxu0
      %1903 = vmatprep.mubr.bf16.mxu0 %v912
      %1904 = vmatmul.mubr.bf16.gmra.mrb[0].mxu0 %v911
      %v1905 = vpop.f32.mrb[0].mxu0
      %v1906 = vadd.f32 %v1809, %v1905
      %v1907 = vpop.f32.mrb[0].mxu0
      %v1908 = vpop.f32.mrb[0].mxu0
      %v1909 = vadd.f32 %v1812, %v1908
      %v1910 = vpop.f32.mrb[0].mxu0
      %1911 = vmatprep.mubr.bf16.mxu0 %v926
      %1912 = vmatmul.mubr.bf16.gmra.mrb[0].mxu0 %v925
      %v1913 = vpop.f32.mrb[0].mxu0
      %v1914 = vadd.f32 %v1817, %v1913
      %v1915 = vpop.f32.mrb[0].mxu0
      %v1916 = vpop.f32.mrb[0].mxu0
      %v1917 = vadd.f32 %v1820, %v1916
      %v1918 = vpop.f32.mrb[0].mxu0
      %1919 = vmatprep.mubr.bf16.mxu0 %v940
      %1920 = vmatmul.mubr.bf16.gmra.mrb[0].mxu0 %v939
      %v1921 = vpop.f32.mrb[0].mxu0
      %v1922 = vadd.f32 %v1825, %v1921
      %v1923 = vpop.f32.mrb[0].mxu0
      %v1924 = vpop.f32.mrb[0].mxu0
      %v1925 = vadd.f32 %v1828, %v1924
      %v1926 = vpop.f32.mrb[0].mxu0
      %1927 = vmatprep.mubr.bf16.mxu0 %v954
      %1928 = vmatmul.mubr.bf16.gmra.mrb[0].mxu0 %v953
      %v1929 = vpop.f32.mrb[0].mxu0
      %v1930 = vadd.f32 %v1833, %v1929
      %v1931 = vpop.f32.mrb[0].mxu0
      %v1932 = vpop.f32.mrb[0].mxu0
      %v1933 = vadd.f32 %v1836, %v1932
      %v1934 = vpop.f32.mrb[0].mxu0
      %1935 = vdwg.mxu0
      %1936 = vmatprep.subr.bf16.mxu0 0
      %1937 = vmatpush1.bf16.msra.mxu0 %v1533
      %1938 = vmatprep.subr.bf16.mxu0 0
      %1939 = vmatpush1.bf16.msra.mxu0 %v1534
      %1940 = vmatprep.subr.bf16.mxu0 0
      %1941 = vmatpush1.bf16.msra.mxu0 %v1535
      %1942 = vmatprep.subr.bf16.mxu0 0
      %1943 = vmatpush1.bf16.msra.mxu0 %v1536
      %1944 = vmatprep.subr.bf16.mxu0 0
      %1945 = vmatpush1.bf16.msra.mxu0 %v1537
      %1946 = vmatprep.subr.bf16.mxu0 0
      %1947 = vmatpush1.bf16.msra.mxu0 %v1538
      %1948 = vmatprep.subr.bf16.mxu0 0
      %1949 = vmatpush1.bf16.msra.mxu0 %v1539
      %1950 = vmatprep.subr.bf16.mxu0 0
      %1951 = vmatpush1.bf16.msra.mxu0 %v1540
      %1952 = vmatprep.subr.bf16.mxu0 0
      %1953 = vmatpush1.bf16.msra.mxu0 %v1541
      %1954 = vmatprep.subr.bf16.mxu0 0
      %1955 = vmatpush1.bf16.msra.mxu0 %v1542
      %1956 = vmatprep.subr.bf16.mxu0 0
      %1957 = vmatpush1.bf16.msra.mxu0 %v1543
      %1958 = vmatprep.subr.bf16.mxu0 0
      %1959 = vmatpush1.bf16.msra.mxu0 %v1544
      %1960 = vmatprep.subr.bf16.mxu0 0
      %1961 = vmatpush1.bf16.msra.mxu0 %v1545
      %1962 = vmatprep.subr.bf16.mxu0 0
      %1963 = vmatpush1.bf16.msra.mxu0 %v1546
      %1964 = vmatprep.subr.bf16.mxu0 0
      %1965 = vmatpush1.bf16.msra.mxu0 %v1547
      %1966 = vmatprep.subr.bf16.mxu0 0
      %1967 = vmatpush1.bf16.msra.mxu0 %v1548
      %1968 = vmatprep.mubr.bf16.mxu0 %v858
      %1969 = vmatmul.mubr.bf16.gmra.mrb[0].mxu0 %v857
      %v1970 = vpop.f32.mrb[0].mxu0
      %v1971 = vadd.f32 %v1874, %v1970
      %v1972 = vpop.f32.mrb[0].mxu0
      %v1973 = vpop.f32.mrb[0].mxu0
      %v1974 = vadd.f32 %v1877, %v1973
      %v1975 = vpop.f32.mrb[0].mxu0
      %1976 = vmatprep.mubr.bf16.mxu0 %v872
      %1977 = vmatmul.mubr.bf16.gmra.mrb[0].mxu0 %v871
      %v1978 = vpop.f32.mrb[0].mxu0
      %v1979 = vadd.f32 %v1882, %v1978
      %v1980 = vpop.f32.mrb[0].mxu0
      %v1981 = vpop.f32.mrb[0].mxu0
      %v1982 = vadd.f32 %v1885, %v1981
      %v1983 = vpop.f32.mrb[0].mxu0
      %1984 = vmatprep.mubr.bf16.mxu0 %v886
      %1985 = vmatmul.mubr.bf16.gmra.mrb[0].mxu0 %v885
      %v1986 = vpop.f32.mrb[0].mxu0
      %v1987 = vadd.f32 %v1890, %v1986
      %v1988 = vpop.f32.mrb[0].mxu0
      %v1989 = vpop.f32.mrb[0].mxu0
      %v1990 = vadd.f32 %v1893, %v1989
      %v1991 = vpop.f32.mrb[0].mxu0
      %1992 = vmatprep.mubr.bf16.mxu0 %v900
      %1993 = vmatmul.mubr.bf16.gmra.mrb[0].mxu0 %v899
      %v1994 = vpop.f32.mrb[0].mxu0
      %v1995 = vadd.f32 %v1898, %v1994
      %v1996 = vpop.f32.mrb[0].mxu0
      %v1997 = vpop.f32.mrb[0].mxu0
      %v1998 = vadd.f32 %v1901, %v1997
      %v1999 = vpop.f32.mrb[0].mxu0
      %2000 = vmatprep.mubr.bf16.mxu0 %v914
      %2001 = vmatmul.mubr.bf16.gmra.mrb[0].mxu0 %v913
      %v2002 = vpop.f32.mrb[0].mxu0
      %v2003 = vadd.f32 %v1906, %v2002
      %v2004 = vpop.f32.mrb[0].mxu0
      %v2005 = vpop.f32.mrb[0].mxu0
      %v2006 = vadd.f32 %v1909, %v2005
      %v2007 = vpop.f32.mrb[0].mxu0
      %2008 = vmatprep.mubr.bf16.mxu0 %v928
      %2009 = vmatmul.mubr.bf16.gmra.mrb[0].mxu0 %v927
      %v2010 = vpop.f32.mrb[0].mxu0
      %v2011 = vadd.f32 %v1914, %v2010
      %v2012 = vpop.f32.mrb[0].mxu0
      %v2013 = vpop.f32.mrb[0].mxu0
      %v2014 = vadd.f32 %v1917, %v2013
      %v2015 = vpop.f32.mrb[0].mxu0
      %2016 = vmatprep.mubr.bf16.mxu0 %v942
      %2017 = vmatmul.mubr.bf16.gmra.mrb[0].mxu0 %v941
      %v2018 = vpop.f32.mrb[0].mxu0
      %v2019 = vadd.f32 %v1922, %v2018
      %v2020 = vpop.f32.mrb[0].mxu0
      %v2021 = vpop.f32.mrb[0].mxu0
      %v2022 = vadd.f32 %v1925, %v2021
      %v2023 = vpop.f32.mrb[0].mxu0
      %2024 = vmatprep.mubr.bf16.mxu0 %v956
      %2025 = vmatmul.mubr.bf16.gmra.mrb[0].mxu0 %v955
      %v2026 = vpop.f32.mrb[0].mxu0
      %v2027 = vadd.f32 %v1930, %v2026
      %v2028 = vpop.f32.mrb[0].mxu0
      %v2029 = vpop.f32.mrb[0].mxu0
      %v2030 = vadd.f32 %v1933, %v2029
      %v2031 = vpop.f32.mrb[0].mxu0
      %2032 = vdwg.mxu0
      %2033 = vmatprep.subr.bf16.mxu0 0
      %2034 = vmatpush1.bf16.msra.mxu0 %v1549
      %2035 = vmatprep.subr.bf16.mxu0 0
      %2036 = vmatpush1.bf16.msra.mxu0 %v1550
      %2037 = vmatprep.subr.bf16.mxu0 0
      %2038 = vmatpush1.bf16.msra.mxu0 %v1551
      %2039 = vmatprep.subr.bf16.mxu0 0
      %2040 = vmatpush1.bf16.msra.mxu0 %v1552
      %2041 = vmatprep.subr.bf16.mxu0 0
      %2042 = vmatpush1.bf16.msra.mxu0 %v1553
      %2043 = vmatprep.subr.bf16.mxu0 0
      %2044 = vmatpush1.bf16.msra.mxu0 %v1554
      %2045 = vmatprep.subr.bf16.mxu0 0
      %2046 = vmatpush1.bf16.msra.mxu0 %v1555
      %2047 = vmatprep.subr.bf16.mxu0 0
      %2048 = vmatpush1.bf16.msra.mxu0 %v1556
      %2049 = vmatprep.subr.bf16.mxu0 0
      %2050 = vmatpush1.bf16.msra.mxu0 %v1557
      %2051 = vmatprep.subr.bf16.mxu0 0
      %2052 = vmatpush1.bf16.msra.mxu0 %v1558
      %2053 = vmatprep.subr.bf16.mxu0 0
      %2054 = vmatpush1.bf16.msra.mxu0 %v1559
      %2055 = vmatprep.subr.bf16.mxu0 0
      %2056 = vmatpush1.bf16.msra.mxu0 %v1560
      %2057 = vmatprep.subr.bf16.mxu0 0
      %2058 = vmatpush1.bf16.msra.mxu0 %v1561
      %2059 = vmatprep.subr.bf16.mxu0 0
      %2060 = vmatpush1.bf16.msra.mxu0 %v1562
      %2061 = vmatprep.subr.bf16.mxu0 0
      %2062 = vmatpush1.bf16.msra.mxu0 %v1563
      %2063 = vmatprep.subr.bf16.mxu0 0
      %2064 = vmatpush1.bf16.msra.mxu0 %v1564
      %2065 = vmatprep.mubr.bf16.mxu0 %v860
      %2066 = vmatmul.mubr.bf16.gmra.mrb[0].mxu0 %v859
      %v2067 = vpop.f32.mrb[0].mxu0
      %v2068 = vadd.f32 %v1971, %v2067
      %v2069 = vpop.f32.mrb[0].mxu0
      %v2070 = vpop.f32.mrb[0].mxu0
      %v2071 = vadd.f32 %v1974, %v2070
      %v2072 = vpop.f32.mrb[0].mxu0
      %2073 = vmatprep.mubr.bf16.mxu0 %v874
      %2074 = vmatmul.mubr.bf16.gmra.mrb[0].mxu0 %v873
      %v2075 = vpop.f32.mrb[0].mxu0
      %v2076 = vadd.f32 %v1979, %v2075
      %v2077 = vpop.f32.mrb[0].mxu0
      %v2078 = vpop.f32.mrb[0].mxu0
      %v2079 = vadd.f32 %v1982, %v2078
      %v2080 = vpop.f32.mrb[0].mxu0
      %2081 = vmatprep.mubr.bf16.mxu0 %v888
      %2082 = vmatmul.mubr.bf16.gmra.mrb[0].mxu0 %v887
      %v2083 = vpop.f32.mrb[0].mxu0
      %v2084 = vadd.f32 %v1987, %v2083
      %v2085 = vpop.f32.mrb[0].mxu0
      %v2086 = vpop.f32.mrb[0].mxu0
      %v2087 = vadd.f32 %v1990, %v2086
      %v2088 = vpop.f32.mrb[0].mxu0
      %2089 = vmatprep.mubr.bf16.mxu0 %v902
      %2090 = vmatmul.mubr.bf16.gmra.mrb[0].mxu0 %v901
      %v2091 = vpop.f32.mrb[0].mxu0
      %v2092 = vadd.f32 %v1995, %v2091
      %v2093 = vpop.f32.mrb[0].mxu0
      %v2094 = vpop.f32.mrb[0].mxu0
      %v2095 = vadd.f32 %v1998, %v2094
      %v2096 = vpop.f32.mrb[0].mxu0
      %2097 = vmatprep.mubr.bf16.mxu0 %v916
      %2098 = vmatmul.mubr.bf16.gmra.mrb[0].mxu0 %v915
      %v2099 = vpop.f32.mrb[0].mxu0
      %v2100 = vadd.f32 %v2003, %v2099
      %v2101 = vpop.f32.mrb[0].mxu0
      %v2102 = vpop.f32.mrb[0].mxu0
      %v2103 = vadd.f32 %v2006, %v2102
      %v2104 = vpop.f32.mrb[0].mxu0
      %2105 = vmatprep.mubr.bf16.mxu0 %v930
      %2106 = vmatmul.mubr.bf16.gmra.mrb[0].mxu0 %v929
      %v2107 = vpop.f32.mrb[0].mxu0
      %v2108 = vadd.f32 %v2011, %v2107
      %v2109 = vpop.f32.mrb[0].mxu0
      %v2110 = vpop.f32.mrb[0].mxu0
      %v2111 = vadd.f32 %v2014, %v2110
      %v2112 = vpop.f32.mrb[0].mxu0
      %2113 = vmatprep.mubr.bf16.mxu0 %v944
      %2114 = vmatmul.mubr.bf16.gmra.mrb[0].mxu0 %v943
      %v2115 = vpop.f32.mrb[0].mxu0
      %v2116 = vadd.f32 %v2019, %v2115
      %v2117 = vpop.f32.mrb[0].mxu0
      %v2118 = vpop.f32.mrb[0].mxu0
      %v2119 = vadd.f32 %v2022, %v2118
      %v2120 = vpop.f32.mrb[0].mxu0
      %2121 = vmatprep.mubr.bf16.mxu0 %v958
      %2122 = vmatmul.mubr.bf16.gmra.mrb[0].mxu0 %v957
      %v2123 = vpop.f32.mrb[0].mxu0
      %v2124 = vadd.f32 %v2027, %v2123
      %v2125 = vpop.f32.mrb[0].mxu0
      %v2126 = vpop.f32.mrb[0].mxu0
      %v2127 = vadd.f32 %v2030, %v2126
      %v2128 = vpop.f32.mrb[0].mxu0
      %2129 = vdwg.mxu0
      %2130 = vmatprep.subr.bf16.mxu0 0
      %2131 = vmatpush1.bf16.msra.mxu0 %v1565
      %2132 = vmatprep.subr.bf16.mxu0 0
      %2133 = vmatpush1.bf16.msra.mxu0 %v1566
      %2134 = vmatprep.subr.bf16.mxu0 0
      %2135 = vmatpush1.bf16.msra.mxu0 %v1567
      %2136 = vmatprep.subr.bf16.mxu0 0
      %2137 = vmatpush1.bf16.msra.mxu0 %v1568
      %2138 = vmatprep.subr.bf16.mxu0 0
      %2139 = vmatpush1.bf16.msra.mxu0 %v1569
      %2140 = vmatprep.subr.bf16.mxu0 0
      %2141 = vmatpush1.bf16.msra.mxu0 %v1570
      %2142 = vmatprep.subr.bf16.mxu0 0
      %2143 = vmatpush1.bf16.msra.mxu0 %v1571
      %2144 = vmatprep.subr.bf16.mxu0 0
      %2145 = vmatpush1.bf16.msra.mxu0 %v1572
      %2146 = vmatprep.subr.bf16.mxu0 0
      %2147 = vmatpush1.bf16.msra.mxu0 %v1573
      %2148 = vmatprep.subr.bf16.mxu0 0
      %2149 = vmatpush1.bf16.msra.mxu0 %v1574
      %2150 = vmatprep.subr.bf16.mxu0 0
      %2151 = vmatpush1.bf16.msra.mxu0 %v1575
      %2152 = vmatprep.subr.bf16.mxu0 0
      %2153 = vmatpush1.bf16.msra.mxu0 %v1576
      %2154 = vmatprep.subr.bf16.mxu0 0
      %2155 = vmatpush1.bf16.msra.mxu0 %v1577
      %2156 = vmatprep.subr.bf16.mxu0 0
      %2157 = vmatpush1.bf16.msra.mxu0 %v1578
      %2158 = vmatprep.subr.bf16.mxu0 0
      %2159 = vmatpush1.bf16.msra.mxu0 %v1579
      %2160 = vmatprep.subr.bf16.mxu0 0
      %2161 = vmatpush1.bf16.msra.mxu0 %v1580
      %2162 = vmatprep.mubr.bf16.mxu0 %v862
      %2163 = vmatmul.mubr.bf16.gmra.mrb[0].mxu0 %v861
      %v2164 = vpop.f32.mrb[0].mxu0
      %v2165 = vadd.f32 %v2068, %v2164
      %v2166 = vpop.f32.mrb[0].mxu0
      %v2167 = vpop.f32.mrb[0].mxu0
      %v2168 = vadd.f32 %v2071, %v2167
      %v2169 = vpop.f32.mrb[0].mxu0
      %2170 = vmatprep.mubr.bf16.mxu0 %v876
      %2171 = vmatmul.mubr.bf16.gmra.mrb[0].mxu0 %v875
      %v2172 = vpop.f32.mrb[0].mxu0
      %v2173 = vadd.f32 %v2076, %v2172
      %v2174 = vpop.f32.mrb[0].mxu0
      %v2175 = vpop.f32.mrb[0].mxu0
      %v2176 = vadd.f32 %v2079, %v2175
      %v2177 = vpop.f32.mrb[0].mxu0
      %2178 = vmatprep.mubr.bf16.mxu0 %v890
      %2179 = vmatmul.mubr.bf16.gmra.mrb[0].mxu0 %v889
      %v2180 = vpop.f32.mrb[0].mxu0
      %v2181 = vadd.f32 %v2084, %v2180
      %v2182 = vpop.f32.mrb[0].mxu0
      %v2183 = vpop.f32.mrb[0].mxu0
      %v2184 = vadd.f32 %v2087, %v2183
      %v2185 = vpop.f32.mrb[0].mxu0
      %2186 = vmatprep.mubr.bf16.mxu0 %v904
      %2187 = vmatmul.mubr.bf16.gmra.mrb[0].mxu0 %v903
      %v2188 = vpop.f32.mrb[0].mxu0
      %v2189 = vadd.f32 %v2092, %v2188
      %v2190 = vpop.f32.mrb[0].mxu0
      %v2191 = vpop.f32.mrb[0].mxu0
      %v2192 = vadd.f32 %v2095, %v2191
      %v2193 = vpop.f32.mrb[0].mxu0
      %2194 = vmatprep.mubr.bf16.mxu0 %v918
      %2195 = vmatmul.mubr.bf16.gmra.mrb[0].mxu0 %v917
      %v2196 = vpop.f32.mrb[0].mxu0
      %v2197 = vadd.f32 %v2100, %v2196
      %v2198 = vpop.f32.mrb[0].mxu0
      %v2199 = vpop.f32.mrb[0].mxu0
      %v2200 = vadd.f32 %v2103, %v2199
      %v2201 = vpop.f32.mrb[0].mxu0
      %2202 = vmatprep.mubr.bf16.mxu0 %v932
      %2203 = vmatmul.mubr.bf16.gmra.mrb[0].mxu0 %v931
      %v2204 = vpop.f32.mrb[0].mxu0
      %v2205 = vadd.f32 %v2108, %v2204
      %v2206 = vpop.f32.mrb[0].mxu0
      %v2207 = vpop.f32.mrb[0].mxu0
      %v2208 = vadd.f32 %v2111, %v2207
      %v2209 = vpop.f32.mrb[0].mxu0
      %2210 = vmatprep.mubr.bf16.mxu0 %v946
      %2211 = vmatmul.mubr.bf16.gmra.mrb[0].mxu0 %v945
      %v2212 = vpop.f32.mrb[0].mxu0
      %v2213 = vadd.f32 %v2116, %v2212
      %v2214 = vpop.f32.mrb[0].mxu0
      %v2215 = vpop.f32.mrb[0].mxu0
      %v2216 = vadd.f32 %v2119, %v2215
      %v2217 = vpop.f32.mrb[0].mxu0
      %2218 = vmatprep.mubr.bf16.mxu0 %v960
      %2219 = vmatmul.mubr.bf16.gmra.mrb[0].mxu0 %v959
      %v2220 = vpop.f32.mrb[0].mxu0
      %v2221 = vadd.f32 %v2124, %v2220
      %v2222 = vpop.f32.mrb[0].mxu0
      %v2223 = vpop.f32.mrb[0].mxu0
      %v2224 = vadd.f32 %v2127, %v2223
      %v2225 = vpop.f32.mrb[0].mxu0
      %2226 = vdwg.mxu0
      %2227 = vmatprep.subr.bf16.mxu0 0
      %2228 = vmatpush1.bf16.msra.mxu0 %v1581
      %2229 = vmatprep.subr.bf16.mxu0 0
      %2230 = vmatpush1.bf16.msra.mxu0 %v1582
      %2231 = vmatprep.subr.bf16.mxu0 0
      %2232 = vmatpush1.bf16.msra.mxu0 %v1583
      %2233 = vmatprep.subr.bf16.mxu0 0
      %2234 = vmatpush1.bf16.msra.mxu0 %v1584
      %2235 = vmatprep.subr.bf16.mxu0 0
      %2236 = vmatpush1.bf16.msra.mxu0 %v1585
      %2237 = vmatprep.subr.bf16.mxu0 0
      %2238 = vmatpush1.bf16.msra.mxu0 %v1586
      %2239 = vmatprep.subr.bf16.mxu0 0
      %2240 = vmatpush1.bf16.msra.mxu0 %v1587
      %2241 = vmatprep.subr.bf16.mxu0 0
      %2242 = vmatpush1.bf16.msra.mxu0 %v1588
      %2243 = vmatprep.subr.bf16.mxu0 0
      %2244 = vmatpush1.bf16.msra.mxu0 %v1589
      %2245 = vmatprep.subr.bf16.mxu0 0
      %2246 = vmatpush1.bf16.msra.mxu0 %v1590
      %2247 = vmatprep.subr.bf16.mxu0 0
      %2248 = vmatpush1.bf16.msra.mxu0 %v1591
      %2249 = vmatprep.subr.bf16.mxu0 0
      %2250 = vmatpush1.bf16.msra.mxu0 %v1592
      %2251 = vmatprep.subr.bf16.mxu0 0
      %2252 = vmatpush1.bf16.msra.mxu0 %v1593
      %2253 = vmatprep.subr.bf16.mxu0 0
      %2254 = vmatpush1.bf16.msra.mxu0 %v1594
      %2255 = vmatprep.subr.bf16.mxu0 0
      %2256 = vmatpush1.bf16.msra.mxu0 %v1595
      %2257 = vmatprep.subr.bf16.mxu0 0
      %2258 = vmatpush1.bf16.msra.mxu0 %v1596
      %2259 = vmatprep.mubr.bf16.mxu0 %v864
      %2260 = vmatmul.mubr.bf16.gmra.mrb[0].mxu0 %v863
      %v2261 = vpop.f32.mrb[0].mxu0
      %v2262 = vadd.f32 %v2165, %v2261
      %v2263 = vpop.f32.mrb[0].mxu0
      %v2264 = vpop.f32.mrb[0].mxu0
      %v2265 = vadd.f32 %v2168, %v2264
      %v2266 = vpop.f32.mrb[0].mxu0
      %2267 = vmatprep.mubr.bf16.mxu0 %v878
      %2268 = vmatmul.mubr.bf16.gmra.mrb[0].mxu0 %v877
      %v2269 = vpop.f32.mrb[0].mxu0
      %v2270 = vadd.f32 %v2173, %v2269
      %v2271 = vpop.f32.mrb[0].mxu0
      %v2272 = vpop.f32.mrb[0].mxu0
      %v2273 = vadd.f32 %v2176, %v2272
      %v2274 = vpop.f32.mrb[0].mxu0
      %2275 = vmatprep.mubr.bf16.mxu0 %v892
      %2276 = vmatmul.mubr.bf16.gmra.mrb[0].mxu0 %v891
      %v2277 = vpop.f32.mrb[0].mxu0
      %v2278 = vadd.f32 %v2181, %v2277
      %v2279 = vpop.f32.mrb[0].mxu0
      %v2280 = vpop.f32.mrb[0].mxu0
      %v2281 = vadd.f32 %v2184, %v2280
      %v2282 = vpop.f32.mrb[0].mxu0
      %2283 = vmatprep.mubr.bf16.mxu0 %v906
      %2284 = vmatmul.mubr.bf16.gmra.mrb[0].mxu0 %v905
      %v2285 = vpop.f32.mrb[0].mxu0
      %v2286 = vadd.f32 %v2189, %v2285
      %v2287 = vpop.f32.mrb[0].mxu0
      %v2288 = vpop.f32.mrb[0].mxu0
      %v2289 = vadd.f32 %v2192, %v2288
      %v2290 = vpop.f32.mrb[0].mxu0
      %2291 = vmatprep.mubr.bf16.mxu0 %v920
      %2292 = vmatmul.mubr.bf16.gmra.mrb[0].mxu0 %v919
      %v2293 = vpop.f32.mrb[0].mxu0
      %v2294 = vadd.f32 %v2197, %v2293
      %v2295 = vpop.f32.mrb[0].mxu0
      %v2296 = vpop.f32.mrb[0].mxu0
      %v2297 = vadd.f32 %v2200, %v2296
      %v2298 = vpop.f32.mrb[0].mxu0
      %2299 = vmatprep.mubr.bf16.mxu0 %v934
      %2300 = vmatmul.mubr.bf16.gmra.mrb[0].mxu0 %v933
      %v2301 = vpop.f32.mrb[0].mxu0
      %v2302 = vadd.f32 %v2205, %v2301
      %v2303 = vpop.f32.mrb[0].mxu0
      %v2304 = vpop.f32.mrb[0].mxu0
      %v2305 = vadd.f32 %v2208, %v2304
      %v2306 = vpop.f32.mrb[0].mxu0
      %2307 = vmatprep.mubr.bf16.mxu0 %v948
      %2308 = vmatmul.mubr.bf16.gmra.mrb[0].mxu0 %v947
      %v2309 = vpop.f32.mrb[0].mxu0
      %v2310 = vadd.f32 %v2213, %v2309
      %v2311 = vpop.f32.mrb[0].mxu0
      %v2312 = vpop.f32.mrb[0].mxu0
      %v2313 = vadd.f32 %v2216, %v2312
      %v2314 = vpop.f32.mrb[0].mxu0
      %2315 = vmatprep.mubr.bf16.mxu0 %v962
      %2316 = vmatmul.mubr.bf16.gmra.mrb[0].mxu0 %v961
      %v2317 = vpop.f32.mrb[0].mxu0
      %v2318 = vadd.f32 %v2221, %v2317
      %v2319 = vpop.f32.mrb[0].mxu0
      %v2320 = vpop.f32.mrb[0].mxu0
      %v2321 = vadd.f32 %v2224, %v2320
      %v2322 = vpop.f32.mrb[0].mxu0
      %2323 = vdwg.mxu0
      %2324 = vmatprep.subr.bf16.mxu0 0
      %2325 = vmatpush1.bf16.msra.mxu0 %v1597
      %2326 = vmatprep.subr.bf16.mxu0 0
      %2327 = vmatpush1.bf16.msra.mxu0 %v1598
      %2328 = vmatprep.subr.bf16.mxu0 0
      %2329 = vmatpush1.bf16.msra.mxu0 %v1599
      %2330 = vmatprep.subr.bf16.mxu0 0
      %2331 = vmatpush1.bf16.msra.mxu0 %v1600
      %2332 = vmatprep.subr.bf16.mxu0 0
      %2333 = vmatpush1.bf16.msra.mxu0 %v1601
      %2334 = vmatprep.subr.bf16.mxu0 0
      %2335 = vmatpush1.bf16.msra.mxu0 %v1602
      %2336 = vmatprep.subr.bf16.mxu0 0
      %2337 = vmatpush1.bf16.msra.mxu0 %v1603
      %2338 = vmatprep.subr.bf16.mxu0 0
      %2339 = vmatpush1.bf16.msra.mxu0 %v1604
      %2340 = vmatprep.subr.bf16.mxu0 0
      %2341 = vmatpush1.bf16.msra.mxu0 %v1605
      %2342 = vmatprep.subr.bf16.mxu0 0
      %2343 = vmatpush1.bf16.msra.mxu0 %v1606
      %2344 = vmatprep.subr.bf16.mxu0 0
      %2345 = vmatpush1.bf16.msra.mxu0 %v1607
      %2346 = vmatprep.subr.bf16.mxu0 0
      %2347 = vmatpush1.bf16.msra.mxu0 %v1608
      %2348 = vmatprep.subr.bf16.mxu0 0
      %2349 = vmatpush1.bf16.msra.mxu0 0
      %2350 = vmatprep.subr.bf16.mxu0 0
      %2351 = vmatpush1.bf16.msra.mxu0 0
      %2352 = vmatprep.subr.bf16.mxu0 0
      %2353 = vmatpush1.bf16.msra.mxu0 0
      %2354 = vmatprep.subr.bf16.mxu0 0
      %2355 = vmatpush1.bf16.msra.mxu0 0
      %2356 = vmatprep.mubr.bf16.mxu0 %v1719
      %2357 = vmatmul.mubr.bf16.gmra.mrb[0].mxu0 %v865
      %v2358 = vpop.f32.mrb[0].mxu0
      %v2359 = vadd.f32 %v2262, %v2358
      %v2360 = vpop.f32.mrb[0].mxu0
      %v2361 = vpop.f32.mrb[0].mxu0
      %v2362 = vadd.f32 %v2265, %v2361
      %v2363 = vpop.f32.mrb[0].mxu0
      %2364 = vmatprep.mubr.bf16.mxu0 %v1722
      %2365 = vmatmul.mubr.bf16.gmra.mrb[0].mxu0 %v879
      %v2366 = vpop.f32.mrb[0].mxu0
      %v2367 = vadd.f32 %v2270, %v2366
      %v2368 = vpop.f32.mrb[0].mxu0
      %v2369 = vpop.f32.mrb[0].mxu0
      %v2370 = vadd.f32 %v2273, %v2369
      %v2371 = vpop.f32.mrb[0].mxu0
      %2372 = vmatprep.mubr.bf16.mxu0 %v1725
      %2373 = vmatmul.mubr.bf16.gmra.mrb[0].mxu0 %v893
      %v2374 = vpop.f32.mrb[0].mxu0
      %v2375 = vadd.f32 %v2278, %v2374
      %v2376 = vpop.f32.mrb[0].mxu0
      %v2377 = vpop.f32.mrb[0].mxu0
      %v2378 = vadd.f32 %v2281, %v2377
      %v2379 = vpop.f32.mrb[0].mxu0
      %2380 = vmatprep.mubr.bf16.mxu0 %v1728
      %2381 = vmatmul.mubr.bf16.gmra.mrb[0].mxu0 %v907
      %v2382 = vpop.f32.mrb[0].mxu0
      %v2383 = vadd.f32 %v2286, %v2382
      %v2384 = vpop.f32.mrb[0].mxu0
      %v2385 = vpop.f32.mrb[0].mxu0
      %v2386 = vadd.f32 %v2289, %v2385
      %v2387 = vpop.f32.mrb[0].mxu0
      %2388 = vmatprep.mubr.bf16.mxu0 %v1731
      %2389 = vmatmul.mubr.bf16.gmra.mrb[0].mxu0 %v921
      %v2390 = vpop.f32.mrb[0].mxu0
      %v2391 = vadd.f32 %v2294, %v2390
      %v2392 = vpop.f32.mrb[0].mxu0
      %v2393 = vpop.f32.mrb[0].mxu0
      %v2394 = vadd.f32 %v2297, %v2393
      %v2395 = vpop.f32.mrb[0].mxu0
      %2396 = vmatprep.mubr.bf16.mxu0 %v1734
      %2397 = vmatmul.mubr.bf16.gmra.mrb[0].mxu0 %v935
      %v2398 = vpop.f32.mrb[0].mxu0
      %v2399 = vadd.f32 %v2302, %v2398
      %v2400 = vpop.f32.mrb[0].mxu0
      %v2401 = vpop.f32.mrb[0].mxu0
      %v2402 = vadd.f32 %v2305, %v2401
      %v2403 = vpop.f32.mrb[0].mxu0
      %2404 = vmatprep.mubr.bf16.mxu0 %v1737
      %2405 = vmatmul.mubr.bf16.gmra.mrb[0].mxu0 %v949
      %v2406 = vpop.f32.mrb[0].mxu0
      %v2407 = vadd.f32 %v2310, %v2406
      %v2408 = vpop.f32.mrb[0].mxu0
      %v2409 = vpop.f32.mrb[0].mxu0
      %v2410 = vadd.f32 %v2313, %v2409
      %v2411 = vpop.f32.mrb[0].mxu0
      %2412 = vmatprep.mubr.bf16.mxu0 %v1740
      %2413 = vmatmul.mubr.bf16.gmra.mrb[0].mxu0 %v963
      %v2414 = vpop.f32.mrb[0].mxu0
      %v2415 = vadd.f32 %v2318, %v2414
      %v2416 = vpop.f32.mrb[0].mxu0
      %v2417 = vpop.f32.mrb[0].mxu0
      %v2418 = vadd.f32 %v2321, %v2417
      %v2419 = vpop.f32.mrb[0].mxu0
      %2420 = vdwg.mxu0
      %2421 = vst [vmem:[%s182] sm:$0xff] %v2359
      %2422 = vst [vmem:[%s182 + $0x8] sm:$0xff] %v2362
      %2423 = vst [vmem:[%s182 + $0x10] sm:$0xff] %v2367
      %2424 = vst [vmem:[%s182 + $0x18] sm:$0xff] %v2370
      %2425 = vst [vmem:[%s182 + $0x20] sm:$0xff] %v2375
      %2426 = vst [vmem:[%s182 + $0x28] sm:$0xff] %v2378
      %2427 = vst [vmem:[%s182 + $0x30] sm:$0xff] %v2383
      %2428 = vst [vmem:[%s182 + $0x38] sm:$0xff] %v2386
      %2429 = vst [vmem:[%s182 + $0x40] sm:$0xff] %v2391
      %2430 = vst [vmem:[%s182 + $0x48] sm:$0xff] %v2394
      %2431 = vst [vmem:[%s182 + $0x50] sm:$0xff] %v2399
      %2432 = vst [vmem:[%s182 + $0x58] sm:$0xff] %v2402
      %2433 = vst [vmem:[%s182 + $0x60] sm:$0xff] %v2407
      %2434 = vst [vmem:[%s182 + $0x68] sm:$0xff] %v2410
      %2435 = vst [vmem:[%s182 + $0x70] sm:$0xff] %v2415
      %2436 = vst [vmem:[%s182 + $0x78] sm:$0xff] %v2418
      %v2437 = vadd.f32 %v2359, %v2362
      %v2438 = vadd.f32 %v2437, %v2367
      %v2439 = vadd.f32 %v2438, %v2370
      %v2440 = vadd.f32 %v2439, %v2375
      %v2441 = vadd.f32 %v2440, %v2378
      %v2442 = vadd.f32 %v2441, %v2383
      %v2443 = vadd.f32 %v2442, %v2386
      %v2444 = vadd.f32 %v2443, %v2391
      %v2445 = vadd.f32 %v2444, %v2394
      %v2446 = vadd.f32 %v2445, %v2399
      %v2447 = vadd.f32 %v2446, %v2402
      %v2448 = vadd.f32 %v2447, %v2407
      %v2449 = vadd.f32 %v2448, %v2410
      %v2450 = vadd.f32 %v2449, %v2415
      %v2451 = vadd.f32 %v2450, %v2418
      %v2452 = vrot.slane %v2451, 4
      %v2453 = vadd.f32 %v2451, %v2452
      %v2454 = vrot.slane %v2453, 2
      %v2455 = vadd.f32 %v2453, %v2454
      %v2456 = vrot.slane %v2455, 1
      %v2457 = vadd.f32 %v2455, %v2456
      %2458 = vst [vmem:[%s187] sm:$0x1] %v2457
      %v2459 = vmul.f32 %v2359, %v2359
      %v2460 = vmul.f32 %v2362, %v2362
      %v2461 = vmul.f32 %v2367, %v2367
      %v2462 = vmul.f32 %v2370, %v2370
      %v2463 = vmul.f32 %v2375, %v2375
      %v2464 = vmul.f32 %v2378, %v2378
      %v2465 = vmul.f32 %v2383, %v2383
      %v2466 = vmul.f32 %v2386, %v2386
      %v2467 = vmul.f32 %v2391, %v2391
      %v2468 = vmul.f32 %v2394, %v2394
      %v2469 = vmul.f32 %v2399, %v2399
      %v2470 = vmul.f32 %v2402, %v2402
      %v2471 = vmul.f32 %v2407, %v2407
      %v2472 = vmul.f32 %v2410, %v2410
      %v2473 = vmul.f32 %v2415, %v2415
      %v2474 = vmul.f32 %v2418, %v2418
      %v2475 = vadd.f32 %v2459, %v2460
      %v2476 = vadd.f32 %v2475, %v2461
      %v2477 = vadd.f32 %v2476, %v2462
      %v2478 = vadd.f32 %v2477, %v2463
      %v2479 = vadd.f32 %v2478, %v2464
      %v2480 = vadd.f32 %v2479, %v2465
      %v2481 = vadd.f32 %v2480, %v2466
      %v2482 = vadd.f32 %v2481, %v2467
      %v2483 = vadd.f32 %v2482, %v2468
      %v2484 = vadd.f32 %v2483, %v2469
      %v2485 = vadd.f32 %v2484, %v2470
      %v2486 = vadd.f32 %v2485, %v2471
      %v2487 = vadd.f32 %v2486, %v2472
      %v2488 = vadd.f32 %v2487, %v2473
      %v2489 = vadd.f32 %v2488, %v2474
      %v2490 = vrot.slane %v2489, 4
      %v2491 = vadd.f32 %v2489, %v2490
      %v2492 = vrot.slane %v2491, 2
      %v2493 = vadd.f32 %v2491, %v2492
      %v2494 = vrot.slane %v2493, 1
      %v2495 = vadd.f32 %v2493, %v2494
      %2496 = vst [vmem:[%s187 + $0x1] sm:$0x1] %v2495
      %s2497 = smul.u32 16, %s15
      %p2498 = scmp.lt.s32.totalorder %s2497, 79
      %s2499 = scalar_select %p2498, %s2497, 79
      %s2500 = smul.addr %s2499, 8
      %s2501 = scalar_lea.vmem %s2, %s2500
      %p2502 = scmp.lt.s32.totalorder %s15, 4
      %s2503 = scalar_select %p2502, %s15, 4
      %s2504 = smul.addr %s2503, 2
      %s2505 = scalar_lea.vmem %s3, %s2504
      // Predicated region
      $region29: #{prm_forward.4} parent=27 // pred_check
        %p2506 = pneg %p80
      $region30: #{prm_forward.4} parent=27 // pred_check_branch
        %2508 = sbr.rel (%p2506) target = $region32
      $region31: #{prm_forward.4} parent=27 // pred_region
        %s2509 = smul.u32 16, %s15
      $region32: #{prm_forward.4} parent=27 // pred_fallthru
        _
      // Predicated region
      $region33: #{prm_forward.4} parent=27 // pred_check
        %p2510 = pneg %p106
      $region34: #{prm_forward.4} parent=27 // pred_check_branch
        %2512 = sbr.rel (%p2510) target = $region36
      $region35: #{prm_forward.4} parent=27 // pred_region
        _
      $region36: #{prm_forward.4} parent=27 // pred_fallthru
        _
    $region28: #{prm_forward.4} parent=5 // pred_fallthru
      _
    %p2513 = scmp.le.s32.totalorder 2, %s10
    // Predicated region
    $region37: #{prm_forward.4} parent=5 // pred_check
      %p2514 = pneg %p2513
    $region38: #{prm_forward.4} parent=5 // pred_check_branch
      %2516 = sbr.rel (%p2514) target = $region40
    $region39: #{prm_forward.4} parent=5 // pred_region
      %s2517 = ssub.s32 %s10, 2
      // Predicated region
      $region41: #{prm_forward.4} parent=39 // pred_check
        %p2518 = pneg %p86
      $region42: #{prm_forward.4} parent=39 // pred_check_branch
        %2520 = sbr.rel (%p2518) target = $region44
      $region43: #{prm_forward.4} parent=39 // pred_region
        %s2521 = smul.u32 16, %s16
        %p2522 = scmp.lt.s32.totalorder %s2521, 79
        %s2523 = scalar_select %p2522, %s2521, 79
        %s2524 = smul.addr %s2523, 8
        %s2525 = scalar_lea.vmem %s2, %s2524
      $region44: #{prm_forward.4} parent=39 // pred_fallthru
        _
      // Predicated region
      $region45: #{prm_forward.4} parent=39 // pred_check
        %p2526 = pneg %p112
      $region46: #{prm_forward.4} parent=39 // pred_check_branch
        %2528 = sbr.rel (%p2526) target = $region48
      $region47: #{prm_forward.4} parent=39 // pred_region
        %p2529 = scmp.lt.s32.totalorder %s16, 4
        %s2530 = scalar_select %p2529, %s16, 4
        %s2531 = smul.addr %s2530, 2
        %s2532 = scalar_lea.vmem %s3, %s2531
      $region48: #{prm_forward.4} parent=39 // pred_fallthru
        _
    $region40: #{prm_forward.4} parent=5 // pred_fallthru
      _
  $region6: #{prm_forward.4} parent=0 // loop_footer
    %s14 = sadd.s32 1, %s10
  $region7: #{prm_forward.4} parent=0 // loop_footer_branch
    %9 = sbr.rel target = $region3
  $region8: #{prm_forward.4} parent=0 // loop_exit
    _

// kernel: prm_forward.5
$region0: #{prm_forward.5}
  #allocation0 [shape = 'u32[]', space=smem, size = 0x4, offset = 0x4, fixed_abs, tag = 'smem constant byte address 0x4 - core index']
  #allocation1 [shape = 'u32[144,128]{1,0:T(1,128)}', space=vmem, size = 0x12000, scoped, tag = 'internal scratch']
  %s0 = inlined_call_operand.vmem [shape: f32[640,128], index: 0, kind: input, shape index: {}]
  %s1 = inlined_call_operand.vmem [shape: f32[1,128], index: 1, kind: input, shape index: {}]
  %s2 = inlined_call_operand.vmem [shape: f32[1,128], index: 2, kind: input, shape index: {}]
  %s3 = inlined_call_operand.vmem [shape: f32[640,128], index: 3, kind: output, shape index: {}]
  %s4 = sld [smem:[#allocation0]]
  $region45: #{prm_forward.5} parent=0
    _
  %s6 = ssub.s32 1, %s4
  %s7 = scalar_select 0, %s6, %s4
  loop: start=0, step=1, limit=7
  $region2: #{prm_forward.5} parent=0 // loop_pre_header
    _
  $region3: #{prm_forward.5} parent=0 // loop_header
    %s9 = sphi 0, %s13
    %p10 = scmp.ge.s32.totalorder %s9, 7
    %s19 = sphi 0, %s21
    %s22 = sphi 0, %s19
    %s23 = sphi 0, %s22
    %s39 = sphi 0, %s23
    %s43 = sphi 0, %s43
    %s45 = sphi 0, %s43
    %s46 = sphi 0, %s45
    %s60 = sphi 0, %s46
    %s64 = sphi 0, %s64
    %s66 = sphi 0, %s64
    %s67 = sphi 0, %s66
    %s81 = sphi 0, %s67
    %s87 = sphi 0, %s89
    %s90 = sphi 0, %s87
    %s91 = sphi 0, %s90
    %s107 = sphi 0, %s91
  $region4: #{prm_forward.5} parent=0 // loop_header_branch
    %12 = sbr.rel (%p10) target = $region8
  $region5: #{prm_forward.5} parent=0 // loop_body
    %s14 = ssub.s32 %s9, 1
    %s15 = ssub.s32 %s9, 2
    %s16 = sadd.s32 %s9, 1
    %s17 = ssub.s32 %s9, %s16
    %p18 = scmp.eq.s32.totalorder %s17, 0
    %s20 = sadd.s32 %s19, 1
    %s21 = scalar_select %p18, %s19, %s20
    %p24 = pneg %p18
    %p25 = scmp.eq.s32.totalorder %s9, 4
    %p26 = por %p24, %p25
    %p27 = scmp.ne.s32.totalorder %s19, %s22
    %p28 = scmp.eq.s32.totalorder %s9, 0
    %p29 = por %p27, %p28
    %p30 = scmp.ne.s32.totalorder %s19, %s22
    %p31 = scmp.eq.s32.totalorder %s14, 4
    %p32 = por %p30, %p31
    %p33 = scmp.ne.s32.totalorder %s22, %s23
    %p34 = scmp.eq.s32.totalorder %s14, 0
    %p35 = por %p33, %p34
    %p36 = scmp.ne.s32.totalorder %s22, %s23
    %p37 = scmp.eq.s32.totalorder %s15, 4
    %p38 = por %p36, %p37
    %p40 = scmp.ne.s32.totalorder %s23, %s39
    %p41 = scmp.eq.s32.totalorder %s15, 0
    %p42 = por %p40, %p41
    %s44 = sadd.s32 %s43, 1
    %p47 = scmp.eq.s32.totalorder %s9, 4
    %p48 = scmp.ne.s32.totalorder %s43, %s45
    %p49 = scmp.eq.s32.totalorder %s9, 0
    %p50 = por %p48, %p49
    %p51 = scmp.ne.s32.totalorder %s43, %s45
    %p52 = scmp.eq.s32.totalorder %s14, 4
    %p53 = por %p51, %p52
    %p54 = scmp.ne.s32.totalorder %s45, %s46
    %p55 = scmp.eq.s32.totalorder %s14, 0
    %p56 = por %p54, %p55
    %p57 = scmp.ne.s32.totalorder %s45, %s46
    %p58 = scmp.eq.s32.totalorder %s15, 4
    %p59 = por %p57, %p58
    %p61 = scmp.ne.s32.totalorder %s46, %s60
    %p62 = scmp.eq.s32.totalorder %s15, 0
    %p63 = por %p61, %p62
    %s65 = sadd.s32 %s64, 1
    %p68 = scmp.eq.s32.totalorder %s9, 4
    %p69 = scmp.ne.s32.totalorder %s64, %s66
    %p70 = scmp.eq.s32.totalorder %s9, 0
    %p71 = por %p69, %p70
    %p72 = scmp.ne.s32.totalorder %s64, %s66
    %p73 = scmp.eq.s32.totalorder %s14, 4
    %p74 = por %p72, %p73
    %p75 = scmp.ne.s32.totalorder %s66, %s67
    %p76 = scmp.eq.s32.totalorder %s14, 0
    %p77 = por %p75, %p76
    %p78 = scmp.ne.s32.totalorder %s66, %s67
    %p79 = scmp.eq.s32.totalorder %s15, 4
    %p80 = por %p78, %p79
    %p82 = scmp.ne.s32.totalorder %s67, %s81
    %p83 = scmp.eq.s32.totalorder %s15, 0
    %p84 = por %p82, %p83
    %s85 = ssub.s32 %s9, %s16
    %p86 = scmp.eq.s32.totalorder %s85, 0
    %s88 = sadd.s32 %s87, 1
    %s89 = scalar_select %p86, %s87, %s88
    %p92 = pneg %p86
    %p93 = scmp.eq.s32.totalorder %s9, 4
    %p94 = por %p92, %p93
    %p95 = scmp.ne.s32.totalorder %s87, %s90
    %p96 = scmp.eq.s32.totalorder %s9, 0
    %p97 = por %p95, %p96
    %p98 = scmp.ne.s32.totalorder %s87, %s90
    %p99 = scmp.eq.s32.totalorder %s14, 4
    %p100 = por %p98, %p99
    %p101 = scmp.ne.s32.totalorder %s90, %s91
    %p102 = scmp.eq.s32.totalorder %s14, 0
    %p103 = por %p101, %p102
    %p104 = scmp.ne.s32.totalorder %s90, %s91
    %p105 = scmp.eq.s32.totalorder %s15, 4
    %p106 = por %p104, %p105
    %p108 = scmp.ne.s32.totalorder %s91, %s107
    %p109 = scmp.eq.s32.totalorder %s15, 0
    %p110 = por %p108, %p109
    %p111 = scmp.le.s32.totalorder 1, %s9
    %p112 = scmp.lt.s32.totalorder %s9, 6
    %p113 = pnand %p111, %p112
    %p114 = pneg %p113
    // Predicated region
    $region9: #{prm_forward.5} parent=5 // pred_check
      _
    $region10: #{prm_forward.5} parent=5 // pred_check_branch
      %116 = sbr.rel (%p113) target = $region12
    $region11: #{prm_forward.5} parent=5 // pred_region
      %s117 = ssub.s32 %s9, 1
      // Predicated region
      $region13: #{prm_forward.5} parent=11 // pred_check
        %p118 = pneg %p56
      $region14: #{prm_forward.5} parent=11 // pred_check_branch
        %120 = sbr.rel (%p118) target = $region16
      $region15: #{prm_forward.5} parent=11 // pred_region
        _
      $region16: #{prm_forward.5} parent=11 // pred_fallthru
        _
      // Predicated region
      $region17: #{prm_forward.5} parent=11 // pred_check
        %p121 = pneg %p77
      $region18: #{prm_forward.5} parent=11 // pred_check_branch
        %123 = sbr.rel (%p121) target = $region20
      $region19: #{prm_forward.5} parent=11 // pred_region
        _
      $region20: #{prm_forward.5} parent=11 // pred_fallthru
        _
    $region12: #{prm_forward.5} parent=5 // pred_fallthru
      _
    %p124 = scmp.lt.s32.totalorder %s9, 5
    // Predicated region
    $region21: #{prm_forward.5} parent=5 // pred_check
      %p125 = pneg %p124
    $region22: #{prm_forward.5} parent=5 // pred_check_branch
      %127 = sbr.rel (%p125) target = $region24
    $region23: #{prm_forward.5} parent=5 // pred_region
      // Predicated region
      $region25: #{prm_forward.5} parent=23 // pred_check
        %p128 = pneg %p29
      $region26: #{prm_forward.5} parent=23 // pred_check_branch
        %130 = sbr.rel (%p128) target = $region28
      $region27: #{prm_forward.5} parent=23 // pred_region
        %s131 = smul.u32 16, %s9
        %p132 = scmp.lt.s32.totalorder %s131, 79
        %s133 = scalar_select %p132, %s131, 79
        %s134 = smul.addr %s133, 8
        %s135 = scalar_lea.vmem %s0, %s134
        %s136 = smul.u32 16, %s9
      $region28: #{prm_forward.5} parent=23 // pred_fallthru
        _
    $region24: #{prm_forward.5} parent=5 // pred_fallthru
      _
    %p137 = scmp.le.s32.totalorder 1, %s9
    %p138 = scmp.lt.s32.totalorder %s9, 6
    %p139 = pnand %p137, %p138
    %p140 = pneg %p139
    // Predicated region
    $region29: #{prm_forward.5} parent=5 // pred_check
      _
    $region30: #{prm_forward.5} parent=5 // pred_check_branch
      %142 = sbr.rel (%p139) target = $region32
    $region31: #{prm_forward.5} parent=5 // pred_region
      %s143 = ssub.s32 %s9, 1
      %s144 = smul.u32 16, %s14
      %p145 = scmp.lt.s32.totalorder %s144, 79
      %s146 = scalar_select %p145, %s144, 79
      %s147 = smul.addr %s146, 8
      %s148 = scalar_lea.vmem %s0, %s147
      %p149 = pneg %p35
      %p150 = pneg %p32
      %p151 = pneg %p56
      %p152 = pneg %p53
      %p153 = pneg %p77
      %p154 = pneg %p74
      %p155 = pneg %p103
      %p156 = pneg %p100
      %s157 = smul.u32 16, %s14
      %p158 = scmp.lt.s32.totalorder %s157, 79
      %s159 = scalar_select %p158, %s157, 79
      %s160 = smul.addr %s159, 8
      %s161 = scalar_lea.vmem %s3, %s160
      %s162 = smul.u32 16, %s14
      %p163 = scmp.lt.s32.totalorder %s162, 79
      %s164 = scalar_select %p163, %s162, 79
      %s165 = smul.addr %s164, 8
      %s166 = scalar_lea.vmem %s0, %s165
      %s167 = smul.u32 16, %s14
      %s168 = smul.u32 16, %s14
      %p169 = scmp.lt.s32.totalorder %s168, 79
      %s170 = scalar_select %p169, %s168, 79
      %s171 = smul.addr %s170, 8
      %s172 = scalar_lea.vmem %s3, %s171
      %s173 = smul.u32 16, %s14
      %v174 = vld [vmem:[%s166] sm:$0xff]
      %v175 = vld [vmem:[%s166 + $0x8] sm:$0xff]
      %v176 = vld [vmem:[%s166 + $0x10] sm:$0xff]
      %v177 = vld [vmem:[%s166 + $0x18] sm:$0xff]
      %v178 = vld [vmem:[%s166 + $0x20] sm:$0xff]
      %v179 = vld [vmem:[%s166 + $0x28] sm:$0xff]
      %v180 = vld [vmem:[%s166 + $0x30] sm:$0xff]
      %v181 = vld [vmem:[%s166 + $0x38] sm:$0xff]
      %v182 = vld [vmem:[%s166 + $0x40] sm:$0xff]
      %v183 = vld [vmem:[%s166 + $0x48] sm:$0xff]
      %v184 = vld [vmem:[%s166 + $0x50] sm:$0xff]
      %v185 = vld [vmem:[%s166 + $0x58] sm:$0xff]
      %v186 = vld [vmem:[%s166 + $0x60] sm:$0xff]
      %v187 = vld [vmem:[%s166 + $0x68] sm:$0xff]
      %v188 = vld [vmem:[%s166 + $0x70] sm:$0xff]
      %v189 = vld [vmem:[%s166 + $0x78] sm:$0xff]
      %v190 = vld [vmem:[%s1] sm:$0x1]
      %v192 = vlaneseq
      %v193 = vshrl.u32 %v192, 7
      %v194 = vsub.s32 0, %v193
      %v195 = vrot.slane %v190, %v194
      %v197 = vmul.f32 %v174, %v195
      %v198 = vmul.f32 %v175, %v195
      %v199 = vmul.f32 %v176, %v195
      %v200 = vmul.f32 %v177, %v195
      %v201 = vmul.f32 %v178, %v195
      %v202 = vmul.f32 %v179, %v195
      %v203 = vmul.f32 %v180, %v195
      %v204 = vmul.f32 %v181, %v195
      %v205 = vmul.f32 %v182, %v195
      %v206 = vmul.f32 %v183, %v195
      %v207 = vmul.f32 %v184, %v195
      %v208 = vmul.f32 %v185, %v195
      %v209 = vmul.f32 %v186, %v195
      %v210 = vmul.f32 %v187, %v195
      %v211 = vmul.f32 %v188, %v195
      %v212 = vmul.f32 %v189, %v195
      %v213 = vld [vmem:[%s2] sm:$0x1]
      %v215 = vlaneseq
      %v216 = vshrl.u32 %v215, 7
      %v217 = vsub.s32 0, %v216
      %v218 = vrot.slane %v213, %v217
      %v220 = vadd.f32 %v197, %v218
      %v221 = vadd.f32 %v198, %v218
      %v222 = vadd.f32 %v199, %v218
      %v223 = vadd.f32 %v200, %v218
      %v224 = vadd.f32 %v201, %v218
      %v225 = vadd.f32 %v202, %v218
      %v226 = vadd.f32 %v203, %v218
      %v227 = vadd.f32 %v204, %v218
      %v228 = vadd.f32 %v205, %v218
      %v229 = vadd.f32 %v206, %v218
      %v230 = vadd.f32 %v207, %v218
      %v231 = vadd.f32 %v208, %v218
      %v232 = vadd.f32 %v209, %v218
      %v233 = vadd.f32 %v210, %v218
      %v234 = vadd.f32 %v211, %v218
      %v235 = vadd.f32 %v212, %v218
      %236 = vst [vmem:[%s172] sm:$0xff] %v220
      %237 = vst [vmem:[%s172 + $0x8] sm:$0xff] %v221
      %238 = vst [vmem:[%s172 + $0x10] sm:$0xff] %v222
      %239 = vst [vmem:[%s172 + $0x18] sm:$0xff] %v223
      %240 = vst [vmem:[%s172 + $0x20] sm:$0xff] %v224
      %241 = vst [vmem:[%s172 + $0x28] sm:$0xff] %v225
      %242 = vst [vmem:[%s172 + $0x30] sm:$0xff] %v226
      %243 = vst [vmem:[%s172 + $0x38] sm:$0xff] %v227
      %244 = vst [vmem:[%s172 + $0x40] sm:$0xff] %v228
      %245 = vst [vmem:[%s172 + $0x48] sm:$0xff] %v229
      %246 = vst [vmem:[%s172 + $0x50] sm:$0xff] %v230
      %247 = vst [vmem:[%s172 + $0x58] sm:$0xff] %v231
      %248 = vst [vmem:[%s172 + $0x60] sm:$0xff] %v232
      %249 = vst [vmem:[%s172 + $0x68] sm:$0xff] %v233
      %250 = vst [vmem:[%s172 + $0x70] sm:$0xff] %v234
      %251 = vst [vmem:[%s172 + $0x78] sm:$0xff] %v235
      %s252 = smul.u32 16, %s14
      %p253 = scmp.lt.s32.totalorder %s252, 79
      %s254 = scalar_select %p253, %s252, 79
      %s255 = smul.addr %s254, 8
      %s256 = scalar_lea.vmem %s3, %s255
      // Predicated region
      $region33: #{prm_forward.5} parent=31 // pred_check
        %p257 = pneg %p100
      $region34: #{prm_forward.5} parent=31 // pred_check_branch
        %259 = sbr.rel (%p257) target = $region36
      $region35: #{prm_forward.5} parent=31 // pred_region
        %s260 = smul.u32 16, %s14
      $region36: #{prm_forward.5} parent=31 // pred_fallthru
        _
    $region32: #{prm_forward.5} parent=5 // pred_fallthru
      _
    %p261 = scmp.le.s32.totalorder 2, %s9
    // Predicated region
    $region37: #{prm_forward.5} parent=5 // pred_check
      %p262 = pneg %p261
    $region38: #{prm_forward.5} parent=5 // pred_check_branch
      %264 = sbr.rel (%p262) target = $region40
    $region39: #{prm_forward.5} parent=5 // pred_region
      %s265 = ssub.s32 %s9, 2
      // Predicated region
      $region41: #{prm_forward.5} parent=39 // pred_check
        %p266 = pneg %p106
      $region42: #{prm_forward.5} parent=39 // pred_check_branch
        %268 = sbr.rel (%p266) target = $region44
      $region43: #{prm_forward.5} parent=39 // pred_region
        %s269 = smul.u32 16, %s15
        %p270 = scmp.lt.s32.totalorder %s269, 79
        %s271 = scalar_select %p270, %s269, 79
        %s272 = smul.addr %s271, 8
        %s273 = scalar_lea.vmem %s3, %s272
      $region44: #{prm_forward.5} parent=39 // pred_fallthru
        _
    $region40: #{prm_forward.5} parent=5 // pred_fallthru
      _
  $region6: #{prm_forward.5} parent=0 // loop_footer
    %s13 = sadd.s32 1, %s9
  $region7: #{prm_forward.5} parent=0 // loop_footer_branch
    %8 = sbr.rel target = $region3
  $region8: #{prm_forward.5} parent=0 // loop_exit
    _

</llo_original>
